<compile_context>
chip_gen: v7x
topology: tpu7x:2x2x1
jax: 0.10.0
libtpu: 0.0.40
codegen_flags: <defaults>
</compile_context>

<pallas_src>
import math
import functools

import jax
import jax.numpy as jnp
from jax import lax
from jax.experimental import pallas as pl
from jax.experimental.pallas import tpu as pltpu


_NEG_INF = -1e30      # plain Python float: safe to use inside kernels (no captured const)
_LN_EPS = 1e-5        # PyTorch LayerNorm default
_VMEM_LIMIT = 64 * 1024 * 1024


def _cparams(*sems):
    return pltpu.CompilerParams(dimension_semantics=sems,
                                vmem_limit_bytes=_VMEM_LIMIT)


def _row_tile(m, cap=512):
    """Row tile: multiple of 8 dividing m, <= cap, preferring >= 2 grid steps.

    >= 2 grid steps lets dimension_semantics=("parallel",) actually shard across
    the two TensorCores on v7x.  cap=512 keeps per-step overhead amortized on
    v5e/v6e; at this toy config tiles are tiny anyway.
    """
    if m % 8 != 0:
        return m
    single_step = None
    t = min(cap - cap % 8, m)
    while t >= 8:
        if m % t == 0:
            if t < m:
                return t          # largest divisor tile that still yields >=2 steps
            single_step = t
        t -= 8
    return single_step if single_step is not None else m


def _col_tile(n, cap=512):
    """Column tile: lane-dense (multiple of 128) divisor of n, or full n."""
    if n <= cap:
        return n
    for t in range(cap - cap % 128, 0, -128):
        if n % t == 0:
            return t
    return n


# ----------------------------- Pallas kernels -----------------------------

def _proj_kernel(x_ref, w_ref, o_ref):
    # (tm, K) @ (K, tn) -> (tm, tn); bf16 operands, f32 accumulation.
    o_ref[...] = jnp.dot(x_ref[...], w_ref[...],
                         preferred_element_type=jnp.float32).astype(o_ref.dtype)


def _attn_kernel(xq_ref, xkv_ref, wq_ref, wk_ref, wv_ref, bias_ref, o_ref,
                 *, num_heads, dk, dv, is_causal):
    # xq_ref:  (1, Sq, D) bf16 block input
    # xkv_ref: (1, Sk, D) bf16 key/value-side input
    # wq/wk/wv: (D, H*dk) / (D, H*dk) / (D, H*dv) bf16 (1/sqrt(dk) folded into wq)
    # bias_ref: (1, 1, Sk) f32 additive key-padding bias (0 valid / -1e30 masked)
    # o_ref:   (1, Sq, H*dv) bf16, per-head lane slots written directly.
    xq = xq_ref[0]
    xkv = xkv_ref[0]
    sq, sk = xq.shape[0], xkv.shape[0]

    # Fused-in projections: no HBM round trip between projection and attention.
    q = jnp.dot(xq, wq_ref[...], preferred_element_type=jnp.float32).astype(jnp.bfloat16)
    k = jnp.dot(xkv, wk_ref[...], preferred_element_type=jnp.float32).astype(jnp.bfloat16)
    v = jnp.dot(xkv, wv_ref[...], preferred_element_type=jnp.float32).astype(jnp.bfloat16)

    bias = bias_ref[0]                                   # (1, Sk) f32, broadcasts over rows
    if is_causal:
        qi = lax.broadcasted_iota(jnp.int32, (sq, sk), 0)
        ki = lax.broadcasted_iota(jnp.int32, (sq, sk), 1)
        bias = bias + jnp.where(ki <= qi, 0.0, _NEG_INF)  # built once, shared by all heads

    # Static loop over heads (H is small); per-head output goes straight to its lane slot.
    for h in range(num_heads):
        qh = q[:, h * dk:(h + 1) * dk]
        kh = k[:, h * dk:(h + 1) * dk]
        vh = v[:, h * dv:(h + 1) * dv]
        # Contract last dims directly (no kh.T -> no XLU transpose).
        s = lax.dot_general(qh, kh, dimension_numbers=(((1,), (1,)), ((), ())),
                            preferred_element_type=jnp.float32) + bias
        m = jnp.max(s, axis=-1, keepdims=True)
        p = jnp.exp(s - m)
        denom = jnp.sum(p, axis=-1, keepdims=True)
        p = p * pl.reciprocal(denom, approx=True)        # EUP slot; softmax stats in f32
        oh = jnp.dot(p.astype(jnp.bfloat16), vh, preferred_element_type=jnp.float32)
        o_ref[0, :, h * dv:(h + 1) * dv] = oh.astype(o_ref.dtype)


def _outproj_add_ln_kernel(h_ref, w_ref, b_ref, res_ref, g_ref, beta_ref, o_ref):
    # heads @ W_out + b_out + residual, then LayerNorm (f32 statistics), bf16 out.
    y = jnp.dot(h_ref[...], w_ref[...], preferred_element_type=jnp.float32) + b_ref[...]
    y = y + res_ref[...].astype(jnp.float32)
    mu = jnp.mean(y, axis=-1, keepdims=True)
    var = jnp.mean((y - mu) ** 2, axis=-1, keepdims=True)
    out = (y - mu) * lax.rsqrt(var + _LN_EPS) * g_ref[...] + beta_ref[...]
    o_ref[...] = out.astype(o_ref.dtype)


def _ffn_add_ln_kernel(x_ref, w1_ref, b1_ref, w2_ref, b2_ref, g_ref, beta_ref,
                       o_ref, acc_ref):
    # Grid: (row_tiles [parallel], E_chunks [arbitrary]).  Accumulate over E chunks in
    # an f32 VMEM scratch; finalize with + b2 + residual(x) and LayerNorm.
    e = pl.program_id(1)

    @pl.when(e == 0)
    def _():
        acc_ref[...] = jnp.zeros_like(acc_ref)

    h = jnp.dot(x_ref[...], w1_ref[...], preferred_element_type=jnp.float32) + b1_ref[...]
    h = jnp.maximum(h, 0.0)                              # ReLU
    acc_ref[...] += jnp.dot(h.astype(jnp.bfloat16), w2_ref[...],
                            preferred_element_type=jnp.float32)

    @pl.when(e == pl.num_programs(1) - 1)
    def _():
        y = acc_ref[...] + b2_ref[...] + x_ref[...].astype(jnp.float32)
        mu = jnp.mean(y, axis=-1, keepdims=True)
        var = jnp.mean((y - mu) ** 2, axis=-1, keepdims=True)
        out = (y - mu) * lax.rsqrt(var + _LN_EPS) * g_ref[...] + beta_ref[...]
        o_ref[...] = out.astype(o_ref.dtype)


# ----------------------------- kernel wrappers -----------------------------

def project(x2d, w, out_dtype=jnp.float32):
    """(M, K) @ (K, N) with row tiles (parallel) and lane-dense column tiles (parallel)."""
    m, k = x2d.shape
    n = w.shape[1]
    tm = _row_tile(m)
    tn = _col_tile(n)
    return pl.pallas_call(
        _proj_kernel,
        out_shape=jax.ShapeDtypeStruct((m, n), out_dtype),
        grid=(m // tm, n // tn),
        in_specs=[pl.BlockSpec((tm, k), lambda i, j: (i, 0)),
                  pl.BlockSpec((k, tn), lambda i, j: (0, j))],
        out_specs=pl.BlockSpec((tm, tn), lambda i, j: (i, j)),
        compiler_params=_cparams("parallel", "parallel"),
    )(x2d, w)


def attention(x_q, x_kv, w_q, w_k, w_v, bias, *, num_heads, dk, dv, is_causal):
    b, sq, d = x_q.shape
    sk = x_kv.shape[1]
    hdk = num_heads * dk
    hdv = num_heads * dv
    return pl.pallas_call(
        functools.partial(_attn_kernel, num_heads=num_heads, dk=dk, dv=dv,
                          is_causal=is_causal),
        out_shape=jax.ShapeDtypeStruct((b, sq, hdv), jnp.bfloat16),
        grid=(b,),
        in_specs=[pl.BlockSpec((1, sq, d), lambda i: (i, 0, 0)),
                  pl.BlockSpec((1, sk, d), lambda i: (i, 0, 0)),
                  pl.BlockSpec((d, hdk), lambda i: (0, 0)),
                  pl.BlockSpec((d, hdk), lambda i: (0, 0)),
                  pl.BlockSpec((d, hdv), lambda i: (0, 0)),
                  pl.BlockSpec((1, 1, sk), lambda i: (i, 0, 0))],
        out_specs=pl.BlockSpec((1, sq, hdv), lambda i: (i, 0, 0)),
        compiler_params=_cparams("parallel"),
    )(x_q, x_kv, w_q, w_k, w_v, bias)


def outproj_add_ln(heads2d, w_o, b_o, residual2d, ln_g, ln_b):
    m, hdv = heads2d.shape
    d = w_o.shape[1]
    tm = _row_tile(m)
    return pl.pallas_call(
        _outproj_add_ln_kernel,
        out_shape=jax.ShapeDtypeStruct((m, d), jnp.bfloat16),
        grid=(m // tm,),
        in_specs=[pl.BlockSpec((tm, hdv), lambda i: (i, 0)),
                  pl.BlockSpec((hdv, d), lambda i: (0, 0)),
                  pl.BlockSpec((1, d), lambda i: (0, 0)),
                  pl.BlockSpec((tm, d), lambda i: (i, 0)),
                  pl.BlockSpec((1, d), lambda i: (0, 0)),
                  pl.BlockSpec((1, d), lambda i: (0, 0))],
        out_specs=pl.BlockSpec((tm, d), lambda i: (i, 0)),
        compiler_params=_cparams("parallel"),
    )(heads2d, w_o, b_o.reshape(1, d), residual2d,
      ln_g.reshape(1, d), ln_b.reshape(1, d))


def ffn_add_ln(p, x, ln_g, ln_b):
    b, s, d = x.shape
    e = p["w1"].shape[1]
    m = b * s
    tm = _row_tile(m)
    te = _col_tile(e)
    y = pl.pallas_call(
        _ffn_add_ln_kernel,
        out_shape=jax.ShapeDtypeStruct((m, d), jnp.bfloat16),
        grid=(m // tm, e // te),
        in_specs=[pl.BlockSpec((tm, d), lambda i, ej: (i, 0)),
                  pl.BlockSpec((d, te), lambda i, ej: (0, ej)),
                  pl.BlockSpec((1, te), lambda i, ej: (0, ej)),
                  pl.BlockSpec((te, d), lambda i, ej: (ej, 0)),
                  pl.BlockSpec((1, d), lambda i, ej: (0, 0)),
                  pl.BlockSpec((1, d), lambda i, ej: (0, 0)),
                  pl.BlockSpec((1, d), lambda i, ej: (0, 0))],
        out_specs=pl.BlockSpec((tm, d), lambda i, ej: (i, 0)),
        scratch_shapes=[pltpu.VMEM((tm, d), jnp.float32)],
        compiler_params=_cparams("parallel", "arbitrary"),
    )(x.reshape(m, d), p["w1"], p["b1"].reshape(1, e), p["w2"],
      p["b2"].reshape(1, d), ln_g.reshape(1, d), ln_b.reshape(1, d))
    return y.reshape(b, s, d)


# ----------------------------- model blocks -----------------------------

def mha_block(p, x_q, x_kv, bias, ln_g, ln_b, *, num_heads, is_causal):
    """Multi-head attention (projections fused in-kernel) + W_out + residual + LayerNorm."""
    b, sq, d = x_q.shape
    dk = d // num_heads
    heads = attention(x_q, x_kv, p["w_q"], p["w_k"], p["w_v"], bias,
                      num_heads=num_heads, dk=dk, dv=dk, is_causal=is_causal)
    out = outproj_add_ln(heads.reshape(b * sq, d), p["w_o"], p["b_o"],
                         x_q.reshape(b * sq, d), ln_g, ln_b)
    return out.reshape(b, sq, d)


def encoder_block(p, x, enc_bias, num_heads):
    x = mha_block(p["mha"], x, x, enc_bias, p["ln1_g"], p["ln1_b"],
                  num_heads=num_heads, is_causal=False)
    x = ffn_add_ln(p["ffn"], x, p["ln2_g"], p["ln2_b"])
    return x


def decoder_block(p, x, enc_out, enc_bias, dec_bias, num_heads):
    x = mha_block(p["self_mha"], x, x, dec_bias, p["ln1_g"], p["ln1_b"],
                  num_heads=num_heads, is_causal=True)
    x = mha_block(p["cross_mha"], x, enc_out, enc_bias, p["ln2_g"], p["ln2_b"],
                  num_heads=num_heads, is_causal=False)
    x = ffn_add_ln(p["ffn"], x, p["ln3_g"], p["ln3_b"])
    return x


def transformer_forward(params, cfg, enc_tokens, dec_tokens, enc_mask, dec_mask):
    d = cfg["model_dim"]
    h = cfg["num_heads"]
    scale = math.sqrt(d)
    pos = params["pos_enc"]

    # Embedding gather + positional encoding (glue, plain JAX). Dropout = identity (eval).
    enc_x = (jnp.take(params["enc_emb"], enc_tokens, axis=0).astype(jnp.float32) * scale
             + pos[: enc_tokens.shape[1]]).astype(jnp.bfloat16)
    dec_x = (jnp.take(params["dec_emb"], dec_tokens, axis=0).astype(jnp.float32) * scale
             + pos[: dec_tokens.shape[1]]).astype(jnp.bfloat16)

    # Key-padding masks as f32 additive biases, computed once and shared by all layers/heads.
    enc_bias = jnp.where(enc_mask[:, None, :], 0.0, _NEG_INF).astype(jnp.float32)
    dec_bias = jnp.where(dec_mask[:, None, :], 0.0, _NEG_INF).astype(jnp.float32)

    for bp in params["encoder"]:
        enc_x = encoder_block(bp, enc_x, enc_bias, h)
    for bp in params["decoder"]:
        dec_x = decoder_block(bp, dec_x, enc_x, enc_bias, dec_bias, h)

    # lm_head weight tied to the decoder embedding; pre-transpose once to (D, V) bf16
    # so the kernel matmul is a plain lane-dense (tm, D) @ (D, tV).
    b, s, _ = dec_x.shape
    emb_t = params["dec_emb"].T
    logits = project(dec_x.reshape(b * s, d), emb_t, out_dtype=jnp.float32)
    return logits.reshape(b, s, -1)


# ----------------------------- parameter init -----------------------------

def _init_mha(key, d, h):
    dk = d // h
    k1, k2, k3, k4, k5 = jax.random.split(key, 5)
    # 1/sqrt(dk) folded into the Q projection (semantically identical to dividing scores).
    return dict(
        w_q=((0.02 / math.sqrt(dk)) *
             jax.random.normal(k1, (d, d), jnp.float32)).astype(jnp.bfloat16),
        w_k=(0.02 * jax.random.normal(k2, (d, d), jnp.float32)).astype(jnp.bfloat16),
        w_v=(0.02 * jax.random.normal(k3, (d, d), jnp.float32)).astype(jnp.bfloat16),
        w_o=(0.02 * jax.random.normal(k4, (d, d), jnp.float32)).astype(jnp.bfloat16),
        b_o=0.02 * jax.random.normal(k5, (d,), jnp.float32),
    )


def _init_ffn(key, d, e):
    k1, k2, k3, k4 = jax.random.split(key, 4)
    return dict(
        w1=(0.02 * jax.random.normal(k1, (d, e), jnp.float32)).astype(jnp.bfloat16),
        b1=0.02 * jax.random.normal(k2, (e,), jnp.float32),
        w2=(0.02 * jax.random.normal(k3, (e, d), jnp.float32)).astype(jnp.bfloat16),
        b2=0.02 * jax.random.normal(k4, (d,), jnp.float32),
    )


def _init_encoder_block(key, d, h, e):
    k1, k2 = jax.random.split(key, 2)
    return dict(
        mha=_init_mha(k1, d, h),
        ffn=_init_ffn(k2, d, e),
        ln1_g=jnp.ones((d,), jnp.float32), ln1_b=jnp.zeros((d,), jnp.float32),
        ln2_g=jnp.ones((d,), jnp.float32), ln2_b=jnp.zeros((d,), jnp.float32),
    )


def _init_decoder_block(key, d, h, e):
    k1, k2, k3 = jax.random.split(key, 3)
    return dict(
        self_mha=_init_mha(k1, d, h),
        cross_mha=_init_mha(k2, d, h),
        ffn=_init_ffn(k3, d, e),
        ln1_g=jnp.ones((d,), jnp.float32), ln1_b=jnp.zeros((d,), jnp.float32),
        ln2_g=jnp.ones((d,), jnp.float32), ln2_b=jnp.zeros((d,), jnp.float32),
        ln3_g=jnp.ones((d,), jnp.float32), ln3_b=jnp.zeros((d,), jnp.float32),
    )


def _positional_encoding(max_seq_len, d):
    positions = jnp.arange(max_seq_len, dtype=jnp.float32)[:, None]
    div_term = 1.0 / jnp.power(10000.0, jnp.arange(0, d, 2, dtype=jnp.float32) / d)
    freq = positions * div_term
    pe = jnp.zeros((max_seq_len, d), jnp.float32)
    pe = pe.at[:, 0::2].set(jnp.sin(freq))
    pe = pe.at[:, 1::2].set(jnp.cos(freq))
    return pe


def init_params(key, cfg):
    d, h, e = cfg["model_dim"], cfg["num_heads"], cfg["expansion_dim"]
    v, L = cfg["vocab_size"], cfg["max_seq_len"]
    keys = jax.random.split(key, 2 + 2 * cfg["num_blocks"])
    return dict(
        enc_emb=(0.02 * jax.random.normal(keys[0], (v, d), jnp.float32)).astype(jnp.bfloat16),
        dec_emb=(0.02 * jax.random.normal(keys[1], (v, d), jnp.float32)).astype(jnp.bfloat16),
        pos_enc=_positional_encoding(L, d),
        encoder=[_init_encoder_block(keys[2 + i], d, h, e)
                 for i in range(cfg["num_blocks"])],
        decoder=[_init_decoder_block(keys[2 + cfg["num_blocks"] + i], d, h, e)
                 for i in range(cfg["num_blocks"])],
    )


# ----------------------------- main -----------------------------

if __name__ == "__main__":
    cfg = dict(model_dim=32, expansion_dim=64, num_heads=2, num_blocks=2,
               dropout_rate=0.1, vocab_size=64, max_seq_len=16)

    B, ENC_S, DEC_S = 2, 8, 8
    root = jax.random.PRNGKey(0)
    k_params, k_enc, k_dec = jax.random.split(root, 3)

    params = init_params(k_params, cfg)

    encoder_input = jax.random.randint(k_enc, (B, ENC_S), 0, cfg["vocab_size"],
                                       dtype=jnp.int32)
    decoder_input = jax.random.randint(k_dec, (B, DEC_S), 0, cfg["vocab_size"],
                                       dtype=jnp.int32)
    # Boolean padding masks (True = valid token); pad the last encoder position.
    enc_padding_mask = jnp.ones((B, ENC_S), jnp.bool_).at[:, -1].set(False)
    dec_padding_mask = jnp.ones((B, DEC_S), jnp.bool_)

    # TODO(synk): fully-masked key rows produce a uniform softmax instead of PyTorch's
    # NaN from masked_fill(-inf); bf16 storage means agreement only to ~1e-2 rel. tol.
    fwd = jax.jit(lambda p, et, dt, em, dm: transformer_forward(p, cfg, et, dt, em, dm))
    logits = fwd(params, encoder_input, decoder_input,
                 enc_padding_mask, dec_padding_mask)
    logits = jax.block_until_ready(logits)

    assert logits.shape == (B, DEC_S, cfg["vocab_size"])
    assert bool(jnp.all(jnp.isfinite(logits)))
    print("KERNEL_OK")
</pallas_src>

<mosaic_0001>
module attributes {stable_mosaic.version = 11 : i64} {
  func.func @_outproj_add_ln_kernel(%arg0: i32, %arg1: memref<8x32xbf16, #tpu.memory_space<vmem>>, %arg2: memref<32x32xbf16, #tpu.memory_space<vmem>>, %arg3: memref<1x32xf32, #tpu.memory_space<vmem>>, %arg4: memref<8x32xbf16, #tpu.memory_space<vmem>>, %arg5: memref<1x32xf32, #tpu.memory_space<vmem>>, %arg6: memref<1x32xf32, #tpu.memory_space<vmem>>, %arg7: memref<8x32xbf16, #tpu.memory_space<vmem>>) attributes {dimension_semantics = [#tpu.dimension_semantics<parallel>], iteration_bounds = array<i64: 2>, scalar_prefetch = 0 : i64, scratch_operands = 0 : i64, tpu.core_type = #tpu.core_type<tc>, window_params = [{transform_indices = @transform_0, window_bounds = array<i64: 8, 32>}, {pipeline_mode = #tpu.pipeline_mode<synchronous>, transform_indices = @transform_1, window_bounds = array<i64: 32, 32>}, {pipeline_mode = #tpu.pipeline_mode<synchronous>, transform_indices = @transform_2, window_bounds = array<i64: 1, 32>}, {transform_indices = @transform_3, window_bounds = array<i64: 8, 32>}, {pipeline_mode = #tpu.pipeline_mode<synchronous>, transform_indices = @transform_4, window_bounds = array<i64: 1, 32>}, {pipeline_mode = #tpu.pipeline_mode<synchronous>, transform_indices = @transform_5, window_bounds = array<i64: 1, 32>}, {transform_indices = @transform_6, window_bounds = array<i64: 8, 32>}]} {
    %c0 = arith.constant 0 : index
    %c0_0 = arith.constant 0 : index
    %0 = vector.load %arg1[%c0, %c0_0] : memref<8x32xbf16, #tpu.memory_space<vmem>>, vector<8x32xbf16>
    %c0_1 = arith.constant 0 : index
    %c0_2 = arith.constant 0 : index
    %1 = vector.load %arg2[%c0_1, %c0_2] : memref<32x32xbf16, #tpu.memory_space<vmem>>, vector<32x32xbf16>
    %cst = arith.constant dense<0.000000e+00> : vector<8x32xf32>
    %2 = tpu.matmul %0, %1, %cst {dimension_numbers = #tpu.dot_dimension_numbers<[1], [0], [0], [1], [0, 0, 1, 1], [], []>} : vector<8x32xbf16>, vector<32x32xbf16>, vector<8x32xf32> -> vector<8x32xf32>
    %c0_3 = arith.constant 0 : index
    %c0_4 = arith.constant 0 : index
    %3 = vector.load %arg3[%c0_3, %c0_4] : memref<1x32xf32, #tpu.memory_space<vmem>>, vector<1x32xf32>
    %4 = vector.broadcast %3 : vector<1x32xf32> to vector<8x32xf32>
    %5 = arith.addf %2, %4 : vector<8x32xf32>
    %c0_5 = arith.constant 0 : index
    %c0_6 = arith.constant 0 : index
    %6 = vector.load %arg4[%c0_5, %c0_6] : memref<8x32xbf16, #tpu.memory_space<vmem>>, vector<8x32xbf16>
    %7 = arith.extf %6 : vector<8x32xbf16> to vector<8x32xf32>
    %8 = arith.addf %5, %7 : vector<8x32xf32>
    %cst_7 = arith.constant dense<0.000000e+00> : vector<8xf32>
    %9 = vector.multi_reduction <add>, %8, %cst_7 [1] : vector<8x32xf32> to vector<8xf32>
    %10 = vector.shape_cast %9 : vector<8xf32> to vector<8x1xf32>
    %cst_8 = arith.constant 3.200000e+01 : f32
    %11 = vector.broadcast %cst_8 : f32 to vector<8x1xf32>
    %12 = arith.divf %10, %11 : vector<8x1xf32>
    %13 = vector.broadcast %12 : vector<8x1xf32> to vector<8x32xf32>
    %14 = arith.subf %8, %13 : vector<8x32xf32>
    %15 = arith.mulf %14, %14 : vector<8x32xf32>
    %cst_9 = arith.constant dense<0.000000e+00> : vector<8xf32>
    %16 = vector.multi_reduction <add>, %15, %cst_9 [1] : vector<8x32xf32> to vector<8xf32>
    %17 = vector.shape_cast %16 : vector<8xf32> to vector<8x1xf32>
    %cst_10 = arith.constant 3.200000e+01 : f32
    %18 = vector.broadcast %cst_10 : f32 to vector<8x1xf32>
    %19 = arith.divf %17, %18 : vector<8x1xf32>
    %20 = vector.broadcast %12 : vector<8x1xf32> to vector<8x32xf32>
    %21 = arith.subf %8, %20 : vector<8x32xf32>
    %cst_11 = arith.constant 9.99999974E-6 : f32
    %22 = vector.broadcast %cst_11 : f32 to vector<8x1xf32>
    %23 = arith.addf %19, %22 : vector<8x1xf32>
    %24 = math.rsqrt %23 : vector<8x1xf32>
    %25 = vector.broadcast %24 : vector<8x1xf32> to vector<8x32xf32>
    %26 = arith.mulf %21, %25 : vector<8x32xf32>
    %c0_12 = arith.constant 0 : index
    %c0_13 = arith.constant 0 : index
    %27 = vector.load %arg5[%c0_12, %c0_13] : memref<1x32xf32, #tpu.memory_space<vmem>>, vector<1x32xf32>
    %28 = vector.broadcast %27 : vector<1x32xf32> to vector<8x32xf32>
    %29 = arith.mulf %26, %28 : vector<8x32xf32>
    %c0_14 = arith.constant 0 : index
    %c0_15 = arith.constant 0 : index
    %30 = vector.load %arg6[%c0_14, %c0_15] : memref<1x32xf32, #tpu.memory_space<vmem>>, vector<1x32xf32>
    %31 = vector.broadcast %30 : vector<1x32xf32> to vector<8x32xf32>
    %32 = arith.addf %29, %31 : vector<8x32xf32>
    %33 = arith.truncf %32 : vector<8x32xf32> to vector<8x32xbf16>
    %c0_16 = arith.constant 0 : index
    %c0_17 = arith.constant 0 : index
    %34 = vector.load %arg7[%c0_16, %c0_17] : memref<8x32xbf16, #tpu.memory_space<vmem>>, vector<8x32xbf16>
    tpu.vector_store %arg7[%c0_16, %c0_17], %33 {strides = array<i32>} : memref<8x32xbf16, #tpu.memory_space<vmem>>, vector<8x32xbf16>,
    return
  }
  func.func @transform_0(%arg0: i32) -> (i32, i32) {
    %c0_i32 = arith.constant 0 : i32
    %c0_i32_0 = arith.constant 0 : i32
    return %arg0, %c0_i32 : i32, i32
  }
  func.func @transform_1(%arg0: i32) -> (i32, i32) {
    %c0_i32 = arith.constant 0 : i32
    %c0_i32_0 = arith.constant 0 : i32
    %c0_i32_1 = arith.constant 0 : i32
    return %c0_i32, %c0_i32_0 : i32, i32
  }
  func.func @transform_2(%arg0: i32) -> (i32, i32) {
    %c0_i32 = arith.constant 0 : i32
    %c0_i32_0 = arith.constant 0 : i32
    %c0_i32_1 = arith.constant 0 : i32
    return %c0_i32, %c0_i32_0 : i32, i32
  }
  func.func @transform_3(%arg0: i32) -> (i32, i32) {
    %c0_i32 = arith.constant 0 : i32
    %c0_i32_0 = arith.constant 0 : i32
    return %arg0, %c0_i32 : i32, i32
  }
  func.func @transform_4(%arg0: i32) -> (i32, i32) {
    %c0_i32 = arith.constant 0 : i32
    %c0_i32_0 = arith.constant 0 : i32
    %c0_i32_1 = arith.constant 0 : i32
    return %c0_i32, %c0_i32_0 : i32, i32
  }
  func.func @transform_5(%arg0: i32) -> (i32, i32) {
    %c0_i32 = arith.constant 0 : i32
    %c0_i32_0 = arith.constant 0 : i32
    %c0_i32_1 = arith.constant 0 : i32
    return %c0_i32, %c0_i32_0 : i32, i32
  }
  func.func @transform_6(%arg0: i32) -> (i32, i32) {
    %c0_i32 = arith.constant 0 : i32
    %c0_i32_0 = arith.constant 0 : i32
    return %arg0, %c0_i32 : i32, i32
  }
}

module attributes {stable_mosaic.version = 11 : i64} {
  func.func @_attn_kernel(%arg0: i32, %arg1: memref<1x8x32xbf16, #tpu.memory_space<vmem>>, %arg2: memref<1x8x32xbf16, #tpu.memory_space<vmem>>, %arg3: memref<32x32xbf16, #tpu.memory_space<vmem>>, %arg4: memref<32x32xbf16, #tpu.memory_space<vmem>>, %arg5: memref<32x32xbf16, #tpu.memory_space<vmem>>, %arg6: memref<1x1x8xf32, #tpu.memory_space<vmem>>, %arg7: memref<1x8x32xbf16, #tpu.memory_space<vmem>>) attributes {dimension_semantics = [#tpu.dimension_semantics<parallel>], iteration_bounds = array<i64: 2>, scalar_prefetch = 0 : i64, scratch_operands = 0 : i64, tpu.core_type = #tpu.core_type<tc>, window_params = [{transform_indices = @transform_0, window_bounds = array<i64: 1, 8, 32>}, {transform_indices = @transform_1, window_bounds = array<i64: 1, 8, 32>}, {pipeline_mode = #tpu.pipeline_mode<synchronous>, transform_indices = @transform_2, window_bounds = array<i64: 32, 32>}, {pipeline_mode = #tpu.pipeline_mode<synchronous>, transform_indices = @transform_3, window_bounds = array<i64: 32, 32>}, {pipeline_mode = #tpu.pipeline_mode<synchronous>, transform_indices = @transform_4, window_bounds = array<i64: 32, 32>}, {transform_indices = @transform_5, window_bounds = array<i64: 1, 1, 8>}, {transform_indices = @transform_6, window_bounds = array<i64: 1, 8, 32>}]} {
    %c0 = arith.constant 0 : index
    %c0_0 = arith.constant 0 : index
    %c0_1 = arith.constant 0 : index
    %0 = vector.load %arg1[%c0, %c0_0, %c0_1] : memref<1x8x32xbf16, #tpu.memory_space<vmem>>, vector<1x8x32xbf16>
    %1 = vector.shape_cast %0 : vector<1x8x32xbf16> to vector<8x32xbf16>
    %c0_2 = arith.constant 0 : index
    %c0_3 = arith.constant 0 : index
    %c0_4 = arith.constant 0 : index
    %2 = vector.load %arg2[%c0_2, %c0_3, %c0_4] : memref<1x8x32xbf16, #tpu.memory_space<vmem>>, vector<1x8x32xbf16>
    %3 = vector.shape_cast %2 : vector<1x8x32xbf16> to vector<8x32xbf16>
    %c0_5 = arith.constant 0 : index
    %c0_6 = arith.constant 0 : index
    %4 = vector.load %arg3[%c0_5, %c0_6] : memref<32x32xbf16, #tpu.memory_space<vmem>>, vector<32x32xbf16>
    %cst = arith.constant dense<0.000000e+00> : vector<8x32xf32>
    %5 = tpu.matmul %1, %4, %cst {dimension_numbers = #tpu.dot_dimension_numbers<[1], [0], [0], [1], [0, 0, 1, 1], [], []>} : vector<8x32xbf16>, vector<32x32xbf16>, vector<8x32xf32> -> vector<8x32xf32>
    %6 = arith.truncf %5 : vector<8x32xf32> to vector<8x32xbf16>
    %c0_7 = arith.constant 0 : index
    %c0_8 = arith.constant 0 : index
    %7 = vector.load %arg4[%c0_7, %c0_8] : memref<32x32xbf16, #tpu.memory_space<vmem>>, vector<32x32xbf16>
    %cst_9 = arith.constant dense<0.000000e+00> : vector<8x32xf32>
    %8 = tpu.matmul %3, %7, %cst_9 {dimension_numbers = #tpu.dot_dimension_numbers<[1], [0], [0], [1], [0, 0, 1, 1], [], []>} : vector<8x32xbf16>, vector<32x32xbf16>, vector<8x32xf32> -> vector<8x32xf32>
    %9 = arith.truncf %8 : vector<8x32xf32> to vector<8x32xbf16>
    %c0_10 = arith.constant 0 : index
    %c0_11 = arith.constant 0 : index
    %10 = vector.load %arg5[%c0_10, %c0_11] : memref<32x32xbf16, #tpu.memory_space<vmem>>, vector<32x32xbf16>
    %cst_12 = arith.constant dense<0.000000e+00> : vector<8x32xf32>
    %11 = tpu.matmul %3, %10, %cst_12 {dimension_numbers = #tpu.dot_dimension_numbers<[1], [0], [0], [1], [0, 0, 1, 1], [], []>} : vector<8x32xbf16>, vector<32x32xbf16>, vector<8x32xf32> -> vector<8x32xf32>
    %12 = arith.truncf %11 : vector<8x32xf32> to vector<8x32xbf16>
    %c0_13 = arith.constant 0 : index
    %c0_14 = arith.constant 0 : index
    %c0_15 = arith.constant 0 : index
    %13 = vector.load %arg6[%c0_13, %c0_14, %c0_15] : memref<1x1x8xf32, #tpu.memory_space<vmem>>, vector<1x1x8xf32>
    %14 = vector.shape_cast %13 : vector<1x1x8xf32> to vector<1x8xf32>
    %15 = vector.extract_strided_slice %6 {offsets = [0, 0], sizes = [8, 16], strides = [1, 1]} : vector<8x32xbf16> to vector<8x16xbf16>
    %16 = vector.extract_strided_slice %9 {offsets = [0, 0], sizes = [8, 16], strides = [1, 1]} : vector<8x32xbf16> to vector<8x16xbf16>
    %17 = vector.extract_strided_slice %12 {offsets = [0, 0], sizes = [8, 16], strides = [1, 1]} : vector<8x32xbf16> to vector<8x16xbf16>
    %cst_16 = arith.constant dense<0.000000e+00> : vector<8x8xf32>
    %18 = tpu.matmul %15, %16, %cst_16 {dimension_numbers = #tpu.dot_dimension_numbers<[1], [1], [0], [0], [0, 0, 1, 0], [], []>} : vector<8x16xbf16>, vector<8x16xbf16>, vector<8x8xf32> -> vector<8x8xf32>
    %19 = vector.broadcast %14 : vector<1x8xf32> to vector<8x8xf32>
    %20 = arith.addf %18, %19 : vector<8x8xf32>
    %cst_17 = arith.constant dense<0xFF800000> : vector<8xf32>
    %21 = vector.multi_reduction <maximumf>, %20, %cst_17 [1] : vector<8x8xf32> to vector<8xf32>
    %22 = vector.shape_cast %21 : vector<8xf32> to vector<8x1xf32>
    %23 = vector.broadcast %22 : vector<8x1xf32> to vector<8x8xf32>
    %24 = arith.subf %20, %23 : vector<8x8xf32>
    %25 = math.exp %24 : vector<8x8xf32>
    %cst_18 = arith.constant dense<0.000000e+00> : vector<8xf32>
    %26 = vector.multi_reduction <add>, %25, %cst_18 [1] : vector<8x8xf32> to vector<8xf32>
    %27 = vector.shape_cast %26 : vector<8xf32> to vector<8x1xf32>
    %28 = tpu.reciprocal %27 {approx = true} : vector<8x1xf32> -> vector<8x1xf32>
    %29 = vector.broadcast %28 : vector<8x1xf32> to vector<8x8xf32>
    %30 = arith.mulf %25, %29 : vector<8x8xf32>
    %31 = arith.truncf %30 : vector<8x8xf32> to vector<8x8xbf16>
    %cst_19 = arith.constant dense<0.000000e+00> : vector<8x16xf32>
    %32 = tpu.matmul %31, %17, %cst_19 {dimension_numbers = #tpu.dot_dimension_numbers<[1], [0], [0], [1], [0, 0, 1, 1], [], []>} : vector<8x8xbf16>, vector<8x16xbf16>, vector<8x16xf32> -> vector<8x16xf32>
    %33 = arith.truncf %32 : vector<8x16xf32> to vector<8x16xbf16>
    %c0_20 = arith.constant 0 : index
    %c0_21 = arith.constant 0 : index
    %c0_22 = arith.constant 0 : index
    %34 = vector.load %arg7[%c0_20, %c0_21, %c0_22] : memref<1x8x32xbf16, #tpu.memory_space<vmem>>, vector<1x8x16xbf16>
    %35 = vector.shape_cast %34 : vector<1x8x16xbf16> to vector<8x16xbf16>
    %36 = vector.shape_cast %33 : vector<8x16xbf16> to vector<1x8x16xbf16>
    tpu.vector_store %arg7[%c0_20, %c0_21, %c0_22], %36 {strides = array<i32>} : memref<1x8x32xbf16, #tpu.memory_space<vmem>>, vector<1x8x16xbf16>,
    %37 = vector.extract_strided_slice %6 {offsets = [0, 16], sizes = [8, 16], strides = [1, 1]} : vector<8x32xbf16> to vector<8x16xbf16>
    %38 = vector.extract_strided_slice %9 {offsets = [0, 16], sizes = [8, 16], strides = [1, 1]} : vector<8x32xbf16> to vector<8x16xbf16>
    %39 = vector.extract_strided_slice %12 {offsets = [0, 16], sizes = [8, 16], strides = [1, 1]} : vector<8x32xbf16> to vector<8x16xbf16>
    %cst_23 = arith.constant dense<0.000000e+00> : vector<8x8xf32>
    %40 = tpu.matmul %37, %38, %cst_23 {dimension_numbers = #tpu.dot_dimension_numbers<[1], [1], [0], [0], [0, 0, 1, 0], [], []>} : vector<8x16xbf16>, vector<8x16xbf16>, vector<8x8xf32> -> vector<8x8xf32>
    %41 = vector.broadcast %14 : vector<1x8xf32> to vector<8x8xf32>
    %42 = arith.addf %40, %41 : vector<8x8xf32>
    %cst_24 = arith.constant dense<0xFF800000> : vector<8xf32>
    %43 = vector.multi_reduction <maximumf>, %42, %cst_24 [1] : vector<8x8xf32> to vector<8xf32>
    %44 = vector.shape_cast %43 : vector<8xf32> to vector<8x1xf32>
    %45 = vector.broadcast %44 : vector<8x1xf32> to vector<8x8xf32>
    %46 = arith.subf %42, %45 : vector<8x8xf32>
    %47 = math.exp %46 : vector<8x8xf32>
    %cst_25 = arith.constant dense<0.000000e+00> : vector<8xf32>
    %48 = vector.multi_reduction <add>, %47, %cst_25 [1] : vector<8x8xf32> to vector<8xf32>
    %49 = vector.shape_cast %48 : vector<8xf32> to vector<8x1xf32>
    %50 = tpu.reciprocal %49 {approx = true} : vector<8x1xf32> -> vector<8x1xf32>
    %51 = vector.broadcast %50 : vector<8x1xf32> to vector<8x8xf32>
    %52 = arith.mulf %47, %51 : vector<8x8xf32>
    %53 = arith.truncf %52 : vector<8x8xf32> to vector<8x8xbf16>
    %cst_26 = arith.constant dense<0.000000e+00> : vector<8x16xf32>
    %54 = tpu.matmul %53, %39, %cst_26 {dimension_numbers = #tpu.dot_dimension_numbers<[1], [0], [0], [1], [0, 0, 1, 1], [], []>} : vector<8x8xbf16>, vector<8x16xbf16>, vector<8x16xf32> -> vector<8x16xf32>
    %55 = arith.truncf %54 : vector<8x16xf32> to vector<8x16xbf16>
    %c0_27 = arith.constant 0 : index
    %c0_28 = arith.constant 0 : index
    %c16 = arith.constant 16 : index
    %56 = vector.load %arg7[%c0_27, %c0_28, %c16] : memref<1x8x32xbf16, #tpu.memory_space<vmem>>, vector<1x8x16xbf16>
    %57 = vector.shape_cast %56 : vector<1x8x16xbf16> to vector<8x16xbf16>
    %58 = vector.shape_cast %55 : vector<8x16xbf16> to vector<1x8x16xbf16>
    tpu.vector_store %arg7[%c0_27, %c0_28, %c16], %58 {strides = array<i32>} : memref<1x8x32xbf16, #tpu.memory_space<vmem>>, vector<1x8x16xbf16>,
    return
  }
  func.func @transform_0(%arg0: i32) -> (i32, i32, i32) {
    %c0_i32 = arith.constant 0 : i32
    %c0_i32_0 = arith.constant 0 : i32
    %c0_i32_1 = arith.constant 0 : i32
    return %arg0, %c0_i32, %c0_i32_0 : i32, i32, i32
  }
  func.func @transform_1(%arg0: i32) -> (i32, i32, i32) {
    %c0_i32 = arith.constant 0 : i32
    %c0_i32_0 = arith.constant 0 : i32
    %c0_i32_1 = arith.constant 0 : i32
    return %arg0, %c0_i32, %c0_i32_0 : i32, i32, i32
  }
  func.func @transform_2(%arg0: i32) -> (i32, i32) {
    %c0_i32 = arith.constant 0 : i32
    %c0_i32_0 = arith.constant 0 : i32
    %c0_i32_1 = arith.constant 0 : i32
    return %c0_i32, %c0_i32_0 : i32, i32
  }
  func.func @transform_3(%arg0: i32) -> (i32, i32) {
    %c0_i32 = arith.constant 0 : i32
    %c0_i32_0 = arith.constant 0 : i32
    %c0_i32_1 = arith.constant 0 : i32
    return %c0_i32, %c0_i32_0 : i32, i32
  }
  func.func @transform_4(%arg0: i32) -> (i32, i32) {
    %c0_i32 = arith.constant 0 : i32
    %c0_i32_0 = arith.constant 0 : i32
    %c0_i32_1 = arith.constant 0 : i32
    return %c0_i32, %c0_i32_0 : i32, i32
  }
  func.func @transform_5(%arg0: i32) -> (i32, i32, i32) {
    %c0_i32 = arith.constant 0 : i32
    %c0_i32_0 = arith.constant 0 : i32
    %c0_i32_1 = arith.constant 0 : i32
    return %arg0, %c0_i32, %c0_i32_0 : i32, i32, i32
  }
  func.func @transform_6(%arg0: i32) -> (i32, i32, i32) {
    %c0_i32 = arith.constant 0 : i32
    %c0_i32_0 = arith.constant 0 : i32
    %c0_i32_1 = arith.constant 0 : i32
    return %arg0, %c0_i32, %c0_i32_0 : i32, i32, i32
  }
}

module attributes {stable_mosaic.version = 11 : i64} {
  func.func @_ffn_add_ln_kernel(%arg0: i32, %arg1: i32, %arg2: memref<8x32xbf16, #tpu.memory_space<vmem>>, %arg3: memref<32x64xbf16, #tpu.memory_space<vmem>>, %arg4: memref<1x64xf32, #tpu.memory_space<vmem>>, %arg5: memref<64x32xbf16, #tpu.memory_space<vmem>>, %arg6: memref<1x32xf32, #tpu.memory_space<vmem>>, %arg7: memref<1x32xf32, #tpu.memory_space<vmem>>, %arg8: memref<1x32xf32, #tpu.memory_space<vmem>>, %arg9: memref<8x32xbf16, #tpu.memory_space<vmem>>, %arg10: memref<8x32xf32, #tpu.memory_space<vmem>>) attributes {dimension_semantics = [#tpu.dimension_semantics<parallel>, #tpu.dimension_semantics<arbitrary>], iteration_bounds = array<i64: 2, 1>, scalar_prefetch = 0 : i64, scratch_operands = 1 : i64, tpu.core_type = #tpu.core_type<tc>, window_params = [{transform_indices = @transform_0, window_bounds = array<i64: 8, 32>}, {transform_indices = @transform_1, window_bounds = array<i64: 32, 64>}, {transform_indices = @transform_2, window_bounds = array<i64: 1, 64>}, {transform_indices = @transform_3, window_bounds = array<i64: 64, 32>}, {pipeline_mode = #tpu.pipeline_mode<synchronous>, transform_indices = @transform_4, window_bounds = array<i64: 1, 32>}, {pipeline_mode = #tpu.pipeline_mode<synchronous>, transform_indices = @transform_5, window_bounds = array<i64: 1, 32>}, {pipeline_mode = #tpu.pipeline_mode<synchronous>, transform_indices = @transform_6, window_bounds = array<i64: 1, 32>}, {transform_indices = @transform_7, window_bounds = array<i64: 8, 32>}]} {
    %c0_i32 = arith.constant 0 : i32
    %0 = arith.cmpi eq, %arg1, %c0_i32 : i32
    %1 = arith.extui %0 : i1 to i32
    %c0_i32_0 = arith.constant 0 : i32
    %2 = arith.cmpi ne, %1, %c0_i32_0 : i32
    scf.if %2 {
      %cst_16 = arith.constant 0.000000e+00 : f32
      %20 = vector.broadcast %cst_16 : f32 to vector<8x32xf32>
      %c0_17 = arith.constant 0 : index
      %c0_18 = arith.constant 0 : index
      %21 = vector.load %arg10[%c0_17, %c0_18] : memref<8x32xf32, #tpu.memory_space<vmem>>, vector<8x32xf32>
      tpu.vector_store %arg10[%c0_17, %c0_18], %20 {strides = array<i32>} : memref<8x32xf32, #tpu.memory_space<vmem>>, vector<8x32xf32>,
    } else {
    }
    %c0 = arith.constant 0 : index
    %c0_1 = arith.constant 0 : index
    %3 = vector.load %arg2[%c0, %c0_1] : memref<8x32xbf16, #tpu.memory_space<vmem>>, vector<8x32xbf16>
    %c0_2 = arith.constant 0 : index
    %c0_3 = arith.constant 0 : index
    %4 = vector.load %arg3[%c0_2, %c0_3] : memref<32x64xbf16, #tpu.memory_space<vmem>>, vector<32x64xbf16>
    %cst = arith.constant dense<0.000000e+00> : vector<8x64xf32>
    %5 = tpu.matmul %3, %4, %cst {dimension_numbers = #tpu.dot_dimension_numbers<[1], [0], [0], [1], [0, 0, 1, 1], [], []>} : vector<8x32xbf16>, vector<32x64xbf16>, vector<8x64xf32> -> vector<8x64xf32>
    %c0_4 = arith.constant 0 : index
    %c0_5 = arith.constant 0 : index
    %6 = vector.load %arg4[%c0_4, %c0_5] : memref<1x64xf32, #tpu.memory_space<vmem>>, vector<1x64xf32>
    %7 = vector.broadcast %6 : vector<1x64xf32> to vector<8x64xf32>
    %8 = arith.addf %5, %7 : vector<8x64xf32>
    %cst_6 = arith.constant 0.000000e+00 : f32
    %9 = vector.broadcast %cst_6 : f32 to vector<8x64xf32>
    %10 = arith.maximumf %8, %9 : vector<8x64xf32>
    %c0_7 = arith.constant 0 : index
    %c0_8 = arith.constant 0 : index
    %11 = vector.load %arg10[%c0_7, %c0_8] : memref<8x32xf32, #tpu.memory_space<vmem>>, vector<8x32xf32>
    %12 = arith.truncf %10 : vector<8x64xf32> to vector<8x64xbf16>
    %c0_9 = arith.constant 0 : index
    %c0_10 = arith.constant 0 : index
    %13 = vector.load %arg5[%c0_9, %c0_10] : memref<64x32xbf16, #tpu.memory_space<vmem>>, vector<64x32xbf16>
    %cst_11 = arith.constant dense<0.000000e+00> : vector<8x32xf32>
    %14 = tpu.matmul %12, %13, %cst_11 {dimension_numbers = #tpu.dot_dimension_numbers<[1], [0], [0], [1], [0, 0, 1, 1], [], []>} : vector<8x64xbf16>, vector<64x32xbf16>, vector<8x32xf32> -> vector<8x32xf32>
    %15 = arith.addf %11, %14 : vector<8x32xf32>
    %c0_12 = arith.constant 0 : index
    %c0_13 = arith.constant 0 : index
    %16 = vector.load %arg10[%c0_12, %c0_13] : memref<8x32xf32, #tpu.memory_space<vmem>>, vector<8x32xf32>
    tpu.vector_store %arg10[%c0_12, %c0_13], %15 {strides = array<i32>} : memref<8x32xf32, #tpu.memory_space<vmem>>, vector<8x32xf32>,
    %c0_i32_14 = arith.constant 0 : i32
    %17 = arith.cmpi eq, %arg1, %c0_i32_14 : i32
    %18 = arith.extui %17 : i1 to i32
    %c0_i32_15 = arith.constant 0 : i32
    %19 = arith.cmpi ne, %18, %c0_i32_15 : i32
    scf.if %19 {
      %c0_16 = arith.constant 0 : index
      %c0_17 = arith.constant 0 : index
      %20 = vector.load %arg10[%c0_16, %c0_17] : memref<8x32xf32, #tpu.memory_space<vmem>>, vector<8x32xf32>
      %c0_18 = arith.constant 0 : index
      %c0_19 = arith.constant 0 : index
      %21 = vector.load %arg6[%c0_18, %c0_19] : memref<1x32xf32, #tpu.memory_space<vmem>>, vector<1x32xf32>
      %22 = vector.broadcast %21 : vector<1x32xf32> to vector<8x32xf32>
      %23 = arith.addf %20, %22 : vector<8x32xf32>
      %c0_20 = arith.constant 0 : index
      %c0_21 = arith.constant 0 : index
      %24 = vector.load %arg2[%c0_20, %c0_21] : memref<8x32xbf16, #tpu.memory_space<vmem>>, vector<8x32xbf16>
      %25 = arith.extf %24 : vector<8x32xbf16> to vector<8x32xf32>
      %26 = arith.addf %23, %25 : vector<8x32xf32>
      %cst_22 = arith.constant dense<0.000000e+00> : vector<8xf32>
      %27 = vector.multi_reduction <add>, %26, %cst_22 [1] : vector<8x32xf32> to vector<8xf32>
      %28 = vector.shape_cast %27 : vector<8xf32> to vector<8x1xf32>
      %cst_23 = arith.constant 3.200000e+01 : f32
      %29 = vector.broadcast %cst_23 : f32 to vector<8x1xf32>
      %30 = arith.divf %28, %29 : vector<8x1xf32>
      %31 = vector.broadcast %30 : vector<8x1xf32> to vector<8x32xf32>
      %32 = arith.subf %26, %31 : vector<8x32xf32>
      %33 = arith.mulf %32, %32 : vector<8x32xf32>
      %cst_24 = arith.constant dense<0.000000e+00> : vector<8xf32>
      %34 = vector.multi_reduction <add>, %33, %cst_24 [1] : vector<8x32xf32> to vector<8xf32>
      %35 = vector.shape_cast %34 : vector<8xf32> to vector<8x1xf32>
      %cst_25 = arith.constant 3.200000e+01 : f32
      %36 = vector.broadcast %cst_25 : f32 to vector<8x1xf32>
      %37 = arith.divf %35, %36 : vector<8x1xf32>
      %38 = vector.broadcast %30 : vector<8x1xf32> to vector<8x32xf32>
      %39 = arith.subf %26, %38 : vector<8x32xf32>
      %cst_26 = arith.constant 9.99999974E-6 : f32
      %40 = vector.broadcast %cst_26 : f32 to vector<8x1xf32>
      %41 = arith.addf %37, %40 : vector<8x1xf32>
      %42 = math.rsqrt %41 : vector<8x1xf32>
      %43 = vector.broadcast %42 : vector<8x1xf32> to vector<8x32xf32>
      %44 = arith.mulf %39, %43 : vector<8x32xf32>
      %c0_27 = arith.constant 0 : index
      %c0_28 = arith.constant 0 : index
      %45 = vector.load %arg7[%c0_27, %c0_28] : memref<1x32xf32, #tpu.memory_space<vmem>>, vector<1x32xf32>
      %46 = vector.broadcast %45 : vector<1x32xf32> to vector<8x32xf32>
      %47 = arith.mulf %44, %46 : vector<8x32xf32>
      %c0_29 = arith.constant 0 : index
      %c0_30 = arith.constant 0 : index
      %48 = vector.load %arg8[%c0_29, %c0_30] : memref<1x32xf32, #tpu.memory_space<vmem>>, vector<1x32xf32>
      %49 = vector.broadcast %48 : vector<1x32xf32> to vector<8x32xf32>
      %50 = arith.addf %47, %49 : vector<8x32xf32>
      %51 = arith.truncf %50 : vector<8x32xf32> to vector<8x32xbf16>
      %c0_31 = arith.constant 0 : index
      %c0_32 = arith.constant 0 : index
      %52 = vector.load %arg9[%c0_31, %c0_32] : memref<8x32xbf16, #tpu.memory_space<vmem>>, vector<8x32xbf16>
      tpu.vector_store %arg9[%c0_31, %c0_32], %51 {strides = array<i32>} : memref<8x32xbf16, #tpu.memory_space<vmem>>, vector<8x32xbf16>,
    } else {
    }
    return
  }
  func.func @transform_0(%arg0: i32, %arg1: i32) -> (i32, i32) {
    %c0_i32 = arith.constant 0 : i32
    %c0_i32_0 = arith.constant 0 : i32
    return %arg0, %c0_i32 : i32, i32
  }
  func.func @transform_1(%arg0: i32, %arg1: i32) -> (i32, i32) {
    %c0_i32 = arith.constant 0 : i32
    %c0_i32_0 = arith.constant 0 : i32
    return %c0_i32, %arg1 : i32, i32
  }
  func.func @transform_2(%arg0: i32, %arg1: i32) -> (i32, i32) {
    %c0_i32 = arith.constant 0 : i32
    %c0_i32_0 = arith.constant 0 : i32
    return %c0_i32, %arg1 : i32, i32
  }
  func.func @transform_3(%arg0: i32, %arg1: i32) -> (i32, i32) {
    %c0_i32 = arith.constant 0 : i32
    %c0_i32_0 = arith.constant 0 : i32
    return %arg1, %c0_i32 : i32, i32
  }
  func.func @transform_4(%arg0: i32, %arg1: i32) -> (i32, i32) {
    %c0_i32 = arith.constant 0 : i32
    %c0_i32_0 = arith.constant 0 : i32
    %c0_i32_1 = arith.constant 0 : i32
    return %c0_i32, %c0_i32_0 : i32, i32
  }
  func.func @transform_5(%arg0: i32, %arg1: i32) -> (i32, i32) {
    %c0_i32 = arith.constant 0 : i32
    %c0_i32_0 = arith.constant 0 : i32
    %c0_i32_1 = arith.constant 0 : i32
    return %c0_i32, %c0_i32_0 : i32, i32
  }
  func.func @transform_6(%arg0: i32, %arg1: i32) -> (i32, i32) {
    %c0_i32 = arith.constant 0 : i32
    %c0_i32_0 = arith.constant 0 : i32
    %c0_i32_1 = arith.constant 0 : i32
    return %c0_i32, %c0_i32_0 : i32, i32
  }
  func.func @transform_7(%arg0: i32, %arg1: i32) -> (i32, i32) {
    %c0_i32 = arith.constant 0 : i32
    %c0_i32_0 = arith.constant 0 : i32
    return %arg0, %c0_i32 : i32, i32
  }
}

module attributes {stable_mosaic.version = 11 : i64} {
  func.func @_attn_kernel(%arg0: i32, %arg1: memref<1x8x32xbf16, #tpu.memory_space<vmem>>, %arg2: memref<1x8x32xbf16, #tpu.memory_space<vmem>>, %arg3: memref<32x32xbf16, #tpu.memory_space<vmem>>, %arg4: memref<32x32xbf16, #tpu.memory_space<vmem>>, %arg5: memref<32x32xbf16, #tpu.memory_space<vmem>>, %arg6: memref<1x1x8xf32, #tpu.memory_space<vmem>>, %arg7: memref<1x8x32xbf16, #tpu.memory_space<vmem>>) attributes {dimension_semantics = [#tpu.dimension_semantics<parallel>], iteration_bounds = array<i64: 2>, scalar_prefetch = 0 : i64, scratch_operands = 0 : i64, tpu.core_type = #tpu.core_type<tc>, window_params = [{transform_indices = @transform_0, window_bounds = array<i64: 1, 8, 32>}, {transform_indices = @transform_1, window_bounds = array<i64: 1, 8, 32>}, {pipeline_mode = #tpu.pipeline_mode<synchronous>, transform_indices = @transform_2, window_bounds = array<i64: 32, 32>}, {pipeline_mode = #tpu.pipeline_mode<synchronous>, transform_indices = @transform_3, window_bounds = array<i64: 32, 32>}, {pipeline_mode = #tpu.pipeline_mode<synchronous>, transform_indices = @transform_4, window_bounds = array<i64: 32, 32>}, {transform_indices = @transform_5, window_bounds = array<i64: 1, 1, 8>}, {transform_indices = @transform_6, window_bounds = array<i64: 1, 8, 32>}]} {
    %c0 = arith.constant 0 : index
    %c0_0 = arith.constant 0 : index
    %c0_1 = arith.constant 0 : index
    %0 = vector.load %arg1[%c0, %c0_0, %c0_1] : memref<1x8x32xbf16, #tpu.memory_space<vmem>>, vector<1x8x32xbf16>
    %1 = vector.shape_cast %0 : vector<1x8x32xbf16> to vector<8x32xbf16>
    %c0_2 = arith.constant 0 : index
    %c0_3 = arith.constant 0 : index
    %c0_4 = arith.constant 0 : index
    %2 = vector.load %arg2[%c0_2, %c0_3, %c0_4] : memref<1x8x32xbf16, #tpu.memory_space<vmem>>, vector<1x8x32xbf16>
    %3 = vector.shape_cast %2 : vector<1x8x32xbf16> to vector<8x32xbf16>
    %c0_5 = arith.constant 0 : index
    %c0_6 = arith.constant 0 : index
    %4 = vector.load %arg3[%c0_5, %c0_6] : memref<32x32xbf16, #tpu.memory_space<vmem>>, vector<32x32xbf16>
    %cst = arith.constant dense<0.000000e+00> : vector<8x32xf32>
    %5 = tpu.matmul %1, %4, %cst {dimension_numbers = #tpu.dot_dimension_numbers<[1], [0], [0], [1], [0, 0, 1, 1], [], []>} : vector<8x32xbf16>, vector<32x32xbf16>, vector<8x32xf32> -> vector<8x32xf32>
    %6 = arith.truncf %5 : vector<8x32xf32> to vector<8x32xbf16>
    %c0_7 = arith.constant 0 : index
    %c0_8 = arith.constant 0 : index
    %7 = vector.load %arg4[%c0_7, %c0_8] : memref<32x32xbf16, #tpu.memory_space<vmem>>, vector<32x32xbf16>
    %cst_9 = arith.constant dense<0.000000e+00> : vector<8x32xf32>
    %8 = tpu.matmul %3, %7, %cst_9 {dimension_numbers = #tpu.dot_dimension_numbers<[1], [0], [0], [1], [0, 0, 1, 1], [], []>} : vector<8x32xbf16>, vector<32x32xbf16>, vector<8x32xf32> -> vector<8x32xf32>
    %9 = arith.truncf %8 : vector<8x32xf32> to vector<8x32xbf16>
    %c0_10 = arith.constant 0 : index
    %c0_11 = arith.constant 0 : index
    %10 = vector.load %arg5[%c0_10, %c0_11] : memref<32x32xbf16, #tpu.memory_space<vmem>>, vector<32x32xbf16>
    %cst_12 = arith.constant dense<0.000000e+00> : vector<8x32xf32>
    %11 = tpu.matmul %3, %10, %cst_12 {dimension_numbers = #tpu.dot_dimension_numbers<[1], [0], [0], [1], [0, 0, 1, 1], [], []>} : vector<8x32xbf16>, vector<32x32xbf16>, vector<8x32xf32> -> vector<8x32xf32>
    %12 = arith.truncf %11 : vector<8x32xf32> to vector<8x32xbf16>
    %c0_13 = arith.constant 0 : index
    %c0_14 = arith.constant 0 : index
    %c0_15 = arith.constant 0 : index
    %13 = vector.load %arg6[%c0_13, %c0_14, %c0_15] : memref<1x1x8xf32, #tpu.memory_space<vmem>>, vector<1x1x8xf32>
    %14 = vector.shape_cast %13 : vector<1x1x8xf32> to vector<1x8xf32>
    %15 = tpu.iota {dimensions = array<i32: 0>} : vector<8x8xi32>
    %16 = tpu.iota {dimensions = array<i32: 1>} : vector<8x8xi32>
    %17 = arith.cmpi sle, %16, %15 : vector<8x8xi32>
    %cst_16 = arith.constant 0.000000e+00 : f32
    %cst_17 = arith.constant -1.000000e+30 : f32
    %18 = vector.broadcast %cst_16 : f32 to vector<8x8xf32>
    %19 = vector.broadcast %cst_17 : f32 to vector<8x8xf32>
    %20 = arith.select %17, %18, %19 : vector<8x8xi1>, vector<8x8xf32>
    %21 = vector.broadcast %14 : vector<1x8xf32> to vector<8x8xf32>
    %22 = arith.addf %21, %20 : vector<8x8xf32>
    %23 = vector.extract_strided_slice %6 {offsets = [0, 0], sizes = [8, 16], strides = [1, 1]} : vector<8x32xbf16> to vector<8x16xbf16>
    %24 = vector.extract_strided_slice %9 {offsets = [0, 0], sizes = [8, 16], strides = [1, 1]} : vector<8x32xbf16> to vector<8x16xbf16>
    %25 = vector.extract_strided_slice %12 {offsets = [0, 0], sizes = [8, 16], strides = [1, 1]} : vector<8x32xbf16> to vector<8x16xbf16>
    %cst_18 = arith.constant dense<0.000000e+00> : vector<8x8xf32>
    %26 = tpu.matmul %23, %24, %cst_18 {dimension_numbers = #tpu.dot_dimension_numbers<[1], [1], [0], [0], [0, 0, 1, 0], [], []>} : vector<8x16xbf16>, vector<8x16xbf16>, vector<8x8xf32> -> vector<8x8xf32>
    %27 = arith.addf %26, %22 : vector<8x8xf32>
    %cst_19 = arith.constant dense<0xFF800000> : vector<8xf32>
    %28 = vector.multi_reduction <maximumf>, %27, %cst_19 [1] : vector<8x8xf32> to vector<8xf32>
    %29 = vector.shape_cast %28 : vector<8xf32> to vector<8x1xf32>
    %30 = vector.broadcast %29 : vector<8x1xf32> to vector<8x8xf32>
    %31 = arith.subf %27, %30 : vector<8x8xf32>
    %32 = math.exp %31 : vector<8x8xf32>
    %cst_20 = arith.constant dense<0.000000e+00> : vector<8xf32>
    %33 = vector.multi_reduction <add>, %32, %cst_20 [1] : vector<8x8xf32> to vector<8xf32>
    %34 = vector.shape_cast %33 : vector<8xf32> to vector<8x1xf32>
    %35 = tpu.reciprocal %34 {approx = true} : vector<8x1xf32> -> vector<8x1xf32>
    %36 = vector.broadcast %35 : vector<8x1xf32> to vector<8x8xf32>
    %37 = arith.mulf %32, %36 : vector<8x8xf32>
    %38 = arith.truncf %37 : vector<8x8xf32> to vector<8x8xbf16>
    %cst_21 = arith.constant dense<0.000000e+00> : vector<8x16xf32>
    %39 = tpu.matmul %38, %25, %cst_21 {dimension_numbers = #tpu.dot_dimension_numbers<[1], [0], [0], [1], [0, 0, 1, 1], [], []>} : vector<8x8xbf16>, vector<8x16xbf16>, vector<8x16xf32> -> vector<8x16xf32>
    %40 = arith.truncf %39 : vector<8x16xf32> to vector<8x16xbf16>
    %c0_22 = arith.constant 0 : index
    %c0_23 = arith.constant 0 : index
    %c0_24 = arith.constant 0 : index
    %41 = vector.load %arg7[%c0_22, %c0_23, %c0_24] : memref<1x8x32xbf16, #tpu.memory_space<vmem>>, vector<1x8x16xbf16>
    %42 = vector.shape_cast %41 : vector<1x8x16xbf16> to vector<8x16xbf16>
    %43 = vector.shape_cast %40 : vector<8x16xbf16> to vector<1x8x16xbf16>
    tpu.vector_store %arg7[%c0_22, %c0_23, %c0_24], %43 {strides = array<i32>} : memref<1x8x32xbf16, #tpu.memory_space<vmem>>, vector<1x8x16xbf16>,
    %44 = vector.extract_strided_slice %6 {offsets = [0, 16], sizes = [8, 16], strides = [1, 1]} : vector<8x32xbf16> to vector<8x16xbf16>
    %45 = vector.extract_strided_slice %9 {offsets = [0, 16], sizes = [8, 16], strides = [1, 1]} : vector<8x32xbf16> to vector<8x16xbf16>
    %46 = vector.extract_strided_slice %12 {offsets = [0, 16], sizes = [8, 16], strides = [1, 1]} : vector<8x32xbf16> to vector<8x16xbf16>
    %cst_25 = arith.constant dense<0.000000e+00> : vector<8x8xf32>
    %47 = tpu.matmul %44, %45, %cst_25 {dimension_numbers = #tpu.dot_dimension_numbers<[1], [1], [0], [0], [0, 0, 1, 0], [], []>} : vector<8x16xbf16>, vector<8x16xbf16>, vector<8x8xf32> -> vector<8x8xf32>
    %48 = arith.addf %47, %22 : vector<8x8xf32>
    %cst_26 = arith.constant dense<0xFF800000> : vector<8xf32>
    %49 = vector.multi_reduction <maximumf>, %48, %cst_26 [1] : vector<8x8xf32> to vector<8xf32>
    %50 = vector.shape_cast %49 : vector<8xf32> to vector<8x1xf32>
    %51 = vector.broadcast %50 : vector<8x1xf32> to vector<8x8xf32>
    %52 = arith.subf %48, %51 : vector<8x8xf32>
    %53 = math.exp %52 : vector<8x8xf32>
    %cst_27 = arith.constant dense<0.000000e+00> : vector<8xf32>
    %54 = vector.multi_reduction <add>, %53, %cst_27 [1] : vector<8x8xf32> to vector<8xf32>
    %55 = vector.shape_cast %54 : vector<8xf32> to vector<8x1xf32>
    %56 = tpu.reciprocal %55 {approx = true} : vector<8x1xf32> -> vector<8x1xf32>
    %57 = vector.broadcast %56 : vector<8x1xf32> to vector<8x8xf32>
    %58 = arith.mulf %53, %57 : vector<8x8xf32>
    %59 = arith.truncf %58 : vector<8x8xf32> to vector<8x8xbf16>
    %cst_28 = arith.constant dense<0.000000e+00> : vector<8x16xf32>
    %60 = tpu.matmul %59, %46, %cst_28 {dimension_numbers = #tpu.dot_dimension_numbers<[1], [0], [0], [1], [0, 0, 1, 1], [], []>} : vector<8x8xbf16>, vector<8x16xbf16>, vector<8x16xf32> -> vector<8x16xf32>
    %61 = arith.truncf %60 : vector<8x16xf32> to vector<8x16xbf16>
    %c0_29 = arith.constant 0 : index
    %c0_30 = arith.constant 0 : index
    %c16 = arith.constant 16 : index
    %62 = vector.load %arg7[%c0_29, %c0_30, %c16] : memref<1x8x32xbf16, #tpu.memory_space<vmem>>, vector<1x8x16xbf16>
    %63 = vector.shape_cast %62 : vector<1x8x16xbf16> to vector<8x16xbf16>
    %64 = vector.shape_cast %61 : vector<8x16xbf16> to vector<1x8x16xbf16>
    tpu.vector_store %arg7[%c0_29, %c0_30, %c16], %64 {strides = array<i32>} : memref<1x8x32xbf16, #tpu.memory_space<vmem>>, vector<1x8x16xbf16>,
    return
  }
  func.func @transform_0(%arg0: i32) -> (i32, i32, i32) {
    %c0_i32 = arith.constant 0 : i32
    %c0_i32_0 = arith.constant 0 : i32
    %c0_i32_1 = arith.constant 0 : i32
    return %arg0, %c0_i32, %c0_i32_0 : i32, i32, i32
  }
  func.func @transform_1(%arg0: i32) -> (i32, i32, i32) {
    %c0_i32 = arith.constant 0 : i32
    %c0_i32_0 = arith.constant 0 : i32
    %c0_i32_1 = arith.constant 0 : i32
    return %arg0, %c0_i32, %c0_i32_0 : i32, i32, i32
  }
  func.func @transform_2(%arg0: i32) -> (i32, i32) {
    %c0_i32 = arith.constant 0 : i32
    %c0_i32_0 = arith.constant 0 : i32
    %c0_i32_1 = arith.constant 0 : i32
    return %c0_i32, %c0_i32_0 : i32, i32
  }
  func.func @transform_3(%arg0: i32) -> (i32, i32) {
    %c0_i32 = arith.constant 0 : i32
    %c0_i32_0 = arith.constant 0 : i32
    %c0_i32_1 = arith.constant 0 : i32
    return %c0_i32, %c0_i32_0 : i32, i32
  }
  func.func @transform_4(%arg0: i32) -> (i32, i32) {
    %c0_i32 = arith.constant 0 : i32
    %c0_i32_0 = arith.constant 0 : i32
    %c0_i32_1 = arith.constant 0 : i32
    return %c0_i32, %c0_i32_0 : i32, i32
  }
  func.func @transform_5(%arg0: i32) -> (i32, i32, i32) {
    %c0_i32 = arith.constant 0 : i32
    %c0_i32_0 = arith.constant 0 : i32
    %c0_i32_1 = arith.constant 0 : i32
    return %arg0, %c0_i32, %c0_i32_0 : i32, i32, i32
  }
  func.func @transform_6(%arg0: i32) -> (i32, i32, i32) {
    %c0_i32 = arith.constant 0 : i32
    %c0_i32_0 = arith.constant 0 : i32
    %c0_i32_1 = arith.constant 0 : i32
    return %arg0, %c0_i32, %c0_i32_0 : i32, i32, i32
  }
}

module attributes {stable_mosaic.version = 11 : i64} {
  func.func @_proj_kernel(%arg0: i32, %arg1: i32, %arg2: memref<8x32xbf16, #tpu.memory_space<vmem>>, %arg3: memref<32x64xbf16, #tpu.memory_space<vmem>>, %arg4: memref<8x64xf32, #tpu.memory_space<vmem>>) attributes {dimension_semantics = [#tpu.dimension_semantics<parallel>, #tpu.dimension_semantics<parallel>], iteration_bounds = array<i64: 2, 1>, scalar_prefetch = 0 : i64, scratch_operands = 0 : i64, tpu.core_type = #tpu.core_type<tc>, window_params = [{transform_indices = @transform_0, window_bounds = array<i64: 8, 32>}, {transform_indices = @transform_1, window_bounds = array<i64: 32, 64>}, {transform_indices = @transform_2, window_bounds = array<i64: 8, 64>}]} {
    %c0 = arith.constant 0 : index
    %c0_0 = arith.constant 0 : index
    %0 = vector.load %arg2[%c0, %c0_0] : memref<8x32xbf16, #tpu.memory_space<vmem>>, vector<8x32xbf16>
    %c0_1 = arith.constant 0 : index
    %c0_2 = arith.constant 0 : index
    %1 = vector.load %arg3[%c0_1, %c0_2] : memref<32x64xbf16, #tpu.memory_space<vmem>>, vector<32x64xbf16>
    %cst = arith.constant dense<0.000000e+00> : vector<8x64xf32>
    %2 = tpu.matmul %0, %1, %cst {dimension_numbers = #tpu.dot_dimension_numbers<[1], [0], [0], [1], [0, 0, 1, 1], [], []>} : vector<8x32xbf16>, vector<32x64xbf16>, vector<8x64xf32> -> vector<8x64xf32>
    %c0_3 = arith.constant 0 : index
    %c0_4 = arith.constant 0 : index
    %3 = vector.load %arg4[%c0_3, %c0_4] : memref<8x64xf32, #tpu.memory_space<vmem>>, vector<8x64xf32>
    tpu.vector_store %arg4[%c0_3, %c0_4], %2 {strides = array<i32>} : memref<8x64xf32, #tpu.memory_space<vmem>>, vector<8x64xf32>,
    return
  }
  func.func @transform_0(%arg0: i32, %arg1: i32) -> (i32, i32) {
    %c0_i32 = arith.constant 0 : i32
    %c0_i32_0 = arith.constant 0 : i32
    return %arg0, %c0_i32 : i32, i32
  }
  func.func @transform_1(%arg0: i32, %arg1: i32) -> (i32, i32) {
    %c0_i32 = arith.constant 0 : i32
    %c0_i32_0 = arith.constant 0 : i32
    return %c0_i32, %arg1 : i32, i32
  }
  func.func @transform_2(%arg0: i32, %arg1: i32) -> (i32, i32) {
    %c0_i32 = arith.constant 0 : i32
    return %arg0, %arg1 : i32, i32
  }
}

</mosaic_0001>

<llo_original>
// kernel: _lambda_.18
$region0: #{_lambda_.18}
  #allocation0 [shape = 'u32[]', space=smem, size = 0x4, offset = 0x4, fixed_abs, tag = 'smem constant byte address 0x4 - core index']
  #allocation1 [shape = 'u32[144,128]{1,0:T(1,128)}', space=vmem, size = 0x12000, scoped, tag = 'internal scratch']
  %s0 = inlined_call_operand.hbm [shape: bf16[16,32], index: 0, kind: input, shape index: {}]
  %s1 = inlined_call_operand.hbm [shape: bf16[32,32], index: 1, kind: input, shape index: {}]
  %s2 = inlined_call_operand.hbm [shape: f32[1,32], index: 2, kind: input, shape index: {}]
  %s3 = inlined_call_operand.hbm [shape: bf16[16,32], index: 3, kind: input, shape index: {}]
  %s4 = inlined_call_operand.hbm [shape: f32[1,32], index: 4, kind: input, shape index: {}]
  %s5 = inlined_call_operand.hbm [shape: f32[1,32], index: 5, kind: input, shape index: {}]
  %s6 = inlined_call_operand.hbm [shape: bf16[16,32], index: 6, kind: output, shape index: {}]
  %s7 = sld [smem:[#allocation0]]
  $region81: #{_lambda_.18} parent=0
    _
  %s9 = ssub.s32 1, %s7
  %s10 = scalar_select 0, %s9, %s7
  $region1: #{_lambda_.18} parent=0
    #allocation2 [shape = 'u8[4096]{0}', space=vmem, size = 0x1000, scoped, tag = 'input window, operand 0']
    #allocation3 [shape = 's32[2]{0}', space=sflag, size = 0x8, scoped, tag = 'scoped memory for _lambda_.18']
    #allocation4 [shape = 's32[2]{0}', space=sflag, size = 0x8, scoped, tag = 'scoped memory for _lambda_.18']
    #allocation5 [shape = 'u8[8192]{0}', space=vmem, size = 0x2000, scoped, tag = 'input window, operand 1, single buffered']
    #allocation6 [shape = 's32[1]{0}', space=sflag, size = 0x4, scoped, tag = 'scoped memory for _lambda_.18']
    #allocation7 [shape = 'u8[512]{0}', space=vmem, size = 0x400, scoped, tag = 'input window, operand 2, single buffered']
    #allocation8 [shape = 'u8[4096]{0}', space=vmem, size = 0x1000, scoped, tag = 'input window, operand 3']
    #allocation9 [shape = 's32[2]{0}', space=sflag, size = 0x8, scoped, tag = 'scoped memory for _lambda_.18']
    #allocation10 [shape = 'u8[512]{0}', space=vmem, size = 0x400, scoped, tag = 'input window, operand 4, single buffered']
    #allocation11 [shape = 'u8[512]{0}', space=vmem, size = 0x400, scoped, tag = 'input window, operand 5, single buffered']
    #allocation12 [shape = 's32[1]{0}', space=sflag, size = 0x4, scoped, tag = 'scoped memory for _lambda_.18']
    #allocation13 [shape = 'u8[4096]{0}', space=vmem, size = 0x1000, scoped, tag = 'output window, operand 0']
    %11 = vsyncpa [#allocation3], 0
    %s12 = scalar_lea.sflag [#allocation3], 1
    %13 = vsyncpa %s12, 0
    %14 = vsyncpa [#allocation6], 0
    %15 = vsyncpa [#allocation9], 0
    %s16 = scalar_lea.sflag [#allocation9], 1
    %17 = vsyncpa %s16, 0
    %18 = vsyncpa [#allocation12], 0
    %19 = vsyncpa [#allocation4], 0
    %s20 = scalar_lea.sflag [#allocation4], 1
    %21 = vsyncpa %s20, 0
    loop: start=0, step=1, limit=4
    $region2: #{_lambda_.18} parent=1 // loop_pre_header
      _
    $region3: #{_lambda_.18} parent=1 // loop_header
      %s23 = sphi 0, %s27
      %p24 = scmp.ge.s32.totalorder %s23, 4
      %s33 = sphi 0, %s35
      %s36 = sphi 0, %s33
      %s37 = sphi 0, %s36
      %s53 = sphi 0, %s37
      %s57 = sphi 0, %s57
      %s59 = sphi 0, %s57
      %s60 = sphi 0, %s59
      %s74 = sphi 0, %s60
      %s78 = sphi 0, %s78
      %s80 = sphi 0, %s78
      %s81 = sphi 0, %s80
      %s95 = sphi 0, %s81
      %s101 = sphi 0, %s103
      %s104 = sphi 0, %s101
      %s105 = sphi 0, %s104
      %s121 = sphi 0, %s105
      %s125 = sphi 0, %s125
      %s127 = sphi 0, %s125
      %s128 = sphi 0, %s127
      %s142 = sphi 0, %s128
      %s146 = sphi 0, %s146
      %s148 = sphi 0, %s146
      %s149 = sphi 0, %s148
      %s163 = sphi 0, %s149
      %s169 = sphi 0, %s171
      %s172 = sphi 0, %s169
      %s173 = sphi 0, %s172
      %s189 = sphi 0, %s173
    $region4: #{_lambda_.18} parent=1 // loop_header_branch
      %26 = sbr.rel (%p24) target = $region8
    $region5: #{_lambda_.18} parent=1 // loop_body
      %s28 = ssub.s32 %s23, 1
      %s29 = ssub.s32 %s23, 2
      %s30 = sadd.s32 %s23, 1
      %s31 = ssub.s32 %s23, %s30
      %p32 = scmp.eq.s32.totalorder %s31, 0
      %s34 = sadd.s32 %s33, 1
      %s35 = scalar_select %p32, %s33, %s34
      %p38 = pneg %p32
      %p39 = scmp.eq.s32.totalorder %s23, 1
      %p40 = por %p38, %p39
      %p41 = scmp.ne.s32.totalorder %s33, %s36
      %p42 = scmp.eq.s32.totalorder %s23, 0
      %p43 = por %p41, %p42
      %p44 = scmp.ne.s32.totalorder %s33, %s36
      %p45 = scmp.eq.s32.totalorder %s28, 1
      %p46 = por %p44, %p45
      %p47 = scmp.ne.s32.totalorder %s36, %s37
      %p48 = scmp.eq.s32.totalorder %s28, 0
      %p49 = por %p47, %p48
      %p50 = scmp.ne.s32.totalorder %s36, %s37
      %p51 = scmp.eq.s32.totalorder %s29, 1
      %p52 = por %p50, %p51
      %p54 = scmp.ne.s32.totalorder %s37, %s53
      %p55 = scmp.eq.s32.totalorder %s29, 0
      %p56 = por %p54, %p55
      %s58 = sadd.s32 %s57, 1
      %p61 = scmp.eq.s32.totalorder %s23, 1
      %p62 = scmp.ne.s32.totalorder %s57, %s59
      %p63 = scmp.eq.s32.totalorder %s23, 0
      %p64 = por %p62, %p63
      %p65 = scmp.ne.s32.totalorder %s57, %s59
      %p66 = scmp.eq.s32.totalorder %s28, 1
      %p67 = por %p65, %p66
      %p68 = scmp.ne.s32.totalorder %s59, %s60
      %p69 = scmp.eq.s32.totalorder %s28, 0
      %p70 = por %p68, %p69
      %p71 = scmp.ne.s32.totalorder %s59, %s60
      %p72 = scmp.eq.s32.totalorder %s29, 1
      %p73 = por %p71, %p72
      %p75 = scmp.ne.s32.totalorder %s60, %s74
      %p76 = scmp.eq.s32.totalorder %s29, 0
      %p77 = por %p75, %p76
      %s79 = sadd.s32 %s78, 1
      %p82 = scmp.eq.s32.totalorder %s23, 1
      %p83 = scmp.ne.s32.totalorder %s78, %s80
      %p84 = scmp.eq.s32.totalorder %s23, 0
      %p85 = por %p83, %p84
      %p86 = scmp.ne.s32.totalorder %s78, %s80
      %p87 = scmp.eq.s32.totalorder %s28, 1
      %p88 = por %p86, %p87
      %p89 = scmp.ne.s32.totalorder %s80, %s81
      %p90 = scmp.eq.s32.totalorder %s28, 0
      %p91 = por %p89, %p90
      %p92 = scmp.ne.s32.totalorder %s80, %s81
      %p93 = scmp.eq.s32.totalorder %s29, 1
      %p94 = por %p92, %p93
      %p96 = scmp.ne.s32.totalorder %s81, %s95
      %p97 = scmp.eq.s32.totalorder %s29, 0
      %p98 = por %p96, %p97
      %s99 = ssub.s32 %s23, %s30
      %p100 = scmp.eq.s32.totalorder %s99, 0
      %s102 = sadd.s32 %s101, 1
      %s103 = scalar_select %p100, %s101, %s102
      %p106 = pneg %p100
      %p107 = scmp.eq.s32.totalorder %s23, 1
      %p108 = por %p106, %p107
      %p109 = scmp.ne.s32.totalorder %s101, %s104
      %p110 = scmp.eq.s32.totalorder %s23, 0
      %p111 = por %p109, %p110
      %p112 = scmp.ne.s32.totalorder %s101, %s104
      %p113 = scmp.eq.s32.totalorder %s28, 1
      %p114 = por %p112, %p113
      %p115 = scmp.ne.s32.totalorder %s104, %s105
      %p116 = scmp.eq.s32.totalorder %s28, 0
      %p117 = por %p115, %p116
      %p118 = scmp.ne.s32.totalorder %s104, %s105
      %p119 = scmp.eq.s32.totalorder %s29, 1
      %p120 = por %p118, %p119
      %p122 = scmp.ne.s32.totalorder %s105, %s121
      %p123 = scmp.eq.s32.totalorder %s29, 0
      %p124 = por %p122, %p123
      %s126 = sadd.s32 %s125, 1
      %p129 = scmp.eq.s32.totalorder %s23, 1
      %p130 = scmp.ne.s32.totalorder %s125, %s127
      %p131 = scmp.eq.s32.totalorder %s23, 0
      %p132 = por %p130, %p131
      %p133 = scmp.ne.s32.totalorder %s125, %s127
      %p134 = scmp.eq.s32.totalorder %s28, 1
      %p135 = por %p133, %p134
      %p136 = scmp.ne.s32.totalorder %s127, %s128
      %p137 = scmp.eq.s32.totalorder %s28, 0
      %p138 = por %p136, %p137
      %p139 = scmp.ne.s32.totalorder %s127, %s128
      %p140 = scmp.eq.s32.totalorder %s29, 1
      %p141 = por %p139, %p140
      %p143 = scmp.ne.s32.totalorder %s128, %s142
      %p144 = scmp.eq.s32.totalorder %s29, 0
      %p145 = por %p143, %p144
      %s147 = sadd.s32 %s146, 1
      %p150 = scmp.eq.s32.totalorder %s23, 1
      %p151 = scmp.ne.s32.totalorder %s146, %s148
      %p152 = scmp.eq.s32.totalorder %s23, 0
      %p153 = por %p151, %p152
      %p154 = scmp.ne.s32.totalorder %s146, %s148
      %p155 = scmp.eq.s32.totalorder %s28, 1
      %p156 = por %p154, %p155
      %p157 = scmp.ne.s32.totalorder %s148, %s149
      %p158 = scmp.eq.s32.totalorder %s28, 0
      %p159 = por %p157, %p158
      %p160 = scmp.ne.s32.totalorder %s148, %s149
      %p161 = scmp.eq.s32.totalorder %s29, 1
      %p162 = por %p160, %p161
      %p164 = scmp.ne.s32.totalorder %s149, %s163
      %p165 = scmp.eq.s32.totalorder %s29, 0
      %p166 = por %p164, %p165
      %s167 = ssub.s32 %s23, %s30
      %p168 = scmp.eq.s32.totalorder %s167, 0
      %s170 = sadd.s32 %s169, 1
      %s171 = scalar_select %p168, %s169, %s170
      %p174 = pneg %p168
      %p175 = scmp.eq.s32.totalorder %s23, 1
      %p176 = por %p174, %p175
      %p177 = scmp.ne.s32.totalorder %s169, %s172
      %p178 = scmp.eq.s32.totalorder %s23, 0
      %p179 = por %p177, %p178
      %p180 = scmp.ne.s32.totalorder %s169, %s172
      %p181 = scmp.eq.s32.totalorder %s28, 1
      %p182 = por %p180, %p181
      %p183 = scmp.ne.s32.totalorder %s172, %s173
      %p184 = scmp.eq.s32.totalorder %s28, 0
      %p185 = por %p183, %p184
      %p186 = scmp.ne.s32.totalorder %s172, %s173
      %p187 = scmp.eq.s32.totalorder %s29, 1
      %p188 = por %p186, %p187
      %p190 = scmp.ne.s32.totalorder %s173, %s189
      %p191 = scmp.eq.s32.totalorder %s29, 0
      %p192 = por %p190, %p191
      %p193 = scmp.le.s32.totalorder 1, %s23
      %p194 = scmp.lt.s32.totalorder %s23, 3
      %p195 = pnand %p193, %p194
      %p196 = pneg %p195
      // Predicated region
      $region9: #{_lambda_.18} parent=5 // pred_check
        _
      $region10: #{_lambda_.18} parent=5 // pred_check_branch
        %198 = sbr.rel (%p195) target = $region12
      $region11: #{_lambda_.18} parent=5 // pred_region
        %s199 = ssub.s32 %s23, 1
        // Predicated region
        $region13: #{_lambda_.18} parent=11 // pred_check
          %p200 = pneg %p70
        $region14: #{_lambda_.18} parent=11 // pred_check_branch
          %202 = sbr.rel (%p200) target = $region16
        $region15: #{_lambda_.18} parent=11 // pred_region
          %s204 = ssub.s32 256, 256
          %205 = vsyncadd [#allocation6], %s204
          %s206 = sshll.u32 [#allocation5], 4
          %s207 = int_to_ptr.vmem [resolvable:$true] %s206
          %212 = dma.hbm_to_vmem [thread:$0]  %s1, 256, %s207, [#allocation6], 64, 64, 4
        $region16: #{_lambda_.18} parent=11 // pred_fallthru
          _
        // Predicated region
        $region17: #{_lambda_.18} parent=11 // pred_check
          %p213 = pneg %p91
        $region18: #{_lambda_.18} parent=11 // pred_check_branch
          %215 = sbr.rel (%p213) target = $region20
        $region19: #{_lambda_.18} parent=11 // pred_region
          %s217 = ssub.s32 16, 16
          %218 = vsyncadd [#allocation6], %s217
          %s220 = sshll.u32 [#allocation7], 4
          %s221 = int_to_ptr.vmem [resolvable:$true] %s220
          %223 = dma.hbm_to_vmem [thread:$0]  %s2, 16, %s221, [#allocation6]
        $region20: #{_lambda_.18} parent=11 // pred_fallthru
          _
        // Predicated region
        $region21: #{_lambda_.18} parent=11 // pred_check
          %p224 = pneg %p138
        $region22: #{_lambda_.18} parent=11 // pred_check_branch
          %226 = sbr.rel (%p224) target = $region24
        $region23: #{_lambda_.18} parent=11 // pred_region
          %s228 = ssub.s32 16, 16
          %229 = vsyncadd [#allocation9], %s228
          %s231 = sshll.u32 [#allocation10], 4
          %s232 = int_to_ptr.vmem [resolvable:$true] %s231
          %234 = dma.hbm_to_vmem [thread:$0]  %s4, 16, %s232, [#allocation9]
        $region24: #{_lambda_.18} parent=11 // pred_fallthru
          _
        // Predicated region
        $region25: #{_lambda_.18} parent=11 // pred_check
          %p235 = pneg %p159
        $region26: #{_lambda_.18} parent=11 // pred_check_branch
          %237 = sbr.rel (%p235) target = $region28
        $region27: #{_lambda_.18} parent=11 // pred_region
          %s239 = ssub.s32 16, 16
          %240 = vsyncadd [#allocation12], %s239
          %s242 = sshll.u32 [#allocation11], 4
          %s243 = int_to_ptr.vmem [resolvable:$true] %s242
          %245 = dma.hbm_to_vmem [thread:$0]  %s5, 16, %s243, [#allocation12]
        $region28: #{_lambda_.18} parent=11 // pred_fallthru
          _
      $region12: #{_lambda_.18} parent=5 // pred_fallthru
        _
      %p246 = scmp.lt.s32.totalorder %s23, 2
      // Predicated region
      $region29: #{_lambda_.18} parent=5 // pred_check
        %p247 = pneg %p246
      $region30: #{_lambda_.18} parent=5 // pred_check_branch
        %249 = sbr.rel (%p247) target = $region32
      $region31: #{_lambda_.18} parent=5 // pred_region
        // Predicated region
        $region33: #{_lambda_.18} parent=31 // pred_check
          %p250 = pneg %p43
        $region34: #{_lambda_.18} parent=31 // pred_check_branch
          %252 = sbr.rel (%p250) target = $region36
        $region35: #{_lambda_.18} parent=31 // pred_region
          %s253 = sand.u32 %s33, 1
          %s254 = scalar_lea.sflag [#allocation3], %s253
          %s255 = sand.u32 %s33, 1
          %s256 = smul.addr %s255, 4
          %s257 = scalar_lea.vmem [#allocation2], %s256
          %s259 = ssub.s32 64, 64
          %260 = vsyncadd %s254, %s259
          %s261 = smul.addr %s23, 64
          %s262 = scalar_lea.hbm %s0, %s261
          %s264 = sshll.u32 %s257, 4
          %s265 = int_to_ptr.vmem [resolvable:$true] %s264
          %267 = dma.hbm_to_vmem [thread:$0]  %s262, 64, %s265, %s254
        $region36: #{_lambda_.18} parent=31 // pred_fallthru
          _
        // Predicated region
        $region37: #{_lambda_.18} parent=31 // pred_check
          %p268 = pneg %p111
        $region38: #{_lambda_.18} parent=31 // pred_check_branch
          %270 = sbr.rel (%p268) target = $region40
        $region39: #{_lambda_.18} parent=31 // pred_region
          %s271 = sand.u32 %s23, 1
          %s272 = scalar_lea.sflag [#allocation9], %s271
          %s273 = sand.u32 %s101, 1
          %s274 = smul.addr %s273, 4
          %s275 = scalar_lea.vmem [#allocation8], %s274
          %s277 = ssub.s32 64, 64
          %278 = vsyncadd %s272, %s277
          %s279 = smul.addr %s23, 64
          %s280 = scalar_lea.hbm %s3, %s279
          %s282 = sshll.u32 %s275, 4
          %s283 = int_to_ptr.vmem [resolvable:$true] %s282
          %285 = dma.hbm_to_vmem [thread:$0]  %s280, 64, %s283, %s272
        $region40: #{_lambda_.18} parent=31 // pred_fallthru
          _
      $region32: #{_lambda_.18} parent=5 // pred_fallthru
        _
      %p286 = scmp.le.s32.totalorder 1, %s23
      %p287 = scmp.lt.s32.totalorder %s23, 3
      %p288 = pnand %p286, %p287
      %p289 = pneg %p288
      // Predicated region
      $region41: #{_lambda_.18} parent=5 // pred_check
        _
      $region42: #{_lambda_.18} parent=5 // pred_check_branch
        %291 = sbr.rel (%p288) target = $region44
      $region43: #{_lambda_.18} parent=5 // pred_region
        %s292 = ssub.s32 %s23, 1
        %s293 = sand.u32 %s36, 1
        %s294 = scalar_lea.sflag [#allocation3], %s293
        %s295 = sand.u32 %s36, 1
        %s296 = smul.addr %s295, 4
        %s297 = scalar_lea.vmem [#allocation2], %s296
        // Predicated region
        $region45: #{_lambda_.18} parent=43 // pred_check
          %p298 = pneg %p49
        $region46: #{_lambda_.18} parent=43 // pred_check_branch
          %300 = sbr.rel (%p298) target = $region48
        $region47: #{_lambda_.18} parent=43 // pred_region
          %301 = dma.done %s294, 64
        $region48: #{_lambda_.18} parent=43 // pred_fallthru
          _
        // Predicated region
        $region49: #{_lambda_.18} parent=43 // pred_check
          %p302 = pneg %p70
        $region50: #{_lambda_.18} parent=43 // pred_check_branch
          %304 = sbr.rel (%p302) target = $region52
        $region51: #{_lambda_.18} parent=43 // pred_region
          %305 = dma.done [#allocation6], 256
        $region52: #{_lambda_.18} parent=43 // pred_fallthru
          _
        // Predicated region
        $region53: #{_lambda_.18} parent=43 // pred_check
          %p306 = pneg %p91
        $region54: #{_lambda_.18} parent=43 // pred_check_branch
          %308 = sbr.rel (%p306) target = $region56
        $region55: #{_lambda_.18} parent=43 // pred_region
          %309 = dma.done [#allocation6], 16
        $region56: #{_lambda_.18} parent=43 // pred_fallthru
          _
        %s310 = sand.u32 %s28, 1
        %s311 = scalar_lea.sflag [#allocation9], %s310
        %s312 = sand.u32 %s104, 1
        %s313 = smul.addr %s312, 4
        %s314 = scalar_lea.vmem [#allocation8], %s313
        // Predicated region
        $region57: #{_lambda_.18} parent=43 // pred_check
          %p315 = pneg %p117
        $region58: #{_lambda_.18} parent=43 // pred_check_branch
          %317 = sbr.rel (%p315) target = $region60
        $region59: #{_lambda_.18} parent=43 // pred_region
          %318 = dma.done %s311, 64
        $region60: #{_lambda_.18} parent=43 // pred_fallthru
          _
        // Predicated region
        $region61: #{_lambda_.18} parent=43 // pred_check
          %p319 = pneg %p138
        $region62: #{_lambda_.18} parent=43 // pred_check_branch
          %321 = sbr.rel (%p319) target = $region64
        $region63: #{_lambda_.18} parent=43 // pred_region
          %322 = dma.done [#allocation9], 16
        $region64: #{_lambda_.18} parent=43 // pred_fallthru
          _
        // Predicated region
        $region65: #{_lambda_.18} parent=43 // pred_check
          %p323 = pneg %p159
        $region66: #{_lambda_.18} parent=43 // pred_check_branch
          %325 = sbr.rel (%p323) target = $region68
        $region67: #{_lambda_.18} parent=43 // pred_region
          %326 = dma.done [#allocation12], 16
        $region68: #{_lambda_.18} parent=43 // pred_fallthru
          _
        %s327 = sand.u32 %s36, 1
        %s328 = scalar_lea.sflag [#allocation3], %s327
        %s329 = sand.u32 %s36, 1
        %s330 = smul.addr %s329, 4
        %s331 = scalar_lea.vmem [#allocation2], %s330
        %p332 = pneg %p49
        %p333 = pneg %p46
        %p334 = pneg %p70
        %p335 = pneg %p67
        %p336 = pneg %p91
        %p337 = pneg %p88
        %s338 = sand.u32 %s28, 1
        %s339 = scalar_lea.sflag [#allocation9], %s338
        %s340 = sand.u32 %s104, 1
        %s341 = smul.addr %s340, 4
        %s342 = scalar_lea.vmem [#allocation8], %s341
        %p343 = pneg %p117
        %p344 = pneg %p114
        %p345 = pneg %p138
        %p346 = pneg %p135
        %p347 = pneg %p159
        %p348 = pneg %p156
        %p349 = pneg %p185
        %p350 = pneg %p182
        %s351 = sand.u32 %s172, 1
        %s352 = scalar_lea.sflag [#allocation4], %s351
        %s353 = sand.u32 %s172, 1
        %s354 = smul.addr %s353, 4
        %s355 = scalar_lea.vmem [#allocation13], %s354
        %v357 = vld [vmem:[%s297] sm:$0xf]
        %v358 = vld [vmem:[#allocation5] sm:$0xf]
        %v359 = vld [vmem:[#allocation5 + $0x4] sm:$0xf]
        %v360 = vld [vmem:[#allocation5 + $0x8] sm:$0xf]
        %v361 = vld [vmem:[#allocation5 + $0xc] sm:$0xf]
        %v362 = vld [vmem:[#allocation7] sm:$0x1]
        %v364 = vlaneseq
        %v365 = vshrl.u32 %v364, 7
        %v366 = vsub.s32 0, %v365
        %v367 = vrot.slane %v362, %v366
        %v373 = vunpack.c.l.b16 %v358
        %v374 = vunpack.c.l.b16 %v359
        %v375 = vunpack.c.l.b16 %v360
        %v376 = vunpack.c.l.b16 %v361
        %v377 = vpack.c.b16 %v374, %v373
        %v378 = vpack.c.b16 %v376, %v375
        %vm381 = vcmask 261120
        %v383 = vsel %vm381, %v357, 0
        %385 = vmatprep.subr.bf16.mxu0 0
        %386 = vmatpush1.bf16.msra.mxu0 %v377
        %387 = vmatprep.subr.bf16.mxu0 0
        %388 = vmatpush1.bf16.msra.mxu0 %v378
        %389 = vmatprep.subr.bf16.mxu0 0
        %390 = vmatpush1.bf16.msra.mxu0 0
        %391 = vmatprep.subr.bf16.mxu0 0
        %392 = vmatpush1.bf16.msra.mxu0 0
        %393 = vmatprep.subr.bf16.mxu0 0
        %394 = vmatpush1.bf16.msra.mxu0 0
        %395 = vmatprep.subr.bf16.mxu0 0
        %396 = vmatpush1.bf16.msra.mxu0 0
        %397 = vmatprep.subr.bf16.mxu0 0
        %398 = vmatpush1.bf16.msra.mxu0 0
        %399 = vmatprep.subr.bf16.mxu0 0
        %400 = vmatpush1.bf16.msra.mxu0 0
        %401 = vmatprep.subr.bf16.mxu0 0
        %402 = vmatpush1.bf16.msra.mxu0 0
        %403 = vmatprep.subr.bf16.mxu0 0
        %404 = vmatpush1.bf16.msra.mxu0 0
        %405 = vmatprep.subr.bf16.mxu0 0
        %406 = vmatpush1.bf16.msra.mxu0 0
        %407 = vmatprep.subr.bf16.mxu0 0
        %408 = vmatpush1.bf16.msra.mxu0 0
        %409 = vmatprep.subr.bf16.mxu0 0
        %410 = vmatpush1.bf16.msra.mxu0 0
        %411 = vmatprep.subr.bf16.mxu0 0
        %412 = vmatpush1.bf16.msra.mxu0 0
        %413 = vmatprep.subr.bf16.mxu0 0
        %414 = vmatpush1.bf16.msra.mxu0 0
        %415 = vmatprep.subr.bf16.mxu0 0
        %416 = vmatpush1.bf16.msra.mxu0 0
        %417 = vmatprep.mubr.bf16.mxu0 0
        %418 = vmatmul.mubr.bf16.gmra.mrb[0].mxu0 %v383
        %v419 = vpop.f32.mrb[0].mxu0
        %v420 = vadd.f32 %v367, %v419
        %v421 = vpop.f32.mrb[0].mxu0
        %v422 = vpop.f32.mrb[0].mxu0
        %v423 = vpop.f32.mrb[0].mxu0
        %424 = vdwg.mxu0
        %v425 = vld [vmem:[%s314] sm:$0xf]
        %v426 = vunpack.c.l.bf16 %v425
        %v427 = vadd.f32 %v420, %v426
        %v428 = vsel %vm381, %v427, 0.0
        %429 = vadd.xlane.f32.xlu0 %v428
        %v430 = vpop.xlane.xlu0 %429
        %v431 = vrcp.pop 32.0
        %v432 = vmul.f32 %v430, %v431
        %v433 = vsub.f32 %v427, %v432
        %v434 = vmul.f32 %v433, %v433
        %v435 = vsel %vm381, %v434, 0.0
        %436 = vadd.xlane.f32.xlu0 %v435
        %v437 = vpop.xlane.xlu0 %436
        %v438 = vmul.f32 %v437, %v431
        %v439 = vadd.f32 %v438, 1e-05
        %v440 = vrsqrt.pop %v439
        %v441 = vmul.f32 %v433, %v440
        %v442 = vld [vmem:[#allocation10] sm:$0x1]
        %v444 = vlaneseq
        %v445 = vshrl.u32 %v444, 7
        %v446 = vsub.s32 0, %v445
        %v447 = vrot.slane %v442, %v446
        %v449 = vmul.f32 %v441, %v447
        %v450 = vld [vmem:[#allocation11] sm:$0x1]
        %v452 = vlaneseq
        %v453 = vshrl.u32 %v452, 7
        %v454 = vsub.s32 0, %v453
        %v455 = vrot.slane %v450, %v454
        %v457 = vadd.f32 %v449, %v455
        %v458 = vpack.c.bf16 %v457, %v457
        %vm459 = vcmask 257024
        %460 = vst.msk [vmem:[%s355] sm:$0xf] %vm459, %v458
        %s461 = sand.u32 %s172, 1
        %s462 = scalar_lea.sflag [#allocation4], %s461
        %s463 = sand.u32 %s172, 1
        %s464 = smul.addr %s463, 4
        %s465 = scalar_lea.vmem [#allocation13], %s464
        // Predicated region
        $region69: #{_lambda_.18} parent=43 // pred_check
          %p466 = pneg %p182
        $region70: #{_lambda_.18} parent=43 // pred_check_branch
          %468 = sbr.rel (%p466) target = $region72
        $region71: #{_lambda_.18} parent=43 // pred_region
          %s470 = ssub.s32 64, 64
          %471 = vsyncadd %s462, %s470
          %s472 = smul.addr %s28, 64
          %s473 = scalar_lea.hbm %s6, %s472
          %s475 = sshll.u32 %s465, 4
          %s476 = int_to_ptr.vmem [resolvable:$true] %s475
          %478 = dma.vmem_to_hbm [thread:$0]  %s476, 64, %s473, %s462
        $region72: #{_lambda_.18} parent=43 // pred_fallthru
          _
      $region44: #{_lambda_.18} parent=5 // pred_fallthru
        _
      %p479 = scmp.le.s32.totalorder 2, %s23
      // Predicated region
      $region73: #{_lambda_.18} parent=5 // pred_check
        %p480 = pneg %p479
      $region74: #{_lambda_.18} parent=5 // pred_check_branch
        %482 = sbr.rel (%p480) target = $region76
      $region75: #{_lambda_.18} parent=5 // pred_region
        %s483 = ssub.s32 %s23, 2
        // Predicated region
        $region77: #{_lambda_.18} parent=75 // pred_check
          %p484 = pneg %p188
        $region78: #{_lambda_.18} parent=75 // pred_check_branch
          %486 = sbr.rel (%p484) target = $region80
        $region79: #{_lambda_.18} parent=75 // pred_region
          %s487 = sand.u32 %s173, 1
          %s488 = scalar_lea.sflag [#allocation4], %s487
          %s489 = sand.u32 %s173, 1
          %s490 = smul.addr %s489, 4
          %s491 = scalar_lea.vmem [#allocation13], %s490
          %492 = dma.done %s488, 64
        $region80: #{_lambda_.18} parent=75 // pred_fallthru
          _
      $region76: #{_lambda_.18} parent=5 // pred_fallthru
        _
    $region6: #{_lambda_.18} parent=1 // loop_footer
      %s27 = sadd.s32 1, %s23
    $region7: #{_lambda_.18} parent=1 // loop_footer_branch
      %22 = sbr.rel target = $region3
    $region8: #{_lambda_.18} parent=1 // loop_exit
      _
    %493 = vsyncpa [#allocation3], 1
    %s494 = scalar_lea.sflag [#allocation3], 1
    %495 = vsyncpa %s494, 1
    %496 = vsyncpa [#allocation6], 1
    %497 = vsyncpa [#allocation9], 1
    %s498 = scalar_lea.sflag [#allocation9], 1
    %499 = vsyncpa %s498, 1
    %500 = vsyncpa [#allocation12], 1
    %501 = vsyncpa [#allocation4], 1
    %s502 = scalar_lea.sflag [#allocation4], 1
    %503 = vsyncpa %s502, 1

// kernel: _lambda_.19
$region0: #{_lambda_.19}
  #allocation0 [shape = 'u32[]', space=smem, size = 0x4, offset = 0x4, fixed_abs, tag = 'smem constant byte address 0x4 - core index']
  #allocation1 [shape = 'u32[144,128]{1,0:T(1,128)}', space=vmem, size = 0x12000, scoped, tag = 'internal scratch']
  #allocation2 [shape = 'f32[8,32]{1,0:T(8,128)}', space=vmem, size = 0x1000, scoped, tag = 'scratch operand']
  %s0 = inlined_call_operand.hbm [shape: bf16[16,32], index: 0, kind: input, shape index: {}]
  %s1 = inlined_call_operand.hbm [shape: bf16[32,64], index: 1, kind: input, shape index: {}]
  %s2 = inlined_call_operand.hbm [shape: f32[1,64], index: 2, kind: input, shape index: {}]
  %s3 = inlined_call_operand.hbm [shape: bf16[64,32], index: 3, kind: input, shape index: {}]
  %s4 = inlined_call_operand.hbm [shape: f32[1,32], index: 4, kind: input, shape index: {}]
  %s5 = inlined_call_operand.hbm [shape: f32[1,32], index: 5, kind: input, shape index: {}]
  %s6 = inlined_call_operand.hbm [shape: f32[1,32], index: 6, kind: input, shape index: {}]
  %s7 = inlined_call_operand.hbm [shape: bf16[16,32], index: 7, kind: output, shape index: {}]
  %s8 = sld [smem:[#allocation0]]
  $region97: #{_lambda_.19} parent=0
    _
  %s10 = ssub.s32 1, %s8
  %s11 = scalar_select 0, %s10, %s8
  $region1: #{_lambda_.19} parent=0
    #allocation3 [shape = 'u8[4096]{0}', space=vmem, size = 0x1000, scoped, tag = 'input window, operand 0']
    #allocation4 [shape = 's32[2]{0}', space=sflag, size = 0x8, scoped, tag = 'scoped memory for _lambda_.19']
    #allocation5 [shape = 's32[2]{0}', space=sflag, size = 0x8, scoped, tag = 'scoped memory for _lambda_.19']
    #allocation6 [shape = 'u8[8192]{0}', space=vmem, size = 0x2000, scoped, tag = 'input window, operand 1, single buffered']
    #allocation7 [shape = 's32[1]{0}', space=sflag, size = 0x4, scoped, tag = 'scoped memory for _lambda_.19']
    #allocation8 [shape = 'u8[512]{0}', space=vmem, size = 0x400, scoped, tag = 'input window, operand 2, single buffered']
    #allocation9 [shape = 'u8[16384]{0}', space=vmem, size = 0x4000, scoped, tag = 'input window, operand 3, single buffered']
    #allocation10 [shape = 's32[1]{0}', space=sflag, size = 0x4, scoped, tag = 'scoped memory for _lambda_.19']
    #allocation11 [shape = 'u8[512]{0}', space=vmem, size = 0x400, scoped, tag = 'input window, operand 4, single buffered']
    #allocation12 [shape = 'u8[512]{0}', space=vmem, size = 0x400, scoped, tag = 'input window, operand 5, single buffered']
    #allocation13 [shape = 's32[1]{0}', space=sflag, size = 0x4, scoped, tag = 'scoped memory for _lambda_.19']
    #allocation14 [shape = 'u8[512]{0}', space=vmem, size = 0x400, scoped, tag = 'input window, operand 6, single buffered']
    #allocation15 [shape = 'u8[4096]{0}', space=vmem, size = 0x1000, scoped, tag = 'output window, operand 0']
    %12 = vsyncpa [#allocation4], 0
    %s13 = scalar_lea.sflag [#allocation4], 1
    %14 = vsyncpa %s13, 0
    %15 = vsyncpa [#allocation7], 0
    %16 = vsyncpa [#allocation10], 0
    %17 = vsyncpa [#allocation13], 0
    %18 = vsyncpa [#allocation5], 0
    %s19 = scalar_lea.sflag [#allocation5], 1
    %20 = vsyncpa %s19, 0
    loop: start=0, step=1, limit=4
    $region2: #{_lambda_.19} parent=1 // loop_pre_header
      _
    $region3: #{_lambda_.19} parent=1 // loop_header
      %s22 = sphi 0, %s26
      %p23 = scmp.ge.s32.totalorder %s22, 4
      %s29 = sphi 0, %s41
      %s30 = sphi 0, %s37
      %s31 = sphi 0, %s29
      %s32 = sphi 0, %s30
      %s33 = sphi 0, %s31
      %s34 = sphi 0, %s32
      %s44 = sphi 0, %s46
      %s47 = sphi 0, %s44
      %s48 = sphi 0, %s47
      %s64 = sphi 0, %s48
      %s70 = sphi 0, %s72
      %s73 = sphi 0, %s70
      %s74 = sphi 0, %s73
      %s90 = sphi 0, %s74
      %s96 = sphi 0, %s98
      %s99 = sphi 0, %s96
      %s100 = sphi 0, %s99
      %s116 = sphi 0, %s100
      %s122 = sphi 0, %s124
      %s125 = sphi 0, %s122
      %s126 = sphi 0, %s125
      %s142 = sphi 0, %s126
      %s146 = sphi 0, %s146
      %s148 = sphi 0, %s146
      %s149 = sphi 0, %s148
      %s163 = sphi 0, %s149
      %s167 = sphi 0, %s167
      %s169 = sphi 0, %s167
      %s170 = sphi 0, %s169
      %s184 = sphi 0, %s170
      %s188 = sphi 0, %s188
      %s190 = sphi 0, %s188
      %s191 = sphi 0, %s190
      %s205 = sphi 0, %s191
      %s211 = sphi 0, %s213
      %s214 = sphi 0, %s211
      %s215 = sphi 0, %s214
      %s231 = sphi 0, %s215
    $region4: #{_lambda_.19} parent=1 // loop_header_branch
      %25 = sbr.rel (%p23) target = $region8
    $region5: #{_lambda_.19} parent=1 // loop_body
      %s27 = ssub.s32 %s22, 1
      %s28 = ssub.s32 %s22, 2
      %s35 = sadd.s32 1, %s30
      %p36 = scmp.ge.s32.totalorder %s35, 1
      %s37 = scalar_select %p36, 0, %s35
      %s38 = sadd.s32 1, %s29
      %s39 = scalar_select %p36, %s38, %s29
      %p40 = scmp.ge.s32.totalorder %s39, 2
      %s41 = scalar_select %p40, 0, %s39
      %s42 = ssub.s32 %s29, %s41
      %p43 = scmp.eq.s32.totalorder %s42, 0
      %s45 = sadd.s32 %s44, 1
      %s46 = scalar_select %p43, %s44, %s45
      %p49 = pneg %p43
      %p50 = scmp.eq.s32.totalorder %s22, 1
      %p51 = por %p49, %p50
      %p52 = scmp.ne.s32.totalorder %s44, %s47
      %p53 = scmp.eq.s32.totalorder %s22, 0
      %p54 = por %p52, %p53
      %p55 = scmp.ne.s32.totalorder %s44, %s47
      %p56 = scmp.eq.s32.totalorder %s27, 1
      %p57 = por %p55, %p56
      %p58 = scmp.ne.s32.totalorder %s47, %s48
      %p59 = scmp.eq.s32.totalorder %s27, 0
      %p60 = por %p58, %p59
      %p61 = scmp.ne.s32.totalorder %s47, %s48
      %p62 = scmp.eq.s32.totalorder %s28, 1
      %p63 = por %p61, %p62
      %p65 = scmp.ne.s32.totalorder %s48, %s64
      %p66 = scmp.eq.s32.totalorder %s28, 0
      %p67 = por %p65, %p66
      %s68 = ssub.s32 %s30, %s37
      %p69 = scmp.eq.s32.totalorder %s68, 0
      %s71 = sadd.s32 %s70, 1
      %s72 = scalar_select %p69, %s70, %s71
      %p75 = pneg %p69
      %p76 = scmp.eq.s32.totalorder %s22, 1
      %p77 = por %p75, %p76
      %p78 = scmp.ne.s32.totalorder %s70, %s73
      %p79 = scmp.eq.s32.totalorder %s22, 0
      %p80 = por %p78, %p79
      %p81 = scmp.ne.s32.totalorder %s70, %s73
      %p82 = scmp.eq.s32.totalorder %s27, 1
      %p83 = por %p81, %p82
      %p84 = scmp.ne.s32.totalorder %s73, %s74
      %p85 = scmp.eq.s32.totalorder %s27, 0
      %p86 = por %p84, %p85
      %p87 = scmp.ne.s32.totalorder %s73, %s74
      %p88 = scmp.eq.s32.totalorder %s28, 1
      %p89 = por %p87, %p88
      %p91 = scmp.ne.s32.totalorder %s74, %s90
      %p92 = scmp.eq.s32.totalorder %s28, 0
      %p93 = por %p91, %p92
      %s94 = ssub.s32 %s30, %s37
      %p95 = scmp.eq.s32.totalorder %s94, 0
      %s97 = sadd.s32 %s96, 1
      %s98 = scalar_select %p95, %s96, %s97
      %p101 = pneg %p95
      %p102 = scmp.eq.s32.totalorder %s22, 1
      %p103 = por %p101, %p102
      %p104 = scmp.ne.s32.totalorder %s96, %s99
      %p105 = scmp.eq.s32.totalorder %s22, 0
      %p106 = por %p104, %p105
      %p107 = scmp.ne.s32.totalorder %s96, %s99
      %p108 = scmp.eq.s32.totalorder %s27, 1
      %p109 = por %p107, %p108
      %p110 = scmp.ne.s32.totalorder %s99, %s100
      %p111 = scmp.eq.s32.totalorder %s27, 0
      %p112 = por %p110, %p111
      %p113 = scmp.ne.s32.totalorder %s99, %s100
      %p114 = scmp.eq.s32.totalorder %s28, 1
      %p115 = por %p113, %p114
      %p117 = scmp.ne.s32.totalorder %s100, %s116
      %p118 = scmp.eq.s32.totalorder %s28, 0
      %p119 = por %p117, %p118
      %s120 = ssub.s32 %s30, %s37
      %p121 = scmp.eq.s32.totalorder %s120, 0
      %s123 = sadd.s32 %s122, 1
      %s124 = scalar_select %p121, %s122, %s123
      %p127 = pneg %p121
      %p128 = scmp.eq.s32.totalorder %s22, 1
      %p129 = por %p127, %p128
      %p130 = scmp.ne.s32.totalorder %s122, %s125
      %p131 = scmp.eq.s32.totalorder %s22, 0
      %p132 = por %p130, %p131
      %p133 = scmp.ne.s32.totalorder %s122, %s125
      %p134 = scmp.eq.s32.totalorder %s27, 1
      %p135 = por %p133, %p134
      %p136 = scmp.ne.s32.totalorder %s125, %s126
      %p137 = scmp.eq.s32.totalorder %s27, 0
      %p138 = por %p136, %p137
      %p139 = scmp.ne.s32.totalorder %s125, %s126
      %p140 = scmp.eq.s32.totalorder %s28, 1
      %p141 = por %p139, %p140
      %p143 = scmp.ne.s32.totalorder %s126, %s142
      %p144 = scmp.eq.s32.totalorder %s28, 0
      %p145 = por %p143, %p144
      %s147 = sadd.s32 %s146, 1
      %p150 = scmp.eq.s32.totalorder %s22, 1
      %p151 = scmp.ne.s32.totalorder %s146, %s148
      %p152 = scmp.eq.s32.totalorder %s22, 0
      %p153 = por %p151, %p152
      %p154 = scmp.ne.s32.totalorder %s146, %s148
      %p155 = scmp.eq.s32.totalorder %s27, 1
      %p156 = por %p154, %p155
      %p157 = scmp.ne.s32.totalorder %s148, %s149
      %p158 = scmp.eq.s32.totalorder %s27, 0
      %p159 = por %p157, %p158
      %p160 = scmp.ne.s32.totalorder %s148, %s149
      %p161 = scmp.eq.s32.totalorder %s28, 1
      %p162 = por %p160, %p161
      %p164 = scmp.ne.s32.totalorder %s149, %s163
      %p165 = scmp.eq.s32.totalorder %s28, 0
      %p166 = por %p164, %p165
      %s168 = sadd.s32 %s167, 1
      %p171 = scmp.eq.s32.totalorder %s22, 1
      %p172 = scmp.ne.s32.totalorder %s167, %s169
      %p173 = scmp.eq.s32.totalorder %s22, 0
      %p174 = por %p172, %p173
      %p175 = scmp.ne.s32.totalorder %s167, %s169
      %p176 = scmp.eq.s32.totalorder %s27, 1
      %p177 = por %p175, %p176
      %p178 = scmp.ne.s32.totalorder %s169, %s170
      %p179 = scmp.eq.s32.totalorder %s27, 0
      %p180 = por %p178, %p179
      %p181 = scmp.ne.s32.totalorder %s169, %s170
      %p182 = scmp.eq.s32.totalorder %s28, 1
      %p183 = por %p181, %p182
      %p185 = scmp.ne.s32.totalorder %s170, %s184
      %p186 = scmp.eq.s32.totalorder %s28, 0
      %p187 = por %p185, %p186
      %s189 = sadd.s32 %s188, 1
      %p192 = scmp.eq.s32.totalorder %s22, 1
      %p193 = scmp.ne.s32.totalorder %s188, %s190
      %p194 = scmp.eq.s32.totalorder %s22, 0
      %p195 = por %p193, %p194
      %p196 = scmp.ne.s32.totalorder %s188, %s190
      %p197 = scmp.eq.s32.totalorder %s27, 1
      %p198 = por %p196, %p197
      %p199 = scmp.ne.s32.totalorder %s190, %s191
      %p200 = scmp.eq.s32.totalorder %s27, 0
      %p201 = por %p199, %p200
      %p202 = scmp.ne.s32.totalorder %s190, %s191
      %p203 = scmp.eq.s32.totalorder %s28, 1
      %p204 = por %p202, %p203
      %p206 = scmp.ne.s32.totalorder %s191, %s205
      %p207 = scmp.eq.s32.totalorder %s28, 0
      %p208 = por %p206, %p207
      %s209 = ssub.s32 %s29, %s41
      %p210 = scmp.eq.s32.totalorder %s209, 0
      %s212 = sadd.s32 %s211, 1
      %s213 = scalar_select %p210, %s211, %s212
      %p216 = pneg %p210
      %p217 = scmp.eq.s32.totalorder %s22, 1
      %p218 = por %p216, %p217
      %p219 = scmp.ne.s32.totalorder %s211, %s214
      %p220 = scmp.eq.s32.totalorder %s22, 0
      %p221 = por %p219, %p220
      %p222 = scmp.ne.s32.totalorder %s211, %s214
      %p223 = scmp.eq.s32.totalorder %s27, 1
      %p224 = por %p222, %p223
      %p225 = scmp.ne.s32.totalorder %s214, %s215
      %p226 = scmp.eq.s32.totalorder %s27, 0
      %p227 = por %p225, %p226
      %p228 = scmp.ne.s32.totalorder %s214, %s215
      %p229 = scmp.eq.s32.totalorder %s28, 1
      %p230 = por %p228, %p229
      %p232 = scmp.ne.s32.totalorder %s215, %s231
      %p233 = scmp.eq.s32.totalorder %s28, 0
      %p234 = por %p232, %p233
      %p235 = scmp.le.s32.totalorder 1, %s22
      %p236 = scmp.lt.s32.totalorder %s22, 3
      %p237 = pnand %p235, %p236
      %p238 = pneg %p237
      // Predicated region
      $region9: #{_lambda_.19} parent=5 // pred_check
        _
      $region10: #{_lambda_.19} parent=5 // pred_check_branch
        %240 = sbr.rel (%p237) target = $region12
      $region11: #{_lambda_.19} parent=5 // pred_region
        %s241 = ssub.s32 %s22, 1
        // Predicated region
        $region13: #{_lambda_.19} parent=11 // pred_check
          %p242 = pneg %p86
        $region14: #{_lambda_.19} parent=11 // pred_check_branch
          %244 = sbr.rel (%p242) target = $region16
        $region15: #{_lambda_.19} parent=11 // pred_region
          %s246 = ssub.s32 256, 256
          %247 = vsyncadd [#allocation7], %s246
          %s248 = smul.addr %s32, 64
          %s249 = scalar_lea.hbm %s1, %s248
          %s250 = sshll.u32 [#allocation6], 4
          %s251 = int_to_ptr.vmem [resolvable:$true] %s250
          %256 = dma.hbm_to_vmem [thread:$0]  %s249, 256, %s251, [#allocation7], 64, 64, 4
        $region16: #{_lambda_.19} parent=11 // pred_fallthru
          _
        // Predicated region
        $region17: #{_lambda_.19} parent=11 // pred_check
          %p257 = pneg %p112
        $region18: #{_lambda_.19} parent=11 // pred_check_branch
          %259 = sbr.rel (%p257) target = $region20
        $region19: #{_lambda_.19} parent=11 // pred_region
          %s261 = ssub.s32 16, 16
          %262 = vsyncadd [#allocation7], %s261
          %s263 = smul.addr %s32, 16
          %s264 = scalar_lea.hbm %s2, %s263
          %s266 = sshll.u32 [#allocation8], 4
          %s267 = int_to_ptr.vmem [resolvable:$true] %s266
          %269 = dma.hbm_to_vmem [thread:$0]  %s264, 16, %s267, [#allocation7]
        $region20: #{_lambda_.19} parent=11 // pred_fallthru
          _
        // Predicated region
        $region21: #{_lambda_.19} parent=11 // pred_check
          %p270 = pneg %p138
        $region22: #{_lambda_.19} parent=11 // pred_check_branch
          %272 = sbr.rel (%p270) target = $region24
        $region23: #{_lambda_.19} parent=11 // pred_region
          %s273 = smul.u32 8, %s32
          %s275 = ssub.s32 512, 512
          %276 = vsyncadd [#allocation10], %s275
          %s277 = smul.addr %s273, 64
          %s278 = scalar_lea.hbm %s3, %s277
          %s279 = sshll.u32 [#allocation9], 4
          %s280 = int_to_ptr.vmem [resolvable:$true] %s279
          %285 = dma.hbm_to_vmem [thread:$0]  %s278, 512, %s280, [#allocation10], 64, 64, 4
        $region24: #{_lambda_.19} parent=11 // pred_fallthru
          _
        // Predicated region
        $region25: #{_lambda_.19} parent=11 // pred_check
          %p286 = pneg %p159
        $region26: #{_lambda_.19} parent=11 // pred_check_branch
          %288 = sbr.rel (%p286) target = $region28
        $region27: #{_lambda_.19} parent=11 // pred_region
          %s290 = ssub.s32 16, 16
          %291 = vsyncadd [#allocation10], %s290
          %s293 = sshll.u32 [#allocation11], 4
          %s294 = int_to_ptr.vmem [resolvable:$true] %s293
          %296 = dma.hbm_to_vmem [thread:$0]  %s4, 16, %s294, [#allocation10]
        $region28: #{_lambda_.19} parent=11 // pred_fallthru
          _
        // Predicated region
        $region29: #{_lambda_.19} parent=11 // pred_check
          %p297 = pneg %p180
        $region30: #{_lambda_.19} parent=11 // pred_check_branch
          %299 = sbr.rel (%p297) target = $region32
        $region31: #{_lambda_.19} parent=11 // pred_region
          %s301 = ssub.s32 16, 16
          %302 = vsyncadd [#allocation13], %s301
          %s304 = sshll.u32 [#allocation12], 4
          %s305 = int_to_ptr.vmem [resolvable:$true] %s304
          %307 = dma.hbm_to_vmem [thread:$0]  %s5, 16, %s305, [#allocation13]
        $region32: #{_lambda_.19} parent=11 // pred_fallthru
          _
        // Predicated region
        $region33: #{_lambda_.19} parent=11 // pred_check
          %p308 = pneg %p201
        $region34: #{_lambda_.19} parent=11 // pred_check_branch
          %310 = sbr.rel (%p308) target = $region36
        $region35: #{_lambda_.19} parent=11 // pred_region
          %s312 = ssub.s32 16, 16
          %313 = vsyncadd [#allocation13], %s312
          %s315 = sshll.u32 [#allocation14], 4
          %s316 = int_to_ptr.vmem [resolvable:$true] %s315
          %318 = dma.hbm_to_vmem [thread:$0]  %s6, 16, %s316, [#allocation13]
        $region36: #{_lambda_.19} parent=11 // pred_fallthru
          _
      $region12: #{_lambda_.19} parent=5 // pred_fallthru
        _
      %p319 = scmp.lt.s32.totalorder %s22, 2
      // Predicated region
      $region37: #{_lambda_.19} parent=5 // pred_check
        %p320 = pneg %p319
      $region38: #{_lambda_.19} parent=5 // pred_check_branch
        %322 = sbr.rel (%p320) target = $region40
      $region39: #{_lambda_.19} parent=5 // pred_region
        // Predicated region
        $region41: #{_lambda_.19} parent=39 // pred_check
          %p323 = pneg %p54
        $region42: #{_lambda_.19} parent=39 // pred_check_branch
          %325 = sbr.rel (%p323) target = $region44
        $region43: #{_lambda_.19} parent=39 // pred_region
          %s326 = sand.u32 %s44, 1
          %s327 = scalar_lea.sflag [#allocation4], %s326
          %s328 = sand.u32 %s44, 1
          %s329 = smul.addr %s328, 4
          %s330 = scalar_lea.vmem [#allocation3], %s329
          %s332 = ssub.s32 64, 64
          %333 = vsyncadd %s327, %s332
          %s334 = smul.addr %s29, 64
          %s335 = scalar_lea.hbm %s0, %s334
          %s337 = sshll.u32 %s330, 4
          %s338 = int_to_ptr.vmem [resolvable:$true] %s337
          %340 = dma.hbm_to_vmem [thread:$0]  %s335, 64, %s338, %s327
        $region44: #{_lambda_.19} parent=39 // pred_fallthru
          _
      $region40: #{_lambda_.19} parent=5 // pred_fallthru
        _
      %p341 = scmp.le.s32.totalorder 1, %s22
      %p342 = scmp.lt.s32.totalorder %s22, 3
      %p343 = pnand %p341, %p342
      %p344 = pneg %p343
      // Predicated region
      $region45: #{_lambda_.19} parent=5 // pred_check
        _
      $region46: #{_lambda_.19} parent=5 // pred_check_branch
        %346 = sbr.rel (%p343) target = $region48
      $region47: #{_lambda_.19} parent=5 // pred_region
        %s347 = ssub.s32 %s22, 1
        %s348 = sand.u32 %s47, 1
        %s349 = scalar_lea.sflag [#allocation4], %s348
        %s350 = sand.u32 %s47, 1
        %s351 = smul.addr %s350, 4
        %s352 = scalar_lea.vmem [#allocation3], %s351
        // Predicated region
        $region49: #{_lambda_.19} parent=47 // pred_check
          %p353 = pneg %p60
        $region50: #{_lambda_.19} parent=47 // pred_check_branch
          %355 = sbr.rel (%p353) target = $region52
        $region51: #{_lambda_.19} parent=47 // pred_region
          %356 = dma.done %s349, 64
        $region52: #{_lambda_.19} parent=47 // pred_fallthru
          _
        // Predicated region
        $region53: #{_lambda_.19} parent=47 // pred_check
          %p357 = pneg %p86
        $region54: #{_lambda_.19} parent=47 // pred_check_branch
          %359 = sbr.rel (%p357) target = $region56
        $region55: #{_lambda_.19} parent=47 // pred_region
          %360 = dma.done [#allocation7], 256
        $region56: #{_lambda_.19} parent=47 // pred_fallthru
          _
        // Predicated region
        $region57: #{_lambda_.19} parent=47 // pred_check
          %p361 = pneg %p112
        $region58: #{_lambda_.19} parent=47 // pred_check_branch
          %363 = sbr.rel (%p361) target = $region60
        $region59: #{_lambda_.19} parent=47 // pred_region
          %364 = dma.done [#allocation7], 16
        $region60: #{_lambda_.19} parent=47 // pred_fallthru
          _
        // Predicated region
        $region61: #{_lambda_.19} parent=47 // pred_check
          %p365 = pneg %p138
        $region62: #{_lambda_.19} parent=47 // pred_check_branch
          %367 = sbr.rel (%p365) target = $region64
        $region63: #{_lambda_.19} parent=47 // pred_region
          %368 = dma.done [#allocation10], 512
        $region64: #{_lambda_.19} parent=47 // pred_fallthru
          _
        // Predicated region
        $region65: #{_lambda_.19} parent=47 // pred_check
          %p369 = pneg %p159
        $region66: #{_lambda_.19} parent=47 // pred_check_branch
          %371 = sbr.rel (%p369) target = $region68
        $region67: #{_lambda_.19} parent=47 // pred_region
          %372 = dma.done [#allocation10], 16
        $region68: #{_lambda_.19} parent=47 // pred_fallthru
          _
        // Predicated region
        $region69: #{_lambda_.19} parent=47 // pred_check
          %p373 = pneg %p180
        $region70: #{_lambda_.19} parent=47 // pred_check_branch
          %375 = sbr.rel (%p373) target = $region72
        $region71: #{_lambda_.19} parent=47 // pred_region
          %376 = dma.done [#allocation13], 16
        $region72: #{_lambda_.19} parent=47 // pred_fallthru
          _
        // Predicated region
        $region73: #{_lambda_.19} parent=47 // pred_check
          %p377 = pneg %p201
        $region74: #{_lambda_.19} parent=47 // pred_check_branch
          %379 = sbr.rel (%p377) target = $region76
        $region75: #{_lambda_.19} parent=47 // pred_region
          %380 = dma.done [#allocation13], 16
        $region76: #{_lambda_.19} parent=47 // pred_fallthru
          _
        %s381 = sand.u32 %s47, 1
        %s382 = scalar_lea.sflag [#allocation4], %s381
        %s383 = sand.u32 %s47, 1
        %s384 = smul.addr %s383, 4
        %s385 = scalar_lea.vmem [#allocation3], %s384
        %p386 = pneg %p60
        %p387 = pneg %p57
        %p388 = pneg %p86
        %p389 = pneg %p83
        %p390 = pneg %p112
        %p391 = pneg %p109
        %p392 = pneg %p138
        %p393 = pneg %p135
        %p394 = pneg %p159
        %p395 = pneg %p156
        %p396 = pneg %p180
        %p397 = pneg %p177
        %p398 = pneg %p201
        %p399 = pneg %p198
        %p400 = pneg %p227
        %p401 = pneg %p224
        %s402 = sand.u32 %s214, 1
        %s403 = scalar_lea.sflag [#allocation5], %s402
        %s404 = sand.u32 %s214, 1
        %s405 = smul.addr %s404, 4
        %s406 = scalar_lea.vmem [#allocation15], %s405
        %s407 = smul.u32 8, %s32
        %p409 = scmp.eq.s32.totalorder %s32, 0
        // Predicated region
        $region77: #{_lambda_.19} parent=47 // pred_check
          %p410 = pneg %p409
        $region78: #{_lambda_.19} parent=47 // pred_check_branch
          %412 = sbr.rel (%p410) target = $region80
        $region79: #{_lambda_.19} parent=47 // pred_region
          %vm413 = vcmask 261120
          %414 = vst.msk [vmem:[#allocation2] sm:$0xff] %vm413, 0.0
        $region80: #{_lambda_.19} parent=47 // pred_fallthru
          _
        %v415 = vld [vmem:[%s352] sm:$0xf]
        %v416 = vld [vmem:[#allocation6] sm:$0xf]
        %v417 = vld [vmem:[#allocation6 + $0x4] sm:$0xf]
        %v418 = vld [vmem:[#allocation6 + $0x8] sm:$0xf]
        %v419 = vld [vmem:[#allocation6 + $0xc] sm:$0xf]
        %v420 = vld [vmem:[#allocation8] sm:$0x1]
        %v422 = vlaneseq
        %v423 = vshrl.u32 %v422, 7
        %v424 = vsub.s32 0, %v423
        %v425 = vrot.slane %v420, %v424
        %v431 = vunpack.c.l.b16 %v416
        %v432 = vunpack.c.l.b16 %v417
        %v433 = vunpack.c.l.b16 %v418
        %v434 = vunpack.c.l.b16 %v419
        %v435 = vpack.c.b16 %v432, %v431
        %v436 = vpack.c.b16 %v434, %v433
        %vm439 = vcmask 261120
        %v441 = vsel %vm439, %v415, 0
        %443 = vmatprep.subr.bf16.mxu0 0
        %444 = vmatpush1.bf16.msra.mxu0 %v435
        %445 = vmatprep.subr.bf16.mxu0 0
        %446 = vmatpush1.bf16.msra.mxu0 %v436
        %447 = vmatprep.subr.bf16.mxu0 0
        %448 = vmatpush1.bf16.msra.mxu0 0
        %449 = vmatprep.subr.bf16.mxu0 0
        %450 = vmatpush1.bf16.msra.mxu0 0
        %451 = vmatprep.subr.bf16.mxu0 0
        %452 = vmatpush1.bf16.msra.mxu0 0
        %453 = vmatprep.subr.bf16.mxu0 0
        %454 = vmatpush1.bf16.msra.mxu0 0
        %455 = vmatprep.subr.bf16.mxu0 0
        %456 = vmatpush1.bf16.msra.mxu0 0
        %457 = vmatprep.subr.bf16.mxu0 0
        %458 = vmatpush1.bf16.msra.mxu0 0
        %459 = vmatprep.subr.bf16.mxu0 0
        %460 = vmatpush1.bf16.msra.mxu0 0
        %461 = vmatprep.subr.bf16.mxu0 0
        %462 = vmatpush1.bf16.msra.mxu0 0
        %463 = vmatprep.subr.bf16.mxu0 0
        %464 = vmatpush1.bf16.msra.mxu0 0
        %465 = vmatprep.subr.bf16.mxu0 0
        %466 = vmatpush1.bf16.msra.mxu0 0
        %467 = vmatprep.subr.bf16.mxu0 0
        %468 = vmatpush1.bf16.msra.mxu0 0
        %469 = vmatprep.subr.bf16.mxu0 0
        %470 = vmatpush1.bf16.msra.mxu0 0
        %471 = vmatprep.subr.bf16.mxu0 0
        %472 = vmatpush1.bf16.msra.mxu0 0
        %473 = vmatprep.subr.bf16.mxu0 0
        %474 = vmatpush1.bf16.msra.mxu0 0
        %475 = vmatprep.mubr.bf16.mxu0 0
        %476 = vmatmul.mubr.bf16.gmra.mrb[0].mxu0 %v441
        %v477 = vpop.f32.mrb[0].mxu0
        %v478 = vadd.f32 %v425, %v477
        %v479 = vpop.f32.mrb[0].mxu0
        %v480 = vpop.f32.mrb[0].mxu0
        %v481 = vpop.f32.mrb[0].mxu0
        %482 = vdwg.mxu0
        %v483 = vmax.f32 %v478, 0.0
        %v484 = vld [vmem:[#allocation2] sm:$0xff]
        %v485 = vpack.c.bf16 %v483, %v483
        %v486 = vld [vmem:[#allocation9] sm:$0xf]
        %v487 = vld [vmem:[#allocation9 + $0x4] sm:$0xf]
        %v488 = vld [vmem:[#allocation9 + $0x8] sm:$0xf]
        %v489 = vld [vmem:[#allocation9 + $0xc] sm:$0xf]
        %v490 = vld [vmem:[#allocation9 + $0x10] sm:$0xf]
        %v491 = vld [vmem:[#allocation9 + $0x14] sm:$0xf]
        %v492 = vld [vmem:[#allocation9 + $0x18] sm:$0xf]
        %v493 = vld [vmem:[#allocation9 + $0x1c] sm:$0xf]
        %v502 = vunpack.c.l.b16 %v486
        %v503 = vunpack.c.l.b16 %v487
        %v504 = vunpack.c.l.b16 %v488
        %v505 = vunpack.c.l.b16 %v489
        %v506 = vunpack.c.l.b16 %v490
        %v507 = vunpack.c.l.b16 %v491
        %v508 = vunpack.c.l.b16 %v492
        %v509 = vunpack.c.l.b16 %v493
        %v510 = vpack.c.b16 %v503, %v502
        %v511 = vpack.c.b16 %v505, %v504
        %v512 = vpack.c.b16 %v507, %v506
        %v513 = vpack.c.b16 %v509, %v508
        %vm518 = vcmask 523264
        %v520 = vsel %vm518, %v485, 0
        %522 = vmatprep.subr.bf16.mxu0 0
        %523 = vmatpush1.bf16.msra.mxu0 %v510
        %524 = vmatprep.subr.bf16.mxu0 0
        %525 = vmatpush1.bf16.msra.mxu0 %v511
        %526 = vmatprep.subr.bf16.mxu0 0
        %527 = vmatpush1.bf16.msra.mxu0 %v512
        %528 = vmatprep.subr.bf16.mxu0 0
        %529 = vmatpush1.bf16.msra.mxu0 %v513
        %530 = vmatprep.subr.bf16.mxu0 0
        %531 = vmatpush1.bf16.msra.mxu0 0
        %532 = vmatprep.subr.bf16.mxu0 0
        %533 = vmatpush1.bf16.msra.mxu0 0
        %534 = vmatprep.subr.bf16.mxu0 0
        %535 = vmatpush1.bf16.msra.mxu0 0
        %536 = vmatprep.subr.bf16.mxu0 0
        %537 = vmatpush1.bf16.msra.mxu0 0
        %538 = vmatprep.subr.bf16.mxu0 0
        %539 = vmatpush1.bf16.msra.mxu0 0
        %540 = vmatprep.subr.bf16.mxu0 0
        %541 = vmatpush1.bf16.msra.mxu0 0
        %542 = vmatprep.subr.bf16.mxu0 0
        %543 = vmatpush1.bf16.msra.mxu0 0
        %544 = vmatprep.subr.bf16.mxu0 0
        %545 = vmatpush1.bf16.msra.mxu0 0
        %546 = vmatprep.subr.bf16.mxu0 0
        %547 = vmatpush1.bf16.msra.mxu0 0
        %548 = vmatprep.subr.bf16.mxu0 0
        %549 = vmatpush1.bf16.msra.mxu0 0
        %550 = vmatprep.subr.bf16.mxu0 0
        %551 = vmatpush1.bf16.msra.mxu0 0
        %552 = vmatprep.subr.bf16.mxu0 0
        %553 = vmatpush1.bf16.msra.mxu0 0
        %554 = vmatprep.mubr.bf16.mxu0 0
        %555 = vmatmul.mubr.bf16.gmra.mrb[0].mxu0 %v520
        %v556 = vpop.f32.mrb[0].mxu0
        %v557 = vadd.f32 0.0, %v556
        %v558 = vpop.f32.mrb[0].mxu0
        %v559 = vpop.f32.mrb[0].mxu0
        %v560 = vpop.f32.mrb[0].mxu0
        %561 = vdwg.mxu0
        %v562 = vadd.f32 %v484, %v557
        %563 = vst.msk [vmem:[#allocation2] sm:$0xff] %vm439, %v562
        // Predicated region
        $region81: #{_lambda_.19} parent=47 // pred_check
          %p564 = pneg %p409
        $region82: #{_lambda_.19} parent=47 // pred_check_branch
          %566 = sbr.rel (%p564) target = $region84
        $region83: #{_lambda_.19} parent=47 // pred_region
          %v567 = vld [vmem:[#allocation2] sm:$0xff]
          %v568 = vld [vmem:[#allocation11] sm:$0x1]
          %v570 = vlaneseq
          %v571 = vshrl.u32 %v570, 7
          %v572 = vsub.s32 0, %v571
          %v573 = vrot.slane %v568, %v572
          %v575 = vadd.f32 %v567, %v573
          %v576 = vld [vmem:[%s352] sm:$0xf]
          %v577 = vunpack.c.l.bf16 %v576
          %v578 = vadd.f32 %v575, %v577
          %v579 = vsel %vm439, %v578, 0.0
          %580 = vadd.xlane.f32.xlu0 %v579
          %v581 = vpop.xlane.xlu0 %580
          %v582 = vrcp.pop 32.0
          %v583 = vmul.f32 %v581, %v582
          %v584 = vsub.f32 %v578, %v583
          %v585 = vmul.f32 %v584, %v584
          %v586 = vsel %vm439, %v585, 0.0
          %587 = vadd.xlane.f32.xlu0 %v586
          %v588 = vpop.xlane.xlu0 %587
          %v589 = vmul.f32 %v588, %v582
          %v590 = vadd.f32 %v589, 1e-05
          %v591 = vrsqrt.pop %v590
          %v592 = vmul.f32 %v584, %v591
          %v593 = vld [vmem:[#allocation12] sm:$0x1]
          %v595 = vlaneseq
          %v596 = vshrl.u32 %v595, 7
          %v597 = vsub.s32 0, %v596
          %v598 = vrot.slane %v593, %v597
          %v600 = vmul.f32 %v592, %v598
          %v601 = vld [vmem:[#allocation14] sm:$0x1]
          %v603 = vlaneseq
          %v604 = vshrl.u32 %v603, 7
          %v605 = vsub.s32 0, %v604
          %v606 = vrot.slane %v601, %v605
          %v608 = vadd.f32 %v600, %v606
          %v609 = vpack.c.bf16 %v608, %v608
          %vm610 = vcmask 257024
          %611 = vst.msk [vmem:[%s406] sm:$0xf] %vm610, %v609
        $region84: #{_lambda_.19} parent=47 // pred_fallthru
          _
        %s612 = sand.u32 %s214, 1
        %s613 = scalar_lea.sflag [#allocation5], %s612
        %s614 = sand.u32 %s214, 1
        %s615 = smul.addr %s614, 4
        %s616 = scalar_lea.vmem [#allocation15], %s615
        // Predicated region
        $region85: #{_lambda_.19} parent=47 // pred_check
          %p617 = pneg %p224
        $region86: #{_lambda_.19} parent=47 // pred_check_branch
          %619 = sbr.rel (%p617) target = $region88
        $region87: #{_lambda_.19} parent=47 // pred_region
          %s621 = ssub.s32 64, 64
          %622 = vsyncadd %s613, %s621
          %s623 = smul.addr %s31, 64
          %s624 = scalar_lea.hbm %s7, %s623
          %s626 = sshll.u32 %s616, 4
          %s627 = int_to_ptr.vmem [resolvable:$true] %s626
          %629 = dma.vmem_to_hbm [thread:$0]  %s627, 64, %s624, %s613
        $region88: #{_lambda_.19} parent=47 // pred_fallthru
          _
      $region48: #{_lambda_.19} parent=5 // pred_fallthru
        _
      %p630 = scmp.le.s32.totalorder 2, %s22
      // Predicated region
      $region89: #{_lambda_.19} parent=5 // pred_check
        %p631 = pneg %p630
      $region90: #{_lambda_.19} parent=5 // pred_check_branch
        %633 = sbr.rel (%p631) target = $region92
      $region91: #{_lambda_.19} parent=5 // pred_region
        %s634 = ssub.s32 %s22, 2
        // Predicated region
        $region93: #{_lambda_.19} parent=91 // pred_check
          %p635 = pneg %p230
        $region94: #{_lambda_.19} parent=91 // pred_check_branch
          %637 = sbr.rel (%p635) target = $region96
        $region95: #{_lambda_.19} parent=91 // pred_region
          %s638 = sand.u32 %s215, 1
          %s639 = scalar_lea.sflag [#allocation5], %s638
          %s640 = sand.u32 %s215, 1
          %s641 = smul.addr %s640, 4
          %s642 = scalar_lea.vmem [#allocation15], %s641
          %643 = dma.done %s639, 64
        $region96: #{_lambda_.19} parent=91 // pred_fallthru
          _
      $region92: #{_lambda_.19} parent=5 // pred_fallthru
        _
    $region6: #{_lambda_.19} parent=1 // loop_footer
      %s26 = sadd.s32 1, %s22
    $region7: #{_lambda_.19} parent=1 // loop_footer_branch
      %21 = sbr.rel target = $region3
    $region8: #{_lambda_.19} parent=1 // loop_exit
      _
    %644 = vsyncpa [#allocation4], 1
    %s645 = scalar_lea.sflag [#allocation4], 1
    %646 = vsyncpa %s645, 1
    %647 = vsyncpa [#allocation7], 1
    %648 = vsyncpa [#allocation10], 1
    %649 = vsyncpa [#allocation13], 1
    %650 = vsyncpa [#allocation5], 1
    %s651 = scalar_lea.sflag [#allocation5], 1
    %652 = vsyncpa %s651, 1

// kernel: _lambda_.17
$region0: #{_lambda_.17}
  #allocation0 [shape = 'u32[]', space=smem, size = 0x4, offset = 0x4, fixed_abs, tag = 'smem constant byte address 0x4 - core index']
  #allocation1 [shape = 'u32[144,128]{1,0:T(1,128)}', space=vmem, size = 0x12000, scoped, tag = 'internal scratch']
  %s0 = inlined_call_operand.hbm [shape: bf16[2,8,32], index: 0, kind: input, shape index: {}, may-alias: {0,1}]
  %s1 = inlined_call_operand.hbm [shape: bf16[2,8,32], index: 1, kind: input, shape index: {}, may-alias: {0,1}]
  %s2 = inlined_call_operand.hbm [shape: bf16[32,32], index: 2, kind: input, shape index: {}]
  %s3 = inlined_call_operand.hbm [shape: bf16[32,32], index: 3, kind: input, shape index: {}]
  %s4 = inlined_call_operand.hbm [shape: bf16[32,32], index: 4, kind: input, shape index: {}]
  %s5 = inlined_call_operand.hbm [shape: f32[2,1,8], index: 5, kind: input, shape index: {}]
  %s6 = inlined_call_operand.hbm [shape: bf16[2,8,32], index: 6, kind: output, shape index: {}]
  %s7 = sld [smem:[#allocation0]]
  $region81: #{_lambda_.17} parent=0
    _
  %s9 = ssub.s32 1, %s7
  %s10 = scalar_select 0, %s9, %s7
  $region1: #{_lambda_.17} parent=0
    #allocation2 [shape = 'u8[4096]{0}', space=vmem, size = 0x1000, scoped, tag = 'input window, operand 0']
    #allocation3 [shape = 's32[2]{0}', space=sflag, size = 0x8, scoped, tag = 'scoped memory for _lambda_.17']
    #allocation4 [shape = 's32[2]{0}', space=sflag, size = 0x8, scoped, tag = 'scoped memory for _lambda_.17']
    #allocation5 [shape = 'u8[4096]{0}', space=vmem, size = 0x1000, scoped, tag = 'input window, operand 1']
    #allocation6 [shape = 's32[2]{0}', space=sflag, size = 0x8, scoped, tag = 'scoped memory for _lambda_.17']
    #allocation7 [shape = 'u8[8192]{0}', space=vmem, size = 0x2000, scoped, tag = 'input window, operand 2, single buffered']
    #allocation8 [shape = 'u8[8192]{0}', space=vmem, size = 0x2000, scoped, tag = 'input window, operand 3, single buffered']
    #allocation9 [shape = 's32[1]{0}', space=sflag, size = 0x4, scoped, tag = 'scoped memory for _lambda_.17']
    #allocation10 [shape = 'u8[8192]{0}', space=vmem, size = 0x2000, scoped, tag = 'input window, operand 4, single buffered']
    #allocation11 [shape = 'u8[1024]{0}', space=vmem, size = 0x400, scoped, tag = 'input window, operand 5']
    #allocation12 [shape = 's32[2]{0}', space=sflag, size = 0x8, scoped, tag = 'scoped memory for _lambda_.17']
    #allocation13 [shape = 'u8[4096]{0}', space=vmem, size = 0x1000, scoped, tag = 'output window, operand 0']
    %11 = vsyncpa [#allocation3], 0
    %s12 = scalar_lea.sflag [#allocation3], 1
    %13 = vsyncpa %s12, 0
    %14 = vsyncpa [#allocation6], 0
    %s15 = scalar_lea.sflag [#allocation6], 1
    %16 = vsyncpa %s15, 0
    %17 = vsyncpa [#allocation9], 0
    %18 = vsyncpa [#allocation12], 0
    %s19 = scalar_lea.sflag [#allocation12], 1
    %20 = vsyncpa %s19, 0
    %21 = vsyncpa [#allocation4], 0
    %s22 = scalar_lea.sflag [#allocation4], 1
    %23 = vsyncpa %s22, 0
    loop: start=0, step=1, limit=4
    $region2: #{_lambda_.17} parent=1 // loop_pre_header
      _
    $region3: #{_lambda_.17} parent=1 // loop_header
      %s25 = sphi 0, %s29
      %p26 = scmp.ge.s32.totalorder %s25, 4
      %s35 = sphi 0, %s37
      %s38 = sphi 0, %s35
      %s39 = sphi 0, %s38
      %s55 = sphi 0, %s39
      %s61 = sphi 0, %s63
      %s64 = sphi 0, %s61
      %s65 = sphi 0, %s64
      %s81 = sphi 0, %s65
      %s85 = sphi 0, %s85
      %s87 = sphi 0, %s85
      %s88 = sphi 0, %s87
      %s102 = sphi 0, %s88
      %s106 = sphi 0, %s106
      %s108 = sphi 0, %s106
      %s109 = sphi 0, %s108
      %s123 = sphi 0, %s109
      %s127 = sphi 0, %s127
      %s129 = sphi 0, %s127
      %s130 = sphi 0, %s129
      %s144 = sphi 0, %s130
      %s150 = sphi 0, %s152
      %s153 = sphi 0, %s150
      %s154 = sphi 0, %s153
      %s170 = sphi 0, %s154
      %s176 = sphi 0, %s178
      %s179 = sphi 0, %s176
      %s180 = sphi 0, %s179
      %s196 = sphi 0, %s180
    $region4: #{_lambda_.17} parent=1 // loop_header_branch
      %28 = sbr.rel (%p26) target = $region8
    $region5: #{_lambda_.17} parent=1 // loop_body
      %s30 = ssub.s32 %s25, 1
      %s31 = ssub.s32 %s25, 2
      %s32 = sadd.s32 %s25, 1
      %s33 = ssub.s32 %s25, %s32
      %p34 = scmp.eq.s32.totalorder %s33, 0
      %s36 = sadd.s32 %s35, 1
      %s37 = scalar_select %p34, %s35, %s36
      %p40 = pneg %p34
      %p41 = scmp.eq.s32.totalorder %s25, 1
      %p42 = por %p40, %p41
      %p43 = scmp.ne.s32.totalorder %s35, %s38
      %p44 = scmp.eq.s32.totalorder %s25, 0
      %p45 = por %p43, %p44
      %p46 = scmp.ne.s32.totalorder %s35, %s38
      %p47 = scmp.eq.s32.totalorder %s30, 1
      %p48 = por %p46, %p47
      %p49 = scmp.ne.s32.totalorder %s38, %s39
      %p50 = scmp.eq.s32.totalorder %s30, 0
      %p51 = por %p49, %p50
      %p52 = scmp.ne.s32.totalorder %s38, %s39
      %p53 = scmp.eq.s32.totalorder %s31, 1
      %p54 = por %p52, %p53
      %p56 = scmp.ne.s32.totalorder %s39, %s55
      %p57 = scmp.eq.s32.totalorder %s31, 0
      %p58 = por %p56, %p57
      %s59 = ssub.s32 %s25, %s32
      %p60 = scmp.eq.s32.totalorder %s59, 0
      %s62 = sadd.s32 %s61, 1
      %s63 = scalar_select %p60, %s61, %s62
      %p66 = pneg %p60
      %p67 = scmp.eq.s32.totalorder %s25, 1
      %p68 = por %p66, %p67
      %p69 = scmp.ne.s32.totalorder %s61, %s64
      %p70 = scmp.eq.s32.totalorder %s25, 0
      %p71 = por %p69, %p70
      %p72 = scmp.ne.s32.totalorder %s61, %s64
      %p73 = scmp.eq.s32.totalorder %s30, 1
      %p74 = por %p72, %p73
      %p75 = scmp.ne.s32.totalorder %s64, %s65
      %p76 = scmp.eq.s32.totalorder %s30, 0
      %p77 = por %p75, %p76
      %p78 = scmp.ne.s32.totalorder %s64, %s65
      %p79 = scmp.eq.s32.totalorder %s31, 1
      %p80 = por %p78, %p79
      %p82 = scmp.ne.s32.totalorder %s65, %s81
      %p83 = scmp.eq.s32.totalorder %s31, 0
      %p84 = por %p82, %p83
      %s86 = sadd.s32 %s85, 1
      %p89 = scmp.eq.s32.totalorder %s25, 1
      %p90 = scmp.ne.s32.totalorder %s85, %s87
      %p91 = scmp.eq.s32.totalorder %s25, 0
      %p92 = por %p90, %p91
      %p93 = scmp.ne.s32.totalorder %s85, %s87
      %p94 = scmp.eq.s32.totalorder %s30, 1
      %p95 = por %p93, %p94
      %p96 = scmp.ne.s32.totalorder %s87, %s88
      %p97 = scmp.eq.s32.totalorder %s30, 0
      %p98 = por %p96, %p97
      %p99 = scmp.ne.s32.totalorder %s87, %s88
      %p100 = scmp.eq.s32.totalorder %s31, 1
      %p101 = por %p99, %p100
      %p103 = scmp.ne.s32.totalorder %s88, %s102
      %p104 = scmp.eq.s32.totalorder %s31, 0
      %p105 = por %p103, %p104
      %s107 = sadd.s32 %s106, 1
      %p110 = scmp.eq.s32.totalorder %s25, 1
      %p111 = scmp.ne.s32.totalorder %s106, %s108
      %p112 = scmp.eq.s32.totalorder %s25, 0
      %p113 = por %p111, %p112
      %p114 = scmp.ne.s32.totalorder %s106, %s108
      %p115 = scmp.eq.s32.totalorder %s30, 1
      %p116 = por %p114, %p115
      %p117 = scmp.ne.s32.totalorder %s108, %s109
      %p118 = scmp.eq.s32.totalorder %s30, 0
      %p119 = por %p117, %p118
      %p120 = scmp.ne.s32.totalorder %s108, %s109
      %p121 = scmp.eq.s32.totalorder %s31, 1
      %p122 = por %p120, %p121
      %p124 = scmp.ne.s32.totalorder %s109, %s123
      %p125 = scmp.eq.s32.totalorder %s31, 0
      %p126 = por %p124, %p125
      %s128 = sadd.s32 %s127, 1
      %p131 = scmp.eq.s32.totalorder %s25, 1
      %p132 = scmp.ne.s32.totalorder %s127, %s129
      %p133 = scmp.eq.s32.totalorder %s25, 0
      %p134 = por %p132, %p133
      %p135 = scmp.ne.s32.totalorder %s127, %s129
      %p136 = scmp.eq.s32.totalorder %s30, 1
      %p137 = por %p135, %p136
      %p138 = scmp.ne.s32.totalorder %s129, %s130
      %p139 = scmp.eq.s32.totalorder %s30, 0
      %p140 = por %p138, %p139
      %p141 = scmp.ne.s32.totalorder %s129, %s130
      %p142 = scmp.eq.s32.totalorder %s31, 1
      %p143 = por %p141, %p142
      %p145 = scmp.ne.s32.totalorder %s130, %s144
      %p146 = scmp.eq.s32.totalorder %s31, 0
      %p147 = por %p145, %p146
      %s148 = ssub.s32 %s25, %s32
      %p149 = scmp.eq.s32.totalorder %s148, 0
      %s151 = sadd.s32 %s150, 1
      %s152 = scalar_select %p149, %s150, %s151
      %p155 = pneg %p149
      %p156 = scmp.eq.s32.totalorder %s25, 1
      %p157 = por %p155, %p156
      %p158 = scmp.ne.s32.totalorder %s150, %s153
      %p159 = scmp.eq.s32.totalorder %s25, 0
      %p160 = por %p158, %p159
      %p161 = scmp.ne.s32.totalorder %s150, %s153
      %p162 = scmp.eq.s32.totalorder %s30, 1
      %p163 = por %p161, %p162
      %p164 = scmp.ne.s32.totalorder %s153, %s154
      %p165 = scmp.eq.s32.totalorder %s30, 0
      %p166 = por %p164, %p165
      %p167 = scmp.ne.s32.totalorder %s153, %s154
      %p168 = scmp.eq.s32.totalorder %s31, 1
      %p169 = por %p167, %p168
      %p171 = scmp.ne.s32.totalorder %s154, %s170
      %p172 = scmp.eq.s32.totalorder %s31, 0
      %p173 = por %p171, %p172
      %s174 = ssub.s32 %s25, %s32
      %p175 = scmp.eq.s32.totalorder %s174, 0
      %s177 = sadd.s32 %s176, 1
      %s178 = scalar_select %p175, %s176, %s177
      %p181 = pneg %p175
      %p182 = scmp.eq.s32.totalorder %s25, 1
      %p183 = por %p181, %p182
      %p184 = scmp.ne.s32.totalorder %s176, %s179
      %p185 = scmp.eq.s32.totalorder %s25, 0
      %p186 = por %p184, %p185
      %p187 = scmp.ne.s32.totalorder %s176, %s179
      %p188 = scmp.eq.s32.totalorder %s30, 1
      %p189 = por %p187, %p188
      %p190 = scmp.ne.s32.totalorder %s179, %s180
      %p191 = scmp.eq.s32.totalorder %s30, 0
      %p192 = por %p190, %p191
      %p193 = scmp.ne.s32.totalorder %s179, %s180
      %p194 = scmp.eq.s32.totalorder %s31, 1
      %p195 = por %p193, %p194
      %p197 = scmp.ne.s32.totalorder %s180, %s196
      %p198 = scmp.eq.s32.totalorder %s31, 0
      %p199 = por %p197, %p198
      %p200 = scmp.le.s32.totalorder 1, %s25
      %p201 = scmp.lt.s32.totalorder %s25, 3
      %p202 = pnand %p200, %p201
      %p203 = pneg %p202
      // Predicated region
      $region9: #{_lambda_.17} parent=5 // pred_check
        _
      $region10: #{_lambda_.17} parent=5 // pred_check_branch
        %205 = sbr.rel (%p202) target = $region12
      $region11: #{_lambda_.17} parent=5 // pred_region
        %s206 = ssub.s32 %s25, 1
        // Predicated region
        $region13: #{_lambda_.17} parent=11 // pred_check
          %p207 = pneg %p98
        $region14: #{_lambda_.17} parent=11 // pred_check_branch
          %209 = sbr.rel (%p207) target = $region16
        $region15: #{_lambda_.17} parent=11 // pred_region
          %s211 = ssub.s32 256, 256
          %212 = vsyncadd [#allocation6], %s211
          %s213 = sshll.u32 [#allocation7], 4
          %s214 = int_to_ptr.vmem [resolvable:$true] %s213
          %219 = dma.hbm_to_vmem [thread:$0]  %s2, 256, %s214, [#allocation6], 64, 64, 4
        $region16: #{_lambda_.17} parent=11 // pred_fallthru
          _
        // Predicated region
        $region17: #{_lambda_.17} parent=11 // pred_check
          %p220 = pneg %p119
        $region18: #{_lambda_.17} parent=11 // pred_check_branch
          %222 = sbr.rel (%p220) target = $region20
        $region19: #{_lambda_.17} parent=11 // pred_region
          %s224 = ssub.s32 256, 256
          %225 = vsyncadd [#allocation9], %s224
          %s226 = sshll.u32 [#allocation8], 4
          %s227 = int_to_ptr.vmem [resolvable:$true] %s226
          %232 = dma.hbm_to_vmem [thread:$0]  %s3, 256, %s227, [#allocation9], 64, 64, 4
        $region20: #{_lambda_.17} parent=11 // pred_fallthru
          _
        // Predicated region
        $region21: #{_lambda_.17} parent=11 // pred_check
          %p233 = pneg %p140
        $region22: #{_lambda_.17} parent=11 // pred_check_branch
          %235 = sbr.rel (%p233) target = $region24
        $region23: #{_lambda_.17} parent=11 // pred_region
          %s237 = ssub.s32 256, 256
          %238 = vsyncadd [#allocation9], %s237
          %s239 = sshll.u32 [#allocation10], 4
          %s240 = int_to_ptr.vmem [resolvable:$true] %s239
          %245 = dma.hbm_to_vmem [thread:$0]  %s4, 256, %s240, [#allocation9], 64, 64, 4
        $region24: #{_lambda_.17} parent=11 // pred_fallthru
          _
      $region12: #{_lambda_.17} parent=5 // pred_fallthru
        _
      %p246 = scmp.lt.s32.totalorder %s25, 2
      // Predicated region
      $region25: #{_lambda_.17} parent=5 // pred_check
        %p247 = pneg %p246
      $region26: #{_lambda_.17} parent=5 // pred_check_branch
        %249 = sbr.rel (%p247) target = $region28
      $region27: #{_lambda_.17} parent=5 // pred_region
        // Predicated region
        $region29: #{_lambda_.17} parent=27 // pred_check
          %p250 = pneg %p45
        $region30: #{_lambda_.17} parent=27 // pred_check_branch
          %252 = sbr.rel (%p250) target = $region32
        $region31: #{_lambda_.17} parent=27 // pred_region
          %s253 = sand.u32 %s35, 1
          %s254 = scalar_lea.sflag [#allocation3], %s253
          %s255 = sand.u32 %s35, 1
          %s256 = smul.addr %s255, 4
          %s257 = scalar_lea.vmem [#allocation2], %s256
          %s259 = ssub.s32 64, 64
          %260 = vsyncadd %s254, %s259
          %s261 = smul.addr %s25, 64
          %s262 = scalar_lea.hbm %s0, %s261
          %s264 = sshll.u32 %s257, 4
          %s265 = int_to_ptr.vmem [resolvable:$true] %s264
          %267 = dma.hbm_to_vmem [thread:$0]  %s262, 64, %s265, %s254
        $region32: #{_lambda_.17} parent=27 // pred_fallthru
          _
        // Predicated region
        $region33: #{_lambda_.17} parent=27 // pred_check
          %p268 = pneg %p71
        $region34: #{_lambda_.17} parent=27 // pred_check_branch
          %270 = sbr.rel (%p268) target = $region36
        $region35: #{_lambda_.17} parent=27 // pred_region
          %s271 = sand.u32 %s25, 1
          %s272 = scalar_lea.sflag [#allocation6], %s271
          %s273 = sand.u32 %s61, 1
          %s274 = smul.addr %s273, 4
          %s275 = scalar_lea.vmem [#allocation5], %s274
          %s277 = ssub.s32 64, 64
          %278 = vsyncadd %s272, %s277
          %s279 = smul.addr %s25, 64
          %s280 = scalar_lea.hbm %s1, %s279
          %s282 = sshll.u32 %s275, 4
          %s283 = int_to_ptr.vmem [resolvable:$true] %s282
          %285 = dma.hbm_to_vmem [thread:$0]  %s280, 64, %s283, %s272
        $region36: #{_lambda_.17} parent=27 // pred_fallthru
          _
        // Predicated region
        $region37: #{_lambda_.17} parent=27 // pred_check
          %p286 = pneg %p160
        $region38: #{_lambda_.17} parent=27 // pred_check_branch
          %288 = sbr.rel (%p286) target = $region40
        $region39: #{_lambda_.17} parent=27 // pred_region
          %s289 = sand.u32 %s150, 1
          %s290 = scalar_lea.sflag [#allocation12], %s289
          %s291 = sand.u32 %s150, 1
          %s292 = scalar_lea.vmem [#allocation11], %s291
          %s294 = ssub.s32 16, 16
          %295 = vsyncadd %s290, %s294
          %s296 = smul.addr %s25, 16
          %s297 = scalar_lea.hbm %s5, %s296
          %s299 = sshll.u32 %s292, 4
          %s300 = int_to_ptr.vmem [resolvable:$true] %s299
          %302 = dma.hbm_to_vmem [thread:$0]  %s297, 16, %s300, %s290
        $region40: #{_lambda_.17} parent=27 // pred_fallthru
          _
      $region28: #{_lambda_.17} parent=5 // pred_fallthru
        _
      %p303 = scmp.le.s32.totalorder 1, %s25
      %p304 = scmp.lt.s32.totalorder %s25, 3
      %p305 = pnand %p303, %p304
      %p306 = pneg %p305
      // Predicated region
      $region41: #{_lambda_.17} parent=5 // pred_check
        _
      $region42: #{_lambda_.17} parent=5 // pred_check_branch
        %308 = sbr.rel (%p305) target = $region44
      $region43: #{_lambda_.17} parent=5 // pred_region
        %s309 = ssub.s32 %s25, 1
        %s310 = sand.u32 %s38, 1
        %s311 = scalar_lea.sflag [#allocation3], %s310
        %s312 = sand.u32 %s38, 1
        %s313 = smul.addr %s312, 4
        %s314 = scalar_lea.vmem [#allocation2], %s313
        // Predicated region
        $region45: #{_lambda_.17} parent=43 // pred_check
          %p315 = pneg %p51
        $region46: #{_lambda_.17} parent=43 // pred_check_branch
          %317 = sbr.rel (%p315) target = $region48
        $region47: #{_lambda_.17} parent=43 // pred_region
          %318 = dma.done %s311, 64
        $region48: #{_lambda_.17} parent=43 // pred_fallthru
          _
        %s319 = sand.u32 %s30, 1
        %s320 = scalar_lea.sflag [#allocation6], %s319
        %s321 = sand.u32 %s64, 1
        %s322 = smul.addr %s321, 4
        %s323 = scalar_lea.vmem [#allocation5], %s322
        // Predicated region
        $region49: #{_lambda_.17} parent=43 // pred_check
          %p324 = pneg %p77
        $region50: #{_lambda_.17} parent=43 // pred_check_branch
          %326 = sbr.rel (%p324) target = $region52
        $region51: #{_lambda_.17} parent=43 // pred_region
          %327 = dma.done %s320, 64
        $region52: #{_lambda_.17} parent=43 // pred_fallthru
          _
        // Predicated region
        $region53: #{_lambda_.17} parent=43 // pred_check
          %p328 = pneg %p98
        $region54: #{_lambda_.17} parent=43 // pred_check_branch
          %330 = sbr.rel (%p328) target = $region56
        $region55: #{_lambda_.17} parent=43 // pred_region
          %331 = dma.done [#allocation6], 256
        $region56: #{_lambda_.17} parent=43 // pred_fallthru
          _
        // Predicated region
        $region57: #{_lambda_.17} parent=43 // pred_check
          %p332 = pneg %p119
        $region58: #{_lambda_.17} parent=43 // pred_check_branch
          %334 = sbr.rel (%p332) target = $region60
        $region59: #{_lambda_.17} parent=43 // pred_region
          %335 = dma.done [#allocation9], 256
        $region60: #{_lambda_.17} parent=43 // pred_fallthru
          _
        // Predicated region
        $region61: #{_lambda_.17} parent=43 // pred_check
          %p336 = pneg %p140
        $region62: #{_lambda_.17} parent=43 // pred_check_branch
          %338 = sbr.rel (%p336) target = $region64
        $region63: #{_lambda_.17} parent=43 // pred_region
          %339 = dma.done [#allocation9], 256
        $region64: #{_lambda_.17} parent=43 // pred_fallthru
          _
        %s340 = sand.u32 %s153, 1
        %s341 = scalar_lea.sflag [#allocation12], %s340
        %s342 = sand.u32 %s153, 1
        %s343 = scalar_lea.vmem [#allocation11], %s342
        // Predicated region
        $region65: #{_lambda_.17} parent=43 // pred_check
          %p344 = pneg %p166
        $region66: #{_lambda_.17} parent=43 // pred_check_branch
          %346 = sbr.rel (%p344) target = $region68
        $region67: #{_lambda_.17} parent=43 // pred_region
          %347 = dma.done %s341, 16
        $region68: #{_lambda_.17} parent=43 // pred_fallthru
          _
        %s348 = sand.u32 %s38, 1
        %s349 = scalar_lea.sflag [#allocation3], %s348
        %s350 = sand.u32 %s38, 1
        %s351 = smul.addr %s350, 4
        %s352 = scalar_lea.vmem [#allocation2], %s351
        %p353 = pneg %p51
        %p354 = pneg %p48
        %s355 = sand.u32 %s30, 1
        %s356 = scalar_lea.sflag [#allocation6], %s355
        %s357 = sand.u32 %s64, 1
        %s358 = smul.addr %s357, 4
        %s359 = scalar_lea.vmem [#allocation5], %s358
        %p360 = pneg %p77
        %p361 = pneg %p74
        %p362 = pneg %p98
        %p363 = pneg %p95
        %p364 = pneg %p119
        %p365 = pneg %p116
        %p366 = pneg %p140
        %p367 = pneg %p137
        %s368 = sand.u32 %s153, 1
        %s369 = scalar_lea.sflag [#allocation12], %s368
        %s370 = sand.u32 %s153, 1
        %s371 = scalar_lea.vmem [#allocation11], %s370
        %p372 = pneg %p166
        %p373 = pneg %p163
        %p374 = pneg %p192
        %p375 = pneg %p189
        %s376 = sand.u32 %s179, 1
        %s377 = scalar_lea.sflag [#allocation4], %s376
        %s378 = sand.u32 %s179, 1
        %s379 = smul.addr %s378, 4
        %s380 = scalar_lea.vmem [#allocation13], %s379
        %v382 = vld [vmem:[%s314] sm:$0xf]
        %v383 = vld [vmem:[%s323] sm:$0xf]
        %v384 = vld [vmem:[#allocation7] sm:$0xf]
        %v385 = vld [vmem:[#allocation7 + $0x4] sm:$0xf]
        %v386 = vld [vmem:[#allocation7 + $0x8] sm:$0xf]
        %v387 = vld [vmem:[#allocation7 + $0xc] sm:$0xf]
        %v392 = vunpack.c.l.b16 %v384
        %v393 = vunpack.c.l.b16 %v385
        %v394 = vunpack.c.l.b16 %v386
        %v395 = vunpack.c.l.b16 %v387
        %v396 = vpack.c.b16 %v393, %v392
        %v397 = vpack.c.b16 %v395, %v394
        %vm400 = vcmask 261120
        %v402 = vsel %vm400, %v382, 0
        %404 = vmatprep.subr.bf16.mxu0 0
        %405 = vmatpush1.bf16.msra.mxu0 %v396
        %406 = vmatprep.subr.bf16.mxu0 0
        %407 = vmatpush1.bf16.msra.mxu0 %v397
        %408 = vmatprep.subr.bf16.mxu0 0
        %409 = vmatpush1.bf16.msra.mxu0 0
        %410 = vmatprep.subr.bf16.mxu0 0
        %411 = vmatpush1.bf16.msra.mxu0 0
        %412 = vmatprep.subr.bf16.mxu0 0
        %413 = vmatpush1.bf16.msra.mxu0 0
        %414 = vmatprep.subr.bf16.mxu0 0
        %415 = vmatpush1.bf16.msra.mxu0 0
        %416 = vmatprep.subr.bf16.mxu0 0
        %417 = vmatpush1.bf16.msra.mxu0 0
        %418 = vmatprep.subr.bf16.mxu0 0
        %419 = vmatpush1.bf16.msra.mxu0 0
        %420 = vmatprep.subr.bf16.mxu0 0
        %421 = vmatpush1.bf16.msra.mxu0 0
        %422 = vmatprep.subr.bf16.mxu0 0
        %423 = vmatpush1.bf16.msra.mxu0 0
        %424 = vmatprep.subr.bf16.mxu0 0
        %425 = vmatpush1.bf16.msra.mxu0 0
        %426 = vmatprep.subr.bf16.mxu0 0
        %427 = vmatpush1.bf16.msra.mxu0 0
        %428 = vmatprep.subr.bf16.mxu0 0
        %429 = vmatpush1.bf16.msra.mxu0 0
        %430 = vmatprep.subr.bf16.mxu0 0
        %431 = vmatpush1.bf16.msra.mxu0 0
        %432 = vmatprep.subr.bf16.mxu0 0
        %433 = vmatpush1.bf16.msra.mxu0 0
        %434 = vmatprep.subr.bf16.mxu0 0
        %435 = vmatpush1.bf16.msra.mxu0 0
        %436 = vmatprep.mubr.bf16.mxu0 0
        %437 = vmatmul.mubr.bf16.gmra.mrb[0].mxu0 %v402
        %v438 = vpop.f32.mrb[0].mxu0
        %v439 = vadd.f32 0.0, %v438
        %v440 = vpop.f32.mrb[0].mxu0
        %v441 = vpop.f32.mrb[0].mxu0
        %v442 = vpop.f32.mrb[0].mxu0
        %443 = vdwg.mxu0
        %v444 = vpack.c.bf16 %v439, %v439
        %v445 = vld [vmem:[#allocation8] sm:$0xf]
        %v446 = vld [vmem:[#allocation8 + $0x4] sm:$0xf]
        %v447 = vld [vmem:[#allocation8 + $0x8] sm:$0xf]
        %v448 = vld [vmem:[#allocation8 + $0xc] sm:$0xf]
        %v453 = vunpack.c.l.b16 %v445
        %v454 = vunpack.c.l.b16 %v446
        %v455 = vunpack.c.l.b16 %v447
        %v456 = vunpack.c.l.b16 %v448
        %v457 = vpack.c.b16 %v454, %v453
        %v458 = vpack.c.b16 %v456, %v455
        %v462 = vsel %vm400, %v383, 0
        %464 = vmatprep.subr.bf16.mxu0 0
        %465 = vmatpush1.bf16.msra.mxu0 %v457
        %466 = vmatprep.subr.bf16.mxu0 0
        %467 = vmatpush1.bf16.msra.mxu0 %v458
        %468 = vmatprep.subr.bf16.mxu0 0
        %469 = vmatpush1.bf16.msra.mxu0 0
        %470 = vmatprep.subr.bf16.mxu0 0
        %471 = vmatpush1.bf16.msra.mxu0 0
        %472 = vmatprep.subr.bf16.mxu0 0
        %473 = vmatpush1.bf16.msra.mxu0 0
        %474 = vmatprep.subr.bf16.mxu0 0
        %475 = vmatpush1.bf16.msra.mxu0 0
        %476 = vmatprep.subr.bf16.mxu0 0
        %477 = vmatpush1.bf16.msra.mxu0 0
        %478 = vmatprep.subr.bf16.mxu0 0
        %479 = vmatpush1.bf16.msra.mxu0 0
        %480 = vmatprep.subr.bf16.mxu0 0
        %481 = vmatpush1.bf16.msra.mxu0 0
        %482 = vmatprep.subr.bf16.mxu0 0
        %483 = vmatpush1.bf16.msra.mxu0 0
        %484 = vmatprep.subr.bf16.mxu0 0
        %485 = vmatpush1.bf16.msra.mxu0 0
        %486 = vmatprep.subr.bf16.mxu0 0
        %487 = vmatpush1.bf16.msra.mxu0 0
        %488 = vmatprep.subr.bf16.mxu0 0
        %489 = vmatpush1.bf16.msra.mxu0 0
        %490 = vmatprep.subr.bf16.mxu0 0
        %491 = vmatpush1.bf16.msra.mxu0 0
        %492 = vmatprep.subr.bf16.mxu0 0
        %493 = vmatpush1.bf16.msra.mxu0 0
        %494 = vmatprep.subr.bf16.mxu0 0
        %495 = vmatpush1.bf16.msra.mxu0 0
        %496 = vmatprep.mubr.bf16.mxu0 0
        %497 = vmatmul.mubr.bf16.gmra.mrb[0].mxu0 %v462
        %v498 = vpop.f32.mrb[0].mxu0
        %v499 = vadd.f32 0.0, %v498
        %v500 = vpop.f32.mrb[0].mxu0
        %v501 = vpop.f32.mrb[0].mxu0
        %v502 = vpop.f32.mrb[0].mxu0
        %503 = vdwg.mxu0
        %v504 = vpack.c.bf16 %v499, %v499
        %v505 = vld [vmem:[#allocation10] sm:$0xf]
        %v506 = vld [vmem:[#allocation10 + $0x4] sm:$0xf]
        %v507 = vld [vmem:[#allocation10 + $0x8] sm:$0xf]
        %v508 = vld [vmem:[#allocation10 + $0xc] sm:$0xf]
        %v513 = vunpack.c.l.b16 %v505
        %v514 = vunpack.c.l.b16 %v506
        %v515 = vunpack.c.l.b16 %v507
        %v516 = vunpack.c.l.b16 %v508
        %v517 = vpack.c.b16 %v514, %v513
        %v518 = vpack.c.b16 %v516, %v515
        %521 = vmatprep.subr.bf16.mxu0 0
        %522 = vmatpush1.bf16.msra.mxu0 %v517
        %523 = vmatprep.subr.bf16.mxu0 0
        %524 = vmatpush1.bf16.msra.mxu0 %v518
        %525 = vmatprep.subr.bf16.mxu0 0
        %526 = vmatpush1.bf16.msra.mxu0 0
        %527 = vmatprep.subr.bf16.mxu0 0
        %528 = vmatpush1.bf16.msra.mxu0 0
        %529 = vmatprep.subr.bf16.mxu0 0
        %530 = vmatpush1.bf16.msra.mxu0 0
        %531 = vmatprep.subr.bf16.mxu0 0
        %532 = vmatpush1.bf16.msra.mxu0 0
        %533 = vmatprep.subr.bf16.mxu0 0
        %534 = vmatpush1.bf16.msra.mxu0 0
        %535 = vmatprep.subr.bf16.mxu0 0
        %536 = vmatpush1.bf16.msra.mxu0 0
        %537 = vmatprep.subr.bf16.mxu0 0
        %538 = vmatpush1.bf16.msra.mxu0 0
        %539 = vmatprep.subr.bf16.mxu0 0
        %540 = vmatpush1.bf16.msra.mxu0 0
        %541 = vmatprep.subr.bf16.mxu0 0
        %542 = vmatpush1.bf16.msra.mxu0 0
        %543 = vmatprep.subr.bf16.mxu0 0
        %544 = vmatpush1.bf16.msra.mxu0 0
        %545 = vmatprep.subr.bf16.mxu0 0
        %546 = vmatpush1.bf16.msra.mxu0 0
        %547 = vmatprep.subr.bf16.mxu0 0
        %548 = vmatpush1.bf16.msra.mxu0 0
        %549 = vmatprep.subr.bf16.mxu0 0
        %550 = vmatpush1.bf16.msra.mxu0 0
        %551 = vmatprep.subr.bf16.mxu0 0
        %552 = vmatpush1.bf16.msra.mxu0 0
        %553 = vmatprep.mubr.bf16.mxu0 0
        %554 = vmatmul.mubr.bf16.gmra.mrb[0].mxu0 %v462
        %v555 = vpop.f32.mrb[0].mxu0
        %v556 = vadd.f32 0.0, %v555
        %v557 = vpop.f32.mrb[0].mxu0
        %v558 = vpop.f32.mrb[0].mxu0
        %v559 = vpop.f32.mrb[0].mxu0
        %560 = vdwg.mxu0
        %v561 = vpack.c.bf16 %v556, %v556
        %v562 = vld [vmem:[%s343] sm:$0x1]
        %v564 = vlaneseq
        %v565 = vshrl.u32 %v564, 7
        %v566 = vsub.s32 0, %v565
        %v567 = vrot.slane %v562, %v566
        %vm569 = vcmask 130048
        %v571 = vsel %vm569, %v444, 0
        %v574 = vsel %vm569, %v504, 0
        %576 = vmatprep.subr.bf16.mxu0 0
        %577 = vmatpush1.bf16.xpose.msra.mxu0 %v574
        %578 = vmatprep.subr.bf16.mxu0 0
        %579 = vmatpush1.bf16.xpose.msra.mxu0 0
        %580 = vmatprep.subr.bf16.mxu0 0
        %581 = vmatpush1.bf16.xpose.msra.mxu0 0
        %582 = vmatprep.subr.bf16.mxu0 0
        %583 = vmatpush1.bf16.xpose.msra.mxu0 0
        %584 = vmatprep.subr.bf16.mxu0 0
        %585 = vmatpush1.bf16.xpose.msra.mxu0 0
        %586 = vmatprep.subr.bf16.mxu0 0
        %587 = vmatpush1.bf16.xpose.msra.mxu0 0
        %588 = vmatprep.subr.bf16.mxu0 0
        %589 = vmatpush1.bf16.xpose.msra.mxu0 0
        %590 = vmatprep.subr.bf16.mxu0 0
        %591 = vmatpush1.bf16.xpose.msra.mxu0 0
        %592 = vmatprep.subr.bf16.mxu0 0
        %593 = vmatpush1.bf16.xpose.msra.mxu0 0
        %594 = vmatprep.subr.bf16.mxu0 0
        %595 = vmatpush1.bf16.xpose.msra.mxu0 0
        %596 = vmatprep.subr.bf16.mxu0 0
        %597 = vmatpush1.bf16.xpose.msra.mxu0 0
        %598 = vmatprep.subr.bf16.mxu0 0
        %599 = vmatpush1.bf16.xpose.msra.mxu0 0
        %600 = vmatprep.subr.bf16.mxu0 0
        %601 = vmatpush1.bf16.xpose.msra.mxu0 0
        %602 = vmatprep.subr.bf16.mxu0 0
        %603 = vmatpush1.bf16.xpose.msra.mxu0 0
        %604 = vmatprep.subr.bf16.mxu0 0
        %605 = vmatpush1.bf16.xpose.msra.mxu0 0
        %606 = vmatprep.subr.bf16.mxu0 0
        %607 = vmatpush1.bf16.xpose.msra.mxu0 0
        %608 = vmatprep.mubr.bf16.mxu0 0
        %609 = vmatmul.mubr.bf16.gmra.mrb[0].mxu0 %v571
        %v610 = vpop.f32.mrb[0].mxu0
        %v611 = vadd.f32 %v567, %v610
        %v612 = vpop.f32.mrb[0].mxu0
        %v613 = vpop.f32.mrb[0].mxu0
        %v614 = vpop.f32.mrb[0].mxu0
        %615 = vdwg.mxu0
        %vm616 = vcmask 64512
        %v617 = vsel %vm616, %v611, -inf
        %618 = vmax.xlane.f32.xlu0 %v617
        %v619 = vpop.xlane.xlu0 %618
        %v620 = vsub.f32 %v611, %v619
        %v621 = vmul.f32 %v620, 1.442695
        %v622 = vpow.pop %v621
        %v623 = vsel %vm616, %v622, 0.0
        %624 = vadd.xlane.f32.xlu0 %v623
        %v625 = vpop.xlane.xlu0 %624
        %v626 = vrcp.pop %v625
        %v627 = vmul.f32 %v622, %v626
        %v628 = vpack.c.bf16 %v627, %v627
        %v630 = vsel %vm616, %v628, 0
        %vm632 = vcmask 1043456
        %v634 = vsel %vm632, %v561, 0
        %636 = vmatprep.subr.bf16.mxu0 0
        %637 = vmatpush1.bf16.msra.mxu0 %v634
        %638 = vmatprep.subr.bf16.mxu0 0
        %639 = vmatpush1.bf16.msra.mxu0 0
        %640 = vmatprep.subr.bf16.mxu0 0
        %641 = vmatpush1.bf16.msra.mxu0 0
        %642 = vmatprep.subr.bf16.mxu0 0
        %643 = vmatpush1.bf16.msra.mxu0 0
        %644 = vmatprep.subr.bf16.mxu0 0
        %645 = vmatpush1.bf16.msra.mxu0 0
        %646 = vmatprep.subr.bf16.mxu0 0
        %647 = vmatpush1.bf16.msra.mxu0 0
        %648 = vmatprep.subr.bf16.mxu0 0
        %649 = vmatpush1.bf16.msra.mxu0 0
        %650 = vmatprep.subr.bf16.mxu0 0
        %651 = vmatpush1.bf16.msra.mxu0 0
        %652 = vmatprep.subr.bf16.mxu0 0
        %653 = vmatpush1.bf16.msra.mxu0 0
        %654 = vmatprep.subr.bf16.mxu0 0
        %655 = vmatpush1.bf16.msra.mxu0 0
        %656 = vmatprep.subr.bf16.mxu0 0
        %657 = vmatpush1.bf16.msra.mxu0 0
        %658 = vmatprep.subr.bf16.mxu0 0
        %659 = vmatpush1.bf16.msra.mxu0 0
        %660 = vmatprep.subr.bf16.mxu0 0
        %661 = vmatpush1.bf16.msra.mxu0 0
        %662 = vmatprep.subr.bf16.mxu0 0
        %663 = vmatpush1.bf16.msra.mxu0 0
        %664 = vmatprep.subr.bf16.mxu0 0
        %665 = vmatpush1.bf16.msra.mxu0 0
        %666 = vmatprep.subr.bf16.mxu0 0
        %667 = vmatpush1.bf16.msra.mxu0 0
        %668 = vmatprep.mubr.bf16.mxu0 0
        %669 = vmatmul.mubr.bf16.gmra.mrb[0].mxu0 %v630
        %v670 = vpop.f32.mrb[0].mxu0
        %v671 = vadd.f32 0.0, %v670
        %v672 = vpop.f32.mrb[0].mxu0
        %v673 = vpop.f32.mrb[0].mxu0
        %v674 = vpop.f32.mrb[0].mxu0
        %675 = vdwg.mxu0
        %v676 = vpack.c.bf16 %v671, %v671
        %vm677 = vcmask 125952
        %678 = vst.msk [vmem:[%s380] sm:$0xf] %vm677, %v676
        %680 = vrot.lane.b32.xlu0 %v444, 112
        %v681 = vpop.permute.xlu0 %680
        %683 = vrot.lane.b32.xlu0 %v504, 112
        %v684 = vpop.permute.xlu0 %683
        %v686 = vsel %vm569, %v681, 0
        %v689 = vsel %vm569, %v684, 0
        %691 = vmatprep.subr.bf16.mxu0 0
        %692 = vmatpush1.bf16.xpose.msra.mxu0 %v689
        %693 = vmatprep.subr.bf16.mxu0 0
        %694 = vmatpush1.bf16.xpose.msra.mxu0 0
        %695 = vmatprep.subr.bf16.mxu0 0
        %696 = vmatpush1.bf16.xpose.msra.mxu0 0
        %697 = vmatprep.subr.bf16.mxu0 0
        %698 = vmatpush1.bf16.xpose.msra.mxu0 0
        %699 = vmatprep.subr.bf16.mxu0 0
        %700 = vmatpush1.bf16.xpose.msra.mxu0 0
        %701 = vmatprep.subr.bf16.mxu0 0
        %702 = vmatpush1.bf16.xpose.msra.mxu0 0
        %703 = vmatprep.subr.bf16.mxu0 0
        %704 = vmatpush1.bf16.xpose.msra.mxu0 0
        %705 = vmatprep.subr.bf16.mxu0 0
        %706 = vmatpush1.bf16.xpose.msra.mxu0 0
        %707 = vmatprep.subr.bf16.mxu0 0
        %708 = vmatpush1.bf16.xpose.msra.mxu0 0
        %709 = vmatprep.subr.bf16.mxu0 0
        %710 = vmatpush1.bf16.xpose.msra.mxu0 0
        %711 = vmatprep.subr.bf16.mxu0 0
        %712 = vmatpush1.bf16.xpose.msra.mxu0 0
        %713 = vmatprep.subr.bf16.mxu0 0
        %714 = vmatpush1.bf16.xpose.msra.mxu0 0
        %715 = vmatprep.subr.bf16.mxu0 0
        %716 = vmatpush1.bf16.xpose.msra.mxu0 0
        %717 = vmatprep.subr.bf16.mxu0 0
        %718 = vmatpush1.bf16.xpose.msra.mxu0 0
        %719 = vmatprep.subr.bf16.mxu0 0
        %720 = vmatpush1.bf16.xpose.msra.mxu0 0
        %721 = vmatprep.subr.bf16.mxu0 0
        %722 = vmatpush1.bf16.xpose.msra.mxu0 0
        %723 = vmatprep.mubr.bf16.mxu0 0
        %724 = vmatmul.mubr.bf16.gmra.mrb[0].mxu0 %v686
        %v725 = vpop.f32.mrb[0].mxu0
        %v726 = vadd.f32 %v567, %v725
        %v727 = vpop.f32.mrb[0].mxu0
        %v728 = vpop.f32.mrb[0].mxu0
        %v729 = vpop.f32.mrb[0].mxu0
        %730 = vdwg.mxu0
        %v731 = vsel %vm616, %v726, -inf
        %732 = vmax.xlane.f32.xlu0 %v731
        %v733 = vpop.xlane.xlu0 %732
        %v734 = vsub.f32 %v726, %v733
        %v735 = vmul.f32 %v734, 1.442695
        %v736 = vpow.pop %v735
        %v737 = vsel %vm616, %v736, 0.0
        %738 = vadd.xlane.f32.xlu0 %v737
        %v739 = vpop.xlane.xlu0 %738
        %v740 = vrcp.pop %v739
        %v741 = vmul.f32 %v736, %v740
        %v742 = vpack.c.bf16 %v741, %v741
        %744 = vrot.lane.b32.xlu0 %v561, 112
        %v745 = vpop.permute.xlu0 %744
        %v747 = vsel %vm616, %v742, 0
        %v750 = vsel %vm632, %v745, 0
        %752 = vmatprep.subr.bf16.mxu0 0
        %753 = vmatpush1.bf16.msra.mxu0 %v750
        %754 = vmatprep.subr.bf16.mxu0 0
        %755 = vmatpush1.bf16.msra.mxu0 0
        %756 = vmatprep.subr.bf16.mxu0 0
        %757 = vmatpush1.bf16.msra.mxu0 0
        %758 = vmatprep.subr.bf16.mxu0 0
        %759 = vmatpush1.bf16.msra.mxu0 0
        %760 = vmatprep.subr.bf16.mxu0 0
        %761 = vmatpush1.bf16.msra.mxu0 0
        %762 = vmatprep.subr.bf16.mxu0 0
        %763 = vmatpush1.bf16.msra.mxu0 0
        %764 = vmatprep.subr.bf16.mxu0 0
        %765 = vmatpush1.bf16.msra.mxu0 0
        %766 = vmatprep.subr.bf16.mxu0 0
        %767 = vmatpush1.bf16.msra.mxu0 0
        %768 = vmatprep.subr.bf16.mxu0 0
        %769 = vmatpush1.bf16.msra.mxu0 0
        %770 = vmatprep.subr.bf16.mxu0 0
        %771 = vmatpush1.bf16.msra.mxu0 0
        %772 = vmatprep.subr.bf16.mxu0 0
        %773 = vmatpush1.bf16.msra.mxu0 0
        %774 = vmatprep.subr.bf16.mxu0 0
        %775 = vmatpush1.bf16.msra.mxu0 0
        %776 = vmatprep.subr.bf16.mxu0 0
        %777 = vmatpush1.bf16.msra.mxu0 0
        %778 = vmatprep.subr.bf16.mxu0 0
        %779 = vmatpush1.bf16.msra.mxu0 0
        %780 = vmatprep.subr.bf16.mxu0 0
        %781 = vmatpush1.bf16.msra.mxu0 0
        %782 = vmatprep.subr.bf16.mxu0 0
        %783 = vmatpush1.bf16.msra.mxu0 0
        %784 = vmatprep.mubr.bf16.mxu0 0
        %785 = vmatmul.mubr.bf16.gmra.mrb[0].mxu0 %v747
        %v786 = vpop.f32.mrb[0].mxu0
        %v787 = vadd.f32 0.0, %v786
        %v788 = vpop.f32.mrb[0].mxu0
        %v789 = vpop.f32.mrb[0].mxu0
        %v790 = vpop.f32.mrb[0].mxu0
        %791 = vdwg.mxu0
        %v792 = vpack.c.bf16 %v787, %v787
        %v794 = vunpack.c.l.b16 %v792
        %v795 = vpack.c.b16 %v794, %v794
        %796 = vrot.lane.b32.xlu0 %v795, 16
        %v797 = vpop.permute.xlu0 %796
        %vm799 = vcmask 257152
        %800 = vst.msk [vmem:[%s380] sm:$0xf] %vm799, %v797
        %s801 = sand.u32 %s179, 1
        %s802 = scalar_lea.sflag [#allocation4], %s801
        %s803 = sand.u32 %s179, 1
        %s804 = smul.addr %s803, 4
        %s805 = scalar_lea.vmem [#allocation13], %s804
        // Predicated region
        $region69: #{_lambda_.17} parent=43 // pred_check
          %p806 = pneg %p189
        $region70: #{_lambda_.17} parent=43 // pred_check_branch
          %808 = sbr.rel (%p806) target = $region72
        $region71: #{_lambda_.17} parent=43 // pred_region
          %s810 = ssub.s32 64, 64
          %811 = vsyncadd %s802, %s810
          %s812 = smul.addr %s30, 64
          %s813 = scalar_lea.hbm %s6, %s812
          %s815 = sshll.u32 %s805, 4
          %s816 = int_to_ptr.vmem [resolvable:$true] %s815
          %818 = dma.vmem_to_hbm [thread:$0]  %s816, 64, %s813, %s802
        $region72: #{_lambda_.17} parent=43 // pred_fallthru
          _
      $region44: #{_lambda_.17} parent=5 // pred_fallthru
        _
      %p819 = scmp.le.s32.totalorder 2, %s25
      // Predicated region
      $region73: #{_lambda_.17} parent=5 // pred_check
        %p820 = pneg %p819
      $region74: #{_lambda_.17} parent=5 // pred_check_branch
        %822 = sbr.rel (%p820) target = $region76
      $region75: #{_lambda_.17} parent=5 // pred_region
        %s823 = ssub.s32 %s25, 2
        // Predicated region
        $region77: #{_lambda_.17} parent=75 // pred_check
          %p824 = pneg %p195
        $region78: #{_lambda_.17} parent=75 // pred_check_branch
          %826 = sbr.rel (%p824) target = $region80
        $region79: #{_lambda_.17} parent=75 // pred_region
          %s827 = sand.u32 %s180, 1
          %s828 = scalar_lea.sflag [#allocation4], %s827
          %s829 = sand.u32 %s180, 1
          %s830 = smul.addr %s829, 4
          %s831 = scalar_lea.vmem [#allocation13], %s830
          %832 = dma.done %s828, 64
        $region80: #{_lambda_.17} parent=75 // pred_fallthru
          _
      $region76: #{_lambda_.17} parent=5 // pred_fallthru
        _
    $region6: #{_lambda_.17} parent=1 // loop_footer
      %s29 = sadd.s32 1, %s25
    $region7: #{_lambda_.17} parent=1 // loop_footer_branch
      %24 = sbr.rel target = $region3
    $region8: #{_lambda_.17} parent=1 // loop_exit
      _
    %833 = vsyncpa [#allocation3], 1
    %s834 = scalar_lea.sflag [#allocation3], 1
    %835 = vsyncpa %s834, 1
    %836 = vsyncpa [#allocation6], 1
    %s837 = scalar_lea.sflag [#allocation6], 1
    %838 = vsyncpa %s837, 1
    %839 = vsyncpa [#allocation9], 1
    %840 = vsyncpa [#allocation12], 1
    %s841 = scalar_lea.sflag [#allocation12], 1
    %842 = vsyncpa %s841, 1
    %843 = vsyncpa [#allocation4], 1
    %s844 = scalar_lea.sflag [#allocation4], 1
    %845 = vsyncpa %s844, 1

// kernel: _lambda_.23
$region0: #{_lambda_.23}
  #allocation0 [shape = 'u32[]', space=smem, size = 0x4, offset = 0x4, fixed_abs, tag = 'smem constant byte address 0x4 - core index']
  #allocation1 [shape = 'u32[144,128]{1,0:T(1,128)}', space=vmem, size = 0x12000, scoped, tag = 'internal scratch']
  %s0 = inlined_call_operand.hbm [shape: bf16[2,8,32], index: 0, kind: input, shape index: {}, may-alias: {0,1}]
  %s1 = inlined_call_operand.hbm [shape: bf16[2,8,32], index: 1, kind: input, shape index: {}, may-alias: {0,1}]
  %s2 = inlined_call_operand.hbm [shape: bf16[32,32], index: 2, kind: input, shape index: {}]
  %s3 = inlined_call_operand.hbm [shape: bf16[32,32], index: 3, kind: input, shape index: {}]
  %s4 = inlined_call_operand.hbm [shape: bf16[32,32], index: 4, kind: input, shape index: {}]
  %s5 = inlined_call_operand.hbm [shape: f32[2,1,8], index: 5, kind: input, shape index: {}]
  %s6 = inlined_call_operand.hbm [shape: bf16[2,8,32], index: 6, kind: output, shape index: {}]
  %s7 = sld [smem:[#allocation0]]
  $region81: #{_lambda_.23} parent=0
    _
  %s9 = ssub.s32 1, %s7
  %s10 = scalar_select 0, %s9, %s7
  $region1: #{_lambda_.23} parent=0
    #allocation2 [shape = 'u8[4096]{0}', space=vmem, size = 0x1000, scoped, tag = 'input window, operand 0']
    #allocation3 [shape = 's32[2]{0}', space=sflag, size = 0x8, scoped, tag = 'scoped memory for _lambda_.23']
    #allocation4 [shape = 's32[2]{0}', space=sflag, size = 0x8, scoped, tag = 'scoped memory for _lambda_.23']
    #allocation5 [shape = 'u8[4096]{0}', space=vmem, size = 0x1000, scoped, tag = 'input window, operand 1']
    #allocation6 [shape = 's32[2]{0}', space=sflag, size = 0x8, scoped, tag = 'scoped memory for _lambda_.23']
    #allocation7 [shape = 'u8[8192]{0}', space=vmem, size = 0x2000, scoped, tag = 'input window, operand 2, single buffered']
    #allocation8 [shape = 'u8[8192]{0}', space=vmem, size = 0x2000, scoped, tag = 'input window, operand 3, single buffered']
    #allocation9 [shape = 's32[1]{0}', space=sflag, size = 0x4, scoped, tag = 'scoped memory for _lambda_.23']
    #allocation10 [shape = 'u8[8192]{0}', space=vmem, size = 0x2000, scoped, tag = 'input window, operand 4, single buffered']
    #allocation11 [shape = 'u8[1024]{0}', space=vmem, size = 0x400, scoped, tag = 'input window, operand 5']
    #allocation12 [shape = 's32[2]{0}', space=sflag, size = 0x8, scoped, tag = 'scoped memory for _lambda_.23']
    #allocation13 [shape = 'u8[4096]{0}', space=vmem, size = 0x1000, scoped, tag = 'output window, operand 0']
    %11 = vsyncpa [#allocation3], 0
    %s12 = scalar_lea.sflag [#allocation3], 1
    %13 = vsyncpa %s12, 0
    %14 = vsyncpa [#allocation6], 0
    %s15 = scalar_lea.sflag [#allocation6], 1
    %16 = vsyncpa %s15, 0
    %17 = vsyncpa [#allocation9], 0
    %18 = vsyncpa [#allocation12], 0
    %s19 = scalar_lea.sflag [#allocation12], 1
    %20 = vsyncpa %s19, 0
    %21 = vsyncpa [#allocation4], 0
    %s22 = scalar_lea.sflag [#allocation4], 1
    %23 = vsyncpa %s22, 0
    loop: start=0, step=1, limit=4
    $region2: #{_lambda_.23} parent=1 // loop_pre_header
      _
    $region3: #{_lambda_.23} parent=1 // loop_header
      %s25 = sphi 0, %s29
      %p26 = scmp.ge.s32.totalorder %s25, 4
      %s35 = sphi 0, %s37
      %s38 = sphi 0, %s35
      %s39 = sphi 0, %s38
      %s55 = sphi 0, %s39
      %s61 = sphi 0, %s63
      %s64 = sphi 0, %s61
      %s65 = sphi 0, %s64
      %s81 = sphi 0, %s65
      %s85 = sphi 0, %s85
      %s87 = sphi 0, %s85
      %s88 = sphi 0, %s87
      %s102 = sphi 0, %s88
      %s106 = sphi 0, %s106
      %s108 = sphi 0, %s106
      %s109 = sphi 0, %s108
      %s123 = sphi 0, %s109
      %s127 = sphi 0, %s127
      %s129 = sphi 0, %s127
      %s130 = sphi 0, %s129
      %s144 = sphi 0, %s130
      %s150 = sphi 0, %s152
      %s153 = sphi 0, %s150
      %s154 = sphi 0, %s153
      %s170 = sphi 0, %s154
      %s176 = sphi 0, %s178
      %s179 = sphi 0, %s176
      %s180 = sphi 0, %s179
      %s196 = sphi 0, %s180
    $region4: #{_lambda_.23} parent=1 // loop_header_branch
      %28 = sbr.rel (%p26) target = $region8
    $region5: #{_lambda_.23} parent=1 // loop_body
      %s30 = ssub.s32 %s25, 1
      %s31 = ssub.s32 %s25, 2
      %s32 = sadd.s32 %s25, 1
      %s33 = ssub.s32 %s25, %s32
      %p34 = scmp.eq.s32.totalorder %s33, 0
      %s36 = sadd.s32 %s35, 1
      %s37 = scalar_select %p34, %s35, %s36
      %p40 = pneg %p34
      %p41 = scmp.eq.s32.totalorder %s25, 1
      %p42 = por %p40, %p41
      %p43 = scmp.ne.s32.totalorder %s35, %s38
      %p44 = scmp.eq.s32.totalorder %s25, 0
      %p45 = por %p43, %p44
      %p46 = scmp.ne.s32.totalorder %s35, %s38
      %p47 = scmp.eq.s32.totalorder %s30, 1
      %p48 = por %p46, %p47
      %p49 = scmp.ne.s32.totalorder %s38, %s39
      %p50 = scmp.eq.s32.totalorder %s30, 0
      %p51 = por %p49, %p50
      %p52 = scmp.ne.s32.totalorder %s38, %s39
      %p53 = scmp.eq.s32.totalorder %s31, 1
      %p54 = por %p52, %p53
      %p56 = scmp.ne.s32.totalorder %s39, %s55
      %p57 = scmp.eq.s32.totalorder %s31, 0
      %p58 = por %p56, %p57
      %s59 = ssub.s32 %s25, %s32
      %p60 = scmp.eq.s32.totalorder %s59, 0
      %s62 = sadd.s32 %s61, 1
      %s63 = scalar_select %p60, %s61, %s62
      %p66 = pneg %p60
      %p67 = scmp.eq.s32.totalorder %s25, 1
      %p68 = por %p66, %p67
      %p69 = scmp.ne.s32.totalorder %s61, %s64
      %p70 = scmp.eq.s32.totalorder %s25, 0
      %p71 = por %p69, %p70
      %p72 = scmp.ne.s32.totalorder %s61, %s64
      %p73 = scmp.eq.s32.totalorder %s30, 1
      %p74 = por %p72, %p73
      %p75 = scmp.ne.s32.totalorder %s64, %s65
      %p76 = scmp.eq.s32.totalorder %s30, 0
      %p77 = por %p75, %p76
      %p78 = scmp.ne.s32.totalorder %s64, %s65
      %p79 = scmp.eq.s32.totalorder %s31, 1
      %p80 = por %p78, %p79
      %p82 = scmp.ne.s32.totalorder %s65, %s81
      %p83 = scmp.eq.s32.totalorder %s31, 0
      %p84 = por %p82, %p83
      %s86 = sadd.s32 %s85, 1
      %p89 = scmp.eq.s32.totalorder %s25, 1
      %p90 = scmp.ne.s32.totalorder %s85, %s87
      %p91 = scmp.eq.s32.totalorder %s25, 0
      %p92 = por %p90, %p91
      %p93 = scmp.ne.s32.totalorder %s85, %s87
      %p94 = scmp.eq.s32.totalorder %s30, 1
      %p95 = por %p93, %p94
      %p96 = scmp.ne.s32.totalorder %s87, %s88
      %p97 = scmp.eq.s32.totalorder %s30, 0
      %p98 = por %p96, %p97
      %p99 = scmp.ne.s32.totalorder %s87, %s88
      %p100 = scmp.eq.s32.totalorder %s31, 1
      %p101 = por %p99, %p100
      %p103 = scmp.ne.s32.totalorder %s88, %s102
      %p104 = scmp.eq.s32.totalorder %s31, 0
      %p105 = por %p103, %p104
      %s107 = sadd.s32 %s106, 1
      %p110 = scmp.eq.s32.totalorder %s25, 1
      %p111 = scmp.ne.s32.totalorder %s106, %s108
      %p112 = scmp.eq.s32.totalorder %s25, 0
      %p113 = por %p111, %p112
      %p114 = scmp.ne.s32.totalorder %s106, %s108
      %p115 = scmp.eq.s32.totalorder %s30, 1
      %p116 = por %p114, %p115
      %p117 = scmp.ne.s32.totalorder %s108, %s109
      %p118 = scmp.eq.s32.totalorder %s30, 0
      %p119 = por %p117, %p118
      %p120 = scmp.ne.s32.totalorder %s108, %s109
      %p121 = scmp.eq.s32.totalorder %s31, 1
      %p122 = por %p120, %p121
      %p124 = scmp.ne.s32.totalorder %s109, %s123
      %p125 = scmp.eq.s32.totalorder %s31, 0
      %p126 = por %p124, %p125
      %s128 = sadd.s32 %s127, 1
      %p131 = scmp.eq.s32.totalorder %s25, 1
      %p132 = scmp.ne.s32.totalorder %s127, %s129
      %p133 = scmp.eq.s32.totalorder %s25, 0
      %p134 = por %p132, %p133
      %p135 = scmp.ne.s32.totalorder %s127, %s129
      %p136 = scmp.eq.s32.totalorder %s30, 1
      %p137 = por %p135, %p136
      %p138 = scmp.ne.s32.totalorder %s129, %s130
      %p139 = scmp.eq.s32.totalorder %s30, 0
      %p140 = por %p138, %p139
      %p141 = scmp.ne.s32.totalorder %s129, %s130
      %p142 = scmp.eq.s32.totalorder %s31, 1
      %p143 = por %p141, %p142
      %p145 = scmp.ne.s32.totalorder %s130, %s144
      %p146 = scmp.eq.s32.totalorder %s31, 0
      %p147 = por %p145, %p146
      %s148 = ssub.s32 %s25, %s32
      %p149 = scmp.eq.s32.totalorder %s148, 0
      %s151 = sadd.s32 %s150, 1
      %s152 = scalar_select %p149, %s150, %s151
      %p155 = pneg %p149
      %p156 = scmp.eq.s32.totalorder %s25, 1
      %p157 = por %p155, %p156
      %p158 = scmp.ne.s32.totalorder %s150, %s153
      %p159 = scmp.eq.s32.totalorder %s25, 0
      %p160 = por %p158, %p159
      %p161 = scmp.ne.s32.totalorder %s150, %s153
      %p162 = scmp.eq.s32.totalorder %s30, 1
      %p163 = por %p161, %p162
      %p164 = scmp.ne.s32.totalorder %s153, %s154
      %p165 = scmp.eq.s32.totalorder %s30, 0
      %p166 = por %p164, %p165
      %p167 = scmp.ne.s32.totalorder %s153, %s154
      %p168 = scmp.eq.s32.totalorder %s31, 1
      %p169 = por %p167, %p168
      %p171 = scmp.ne.s32.totalorder %s154, %s170
      %p172 = scmp.eq.s32.totalorder %s31, 0
      %p173 = por %p171, %p172
      %s174 = ssub.s32 %s25, %s32
      %p175 = scmp.eq.s32.totalorder %s174, 0
      %s177 = sadd.s32 %s176, 1
      %s178 = scalar_select %p175, %s176, %s177
      %p181 = pneg %p175
      %p182 = scmp.eq.s32.totalorder %s25, 1
      %p183 = por %p181, %p182
      %p184 = scmp.ne.s32.totalorder %s176, %s179
      %p185 = scmp.eq.s32.totalorder %s25, 0
      %p186 = por %p184, %p185
      %p187 = scmp.ne.s32.totalorder %s176, %s179
      %p188 = scmp.eq.s32.totalorder %s30, 1
      %p189 = por %p187, %p188
      %p190 = scmp.ne.s32.totalorder %s179, %s180
      %p191 = scmp.eq.s32.totalorder %s30, 0
      %p192 = por %p190, %p191
      %p193 = scmp.ne.s32.totalorder %s179, %s180
      %p194 = scmp.eq.s32.totalorder %s31, 1
      %p195 = por %p193, %p194
      %p197 = scmp.ne.s32.totalorder %s180, %s196
      %p198 = scmp.eq.s32.totalorder %s31, 0
      %p199 = por %p197, %p198
      %p200 = scmp.le.s32.totalorder 1, %s25
      %p201 = scmp.lt.s32.totalorder %s25, 3
      %p202 = pnand %p200, %p201
      %p203 = pneg %p202
      // Predicated region
      $region9: #{_lambda_.23} parent=5 // pred_check
        _
      $region10: #{_lambda_.23} parent=5 // pred_check_branch
        %205 = sbr.rel (%p202) target = $region12
      $region11: #{_lambda_.23} parent=5 // pred_region
        %s206 = ssub.s32 %s25, 1
        // Predicated region
        $region13: #{_lambda_.23} parent=11 // pred_check
          %p207 = pneg %p98
        $region14: #{_lambda_.23} parent=11 // pred_check_branch
          %209 = sbr.rel (%p207) target = $region16
        $region15: #{_lambda_.23} parent=11 // pred_region
          %s211 = ssub.s32 256, 256
          %212 = vsyncadd [#allocation6], %s211
          %s213 = sshll.u32 [#allocation7], 4
          %s214 = int_to_ptr.vmem [resolvable:$true] %s213
          %219 = dma.hbm_to_vmem [thread:$0]  %s2, 256, %s214, [#allocation6], 64, 64, 4
        $region16: #{_lambda_.23} parent=11 // pred_fallthru
          _
        // Predicated region
        $region17: #{_lambda_.23} parent=11 // pred_check
          %p220 = pneg %p119
        $region18: #{_lambda_.23} parent=11 // pred_check_branch
          %222 = sbr.rel (%p220) target = $region20
        $region19: #{_lambda_.23} parent=11 // pred_region
          %s224 = ssub.s32 256, 256
          %225 = vsyncadd [#allocation9], %s224
          %s226 = sshll.u32 [#allocation8], 4
          %s227 = int_to_ptr.vmem [resolvable:$true] %s226
          %232 = dma.hbm_to_vmem [thread:$0]  %s3, 256, %s227, [#allocation9], 64, 64, 4
        $region20: #{_lambda_.23} parent=11 // pred_fallthru
          _
        // Predicated region
        $region21: #{_lambda_.23} parent=11 // pred_check
          %p233 = pneg %p140
        $region22: #{_lambda_.23} parent=11 // pred_check_branch
          %235 = sbr.rel (%p233) target = $region24
        $region23: #{_lambda_.23} parent=11 // pred_region
          %s237 = ssub.s32 256, 256
          %238 = vsyncadd [#allocation9], %s237
          %s239 = sshll.u32 [#allocation10], 4
          %s240 = int_to_ptr.vmem [resolvable:$true] %s239
          %245 = dma.hbm_to_vmem [thread:$0]  %s4, 256, %s240, [#allocation9], 64, 64, 4
        $region24: #{_lambda_.23} parent=11 // pred_fallthru
          _
      $region12: #{_lambda_.23} parent=5 // pred_fallthru
        _
      %p246 = scmp.lt.s32.totalorder %s25, 2
      // Predicated region
      $region25: #{_lambda_.23} parent=5 // pred_check
        %p247 = pneg %p246
      $region26: #{_lambda_.23} parent=5 // pred_check_branch
        %249 = sbr.rel (%p247) target = $region28
      $region27: #{_lambda_.23} parent=5 // pred_region
        // Predicated region
        $region29: #{_lambda_.23} parent=27 // pred_check
          %p250 = pneg %p45
        $region30: #{_lambda_.23} parent=27 // pred_check_branch
          %252 = sbr.rel (%p250) target = $region32
        $region31: #{_lambda_.23} parent=27 // pred_region
          %s253 = sand.u32 %s35, 1
          %s254 = scalar_lea.sflag [#allocation3], %s253
          %s255 = sand.u32 %s35, 1
          %s256 = smul.addr %s255, 4
          %s257 = scalar_lea.vmem [#allocation2], %s256
          %s259 = ssub.s32 64, 64
          %260 = vsyncadd %s254, %s259
          %s261 = smul.addr %s25, 64
          %s262 = scalar_lea.hbm %s0, %s261
          %s264 = sshll.u32 %s257, 4
          %s265 = int_to_ptr.vmem [resolvable:$true] %s264
          %267 = dma.hbm_to_vmem [thread:$0]  %s262, 64, %s265, %s254
        $region32: #{_lambda_.23} parent=27 // pred_fallthru
          _
        // Predicated region
        $region33: #{_lambda_.23} parent=27 // pred_check
          %p268 = pneg %p71
        $region34: #{_lambda_.23} parent=27 // pred_check_branch
          %270 = sbr.rel (%p268) target = $region36
        $region35: #{_lambda_.23} parent=27 // pred_region
          %s271 = sand.u32 %s25, 1
          %s272 = scalar_lea.sflag [#allocation6], %s271
          %s273 = sand.u32 %s61, 1
          %s274 = smul.addr %s273, 4
          %s275 = scalar_lea.vmem [#allocation5], %s274
          %s277 = ssub.s32 64, 64
          %278 = vsyncadd %s272, %s277
          %s279 = smul.addr %s25, 64
          %s280 = scalar_lea.hbm %s1, %s279
          %s282 = sshll.u32 %s275, 4
          %s283 = int_to_ptr.vmem [resolvable:$true] %s282
          %285 = dma.hbm_to_vmem [thread:$0]  %s280, 64, %s283, %s272
        $region36: #{_lambda_.23} parent=27 // pred_fallthru
          _
        // Predicated region
        $region37: #{_lambda_.23} parent=27 // pred_check
          %p286 = pneg %p160
        $region38: #{_lambda_.23} parent=27 // pred_check_branch
          %288 = sbr.rel (%p286) target = $region40
        $region39: #{_lambda_.23} parent=27 // pred_region
          %s289 = sand.u32 %s150, 1
          %s290 = scalar_lea.sflag [#allocation12], %s289
          %s291 = sand.u32 %s150, 1
          %s292 = scalar_lea.vmem [#allocation11], %s291
          %s294 = ssub.s32 16, 16
          %295 = vsyncadd %s290, %s294
          %s296 = smul.addr %s25, 16
          %s297 = scalar_lea.hbm %s5, %s296
          %s299 = sshll.u32 %s292, 4
          %s300 = int_to_ptr.vmem [resolvable:$true] %s299
          %302 = dma.hbm_to_vmem [thread:$0]  %s297, 16, %s300, %s290
        $region40: #{_lambda_.23} parent=27 // pred_fallthru
          _
      $region28: #{_lambda_.23} parent=5 // pred_fallthru
        _
      %p303 = scmp.le.s32.totalorder 1, %s25
      %p304 = scmp.lt.s32.totalorder %s25, 3
      %p305 = pnand %p303, %p304
      %p306 = pneg %p305
      // Predicated region
      $region41: #{_lambda_.23} parent=5 // pred_check
        _
      $region42: #{_lambda_.23} parent=5 // pred_check_branch
        %308 = sbr.rel (%p305) target = $region44
      $region43: #{_lambda_.23} parent=5 // pred_region
        %s309 = ssub.s32 %s25, 1
        %s310 = sand.u32 %s38, 1
        %s311 = scalar_lea.sflag [#allocation3], %s310
        %s312 = sand.u32 %s38, 1
        %s313 = smul.addr %s312, 4
        %s314 = scalar_lea.vmem [#allocation2], %s313
        // Predicated region
        $region45: #{_lambda_.23} parent=43 // pred_check
          %p315 = pneg %p51
        $region46: #{_lambda_.23} parent=43 // pred_check_branch
          %317 = sbr.rel (%p315) target = $region48
        $region47: #{_lambda_.23} parent=43 // pred_region
          %318 = dma.done %s311, 64
        $region48: #{_lambda_.23} parent=43 // pred_fallthru
          _
        %s319 = sand.u32 %s30, 1
        %s320 = scalar_lea.sflag [#allocation6], %s319
        %s321 = sand.u32 %s64, 1
        %s322 = smul.addr %s321, 4
        %s323 = scalar_lea.vmem [#allocation5], %s322
        // Predicated region
        $region49: #{_lambda_.23} parent=43 // pred_check
          %p324 = pneg %p77
        $region50: #{_lambda_.23} parent=43 // pred_check_branch
          %326 = sbr.rel (%p324) target = $region52
        $region51: #{_lambda_.23} parent=43 // pred_region
          %327 = dma.done %s320, 64
        $region52: #{_lambda_.23} parent=43 // pred_fallthru
          _
        // Predicated region
        $region53: #{_lambda_.23} parent=43 // pred_check
          %p328 = pneg %p98
        $region54: #{_lambda_.23} parent=43 // pred_check_branch
          %330 = sbr.rel (%p328) target = $region56
        $region55: #{_lambda_.23} parent=43 // pred_region
          %331 = dma.done [#allocation6], 256
        $region56: #{_lambda_.23} parent=43 // pred_fallthru
          _
        // Predicated region
        $region57: #{_lambda_.23} parent=43 // pred_check
          %p332 = pneg %p119
        $region58: #{_lambda_.23} parent=43 // pred_check_branch
          %334 = sbr.rel (%p332) target = $region60
        $region59: #{_lambda_.23} parent=43 // pred_region
          %335 = dma.done [#allocation9], 256
        $region60: #{_lambda_.23} parent=43 // pred_fallthru
          _
        // Predicated region
        $region61: #{_lambda_.23} parent=43 // pred_check
          %p336 = pneg %p140
        $region62: #{_lambda_.23} parent=43 // pred_check_branch
          %338 = sbr.rel (%p336) target = $region64
        $region63: #{_lambda_.23} parent=43 // pred_region
          %339 = dma.done [#allocation9], 256
        $region64: #{_lambda_.23} parent=43 // pred_fallthru
          _
        %s340 = sand.u32 %s153, 1
        %s341 = scalar_lea.sflag [#allocation12], %s340
        %s342 = sand.u32 %s153, 1
        %s343 = scalar_lea.vmem [#allocation11], %s342
        // Predicated region
        $region65: #{_lambda_.23} parent=43 // pred_check
          %p344 = pneg %p166
        $region66: #{_lambda_.23} parent=43 // pred_check_branch
          %346 = sbr.rel (%p344) target = $region68
        $region67: #{_lambda_.23} parent=43 // pred_region
          %347 = dma.done %s341, 16
        $region68: #{_lambda_.23} parent=43 // pred_fallthru
          _
        %s348 = sand.u32 %s38, 1
        %s349 = scalar_lea.sflag [#allocation3], %s348
        %s350 = sand.u32 %s38, 1
        %s351 = smul.addr %s350, 4
        %s352 = scalar_lea.vmem [#allocation2], %s351
        %p353 = pneg %p51
        %p354 = pneg %p48
        %s355 = sand.u32 %s30, 1
        %s356 = scalar_lea.sflag [#allocation6], %s355
        %s357 = sand.u32 %s64, 1
        %s358 = smul.addr %s357, 4
        %s359 = scalar_lea.vmem [#allocation5], %s358
        %p360 = pneg %p77
        %p361 = pneg %p74
        %p362 = pneg %p98
        %p363 = pneg %p95
        %p364 = pneg %p119
        %p365 = pneg %p116
        %p366 = pneg %p140
        %p367 = pneg %p137
        %s368 = sand.u32 %s153, 1
        %s369 = scalar_lea.sflag [#allocation12], %s368
        %s370 = sand.u32 %s153, 1
        %s371 = scalar_lea.vmem [#allocation11], %s370
        %p372 = pneg %p166
        %p373 = pneg %p163
        %p374 = pneg %p192
        %p375 = pneg %p189
        %s376 = sand.u32 %s179, 1
        %s377 = scalar_lea.sflag [#allocation4], %s376
        %s378 = sand.u32 %s179, 1
        %s379 = smul.addr %s378, 4
        %s380 = scalar_lea.vmem [#allocation13], %s379
        %v382 = vld [vmem:[%s314] sm:$0xf]
        %v383 = vld [vmem:[%s323] sm:$0xf]
        %v384 = vld [vmem:[#allocation7] sm:$0xf]
        %v385 = vld [vmem:[#allocation7 + $0x4] sm:$0xf]
        %v386 = vld [vmem:[#allocation7 + $0x8] sm:$0xf]
        %v387 = vld [vmem:[#allocation7 + $0xc] sm:$0xf]
        %v392 = vunpack.c.l.b16 %v384
        %v393 = vunpack.c.l.b16 %v385
        %v394 = vunpack.c.l.b16 %v386
        %v395 = vunpack.c.l.b16 %v387
        %v396 = vpack.c.b16 %v393, %v392
        %v397 = vpack.c.b16 %v395, %v394
        %vm400 = vcmask 261120
        %v402 = vsel %vm400, %v382, 0
        %404 = vmatprep.subr.bf16.mxu0 0
        %405 = vmatpush1.bf16.msra.mxu0 %v396
        %406 = vmatprep.subr.bf16.mxu0 0
        %407 = vmatpush1.bf16.msra.mxu0 %v397
        %408 = vmatprep.subr.bf16.mxu0 0
        %409 = vmatpush1.bf16.msra.mxu0 0
        %410 = vmatprep.subr.bf16.mxu0 0
        %411 = vmatpush1.bf16.msra.mxu0 0
        %412 = vmatprep.subr.bf16.mxu0 0
        %413 = vmatpush1.bf16.msra.mxu0 0
        %414 = vmatprep.subr.bf16.mxu0 0
        %415 = vmatpush1.bf16.msra.mxu0 0
        %416 = vmatprep.subr.bf16.mxu0 0
        %417 = vmatpush1.bf16.msra.mxu0 0
        %418 = vmatprep.subr.bf16.mxu0 0
        %419 = vmatpush1.bf16.msra.mxu0 0
        %420 = vmatprep.subr.bf16.mxu0 0
        %421 = vmatpush1.bf16.msra.mxu0 0
        %422 = vmatprep.subr.bf16.mxu0 0
        %423 = vmatpush1.bf16.msra.mxu0 0
        %424 = vmatprep.subr.bf16.mxu0 0
        %425 = vmatpush1.bf16.msra.mxu0 0
        %426 = vmatprep.subr.bf16.mxu0 0
        %427 = vmatpush1.bf16.msra.mxu0 0
        %428 = vmatprep.subr.bf16.mxu0 0
        %429 = vmatpush1.bf16.msra.mxu0 0
        %430 = vmatprep.subr.bf16.mxu0 0
        %431 = vmatpush1.bf16.msra.mxu0 0
        %432 = vmatprep.subr.bf16.mxu0 0
        %433 = vmatpush1.bf16.msra.mxu0 0
        %434 = vmatprep.subr.bf16.mxu0 0
        %435 = vmatpush1.bf16.msra.mxu0 0
        %436 = vmatprep.mubr.bf16.mxu0 0
        %437 = vmatmul.mubr.bf16.gmra.mrb[0].mxu0 %v402
        %v438 = vpop.f32.mrb[0].mxu0
        %v439 = vadd.f32 0.0, %v438
        %v440 = vpop.f32.mrb[0].mxu0
        %v441 = vpop.f32.mrb[0].mxu0
        %v442 = vpop.f32.mrb[0].mxu0
        %443 = vdwg.mxu0
        %v444 = vpack.c.bf16 %v439, %v439
        %v445 = vld [vmem:[#allocation8] sm:$0xf]
        %v446 = vld [vmem:[#allocation8 + $0x4] sm:$0xf]
        %v447 = vld [vmem:[#allocation8 + $0x8] sm:$0xf]
        %v448 = vld [vmem:[#allocation8 + $0xc] sm:$0xf]
        %v453 = vunpack.c.l.b16 %v445
        %v454 = vunpack.c.l.b16 %v446
        %v455 = vunpack.c.l.b16 %v447
        %v456 = vunpack.c.l.b16 %v448
        %v457 = vpack.c.b16 %v454, %v453
        %v458 = vpack.c.b16 %v456, %v455
        %v462 = vsel %vm400, %v383, 0
        %464 = vmatprep.subr.bf16.mxu0 0
        %465 = vmatpush1.bf16.msra.mxu0 %v457
        %466 = vmatprep.subr.bf16.mxu0 0
        %467 = vmatpush1.bf16.msra.mxu0 %v458
        %468 = vmatprep.subr.bf16.mxu0 0
        %469 = vmatpush1.bf16.msra.mxu0 0
        %470 = vmatprep.subr.bf16.mxu0 0
        %471 = vmatpush1.bf16.msra.mxu0 0
        %472 = vmatprep.subr.bf16.mxu0 0
        %473 = vmatpush1.bf16.msra.mxu0 0
        %474 = vmatprep.subr.bf16.mxu0 0
        %475 = vmatpush1.bf16.msra.mxu0 0
        %476 = vmatprep.subr.bf16.mxu0 0
        %477 = vmatpush1.bf16.msra.mxu0 0
        %478 = vmatprep.subr.bf16.mxu0 0
        %479 = vmatpush1.bf16.msra.mxu0 0
        %480 = vmatprep.subr.bf16.mxu0 0
        %481 = vmatpush1.bf16.msra.mxu0 0
        %482 = vmatprep.subr.bf16.mxu0 0
        %483 = vmatpush1.bf16.msra.mxu0 0
        %484 = vmatprep.subr.bf16.mxu0 0
        %485 = vmatpush1.bf16.msra.mxu0 0
        %486 = vmatprep.subr.bf16.mxu0 0
        %487 = vmatpush1.bf16.msra.mxu0 0
        %488 = vmatprep.subr.bf16.mxu0 0
        %489 = vmatpush1.bf16.msra.mxu0 0
        %490 = vmatprep.subr.bf16.mxu0 0
        %491 = vmatpush1.bf16.msra.mxu0 0
        %492 = vmatprep.subr.bf16.mxu0 0
        %493 = vmatpush1.bf16.msra.mxu0 0
        %494 = vmatprep.subr.bf16.mxu0 0
        %495 = vmatpush1.bf16.msra.mxu0 0
        %496 = vmatprep.mubr.bf16.mxu0 0
        %497 = vmatmul.mubr.bf16.gmra.mrb[0].mxu0 %v462
        %v498 = vpop.f32.mrb[0].mxu0
        %v499 = vadd.f32 0.0, %v498
        %v500 = vpop.f32.mrb[0].mxu0
        %v501 = vpop.f32.mrb[0].mxu0
        %v502 = vpop.f32.mrb[0].mxu0
        %503 = vdwg.mxu0
        %v504 = vpack.c.bf16 %v499, %v499
        %v505 = vld [vmem:[#allocation10] sm:$0xf]
        %v506 = vld [vmem:[#allocation10 + $0x4] sm:$0xf]
        %v507 = vld [vmem:[#allocation10 + $0x8] sm:$0xf]
        %v508 = vld [vmem:[#allocation10 + $0xc] sm:$0xf]
        %v513 = vunpack.c.l.b16 %v505
        %v514 = vunpack.c.l.b16 %v506
        %v515 = vunpack.c.l.b16 %v507
        %v516 = vunpack.c.l.b16 %v508
        %v517 = vpack.c.b16 %v514, %v513
        %v518 = vpack.c.b16 %v516, %v515
        %521 = vmatprep.subr.bf16.mxu0 0
        %522 = vmatpush1.bf16.msra.mxu0 %v517
        %523 = vmatprep.subr.bf16.mxu0 0
        %524 = vmatpush1.bf16.msra.mxu0 %v518
        %525 = vmatprep.subr.bf16.mxu0 0
        %526 = vmatpush1.bf16.msra.mxu0 0
        %527 = vmatprep.subr.bf16.mxu0 0
        %528 = vmatpush1.bf16.msra.mxu0 0
        %529 = vmatprep.subr.bf16.mxu0 0
        %530 = vmatpush1.bf16.msra.mxu0 0
        %531 = vmatprep.subr.bf16.mxu0 0
        %532 = vmatpush1.bf16.msra.mxu0 0
        %533 = vmatprep.subr.bf16.mxu0 0
        %534 = vmatpush1.bf16.msra.mxu0 0
        %535 = vmatprep.subr.bf16.mxu0 0
        %536 = vmatpush1.bf16.msra.mxu0 0
        %537 = vmatprep.subr.bf16.mxu0 0
        %538 = vmatpush1.bf16.msra.mxu0 0
        %539 = vmatprep.subr.bf16.mxu0 0
        %540 = vmatpush1.bf16.msra.mxu0 0
        %541 = vmatprep.subr.bf16.mxu0 0
        %542 = vmatpush1.bf16.msra.mxu0 0
        %543 = vmatprep.subr.bf16.mxu0 0
        %544 = vmatpush1.bf16.msra.mxu0 0
        %545 = vmatprep.subr.bf16.mxu0 0
        %546 = vmatpush1.bf16.msra.mxu0 0
        %547 = vmatprep.subr.bf16.mxu0 0
        %548 = vmatpush1.bf16.msra.mxu0 0
        %549 = vmatprep.subr.bf16.mxu0 0
        %550 = vmatpush1.bf16.msra.mxu0 0
        %551 = vmatprep.subr.bf16.mxu0 0
        %552 = vmatpush1.bf16.msra.mxu0 0
        %553 = vmatprep.mubr.bf16.mxu0 0
        %554 = vmatmul.mubr.bf16.gmra.mrb[0].mxu0 %v462
        %v555 = vpop.f32.mrb[0].mxu0
        %v556 = vadd.f32 0.0, %v555
        %v557 = vpop.f32.mrb[0].mxu0
        %v558 = vpop.f32.mrb[0].mxu0
        %v559 = vpop.f32.mrb[0].mxu0
        %560 = vdwg.mxu0
        %v561 = vpack.c.bf16 %v556, %v556
        %v562 = vld [vmem:[%s343] sm:$0x1]
        %v563 = vlaneseq
        %v564 = vshrl.u32 %v563, 7
        %v565 = vlaneseq
        %v566 = vand.u32 %v565, 127
        %vm567 = vcmp.le.s32.totalorder %v566, %v564
        %v568 = vsel %vm567, 0.0, -1e+30
        %v570 = vlaneseq
        %v571 = vshrl.u32 %v570, 7
        %v572 = vsub.s32 0, %v571
        %v573 = vrot.slane %v562, %v572
        %v575 = vadd.f32 %v573, %v568
        %vm576 = vcmask 130048
        %v578 = vsel %vm576, %v444, 0
        %v581 = vsel %vm576, %v504, 0
        %583 = vmatprep.subr.bf16.mxu0 0
        %584 = vmatpush1.bf16.xpose.msra.mxu0 %v581
        %585 = vmatprep.subr.bf16.mxu0 0
        %586 = vmatpush1.bf16.xpose.msra.mxu0 0
        %587 = vmatprep.subr.bf16.mxu0 0
        %588 = vmatpush1.bf16.xpose.msra.mxu0 0
        %589 = vmatprep.subr.bf16.mxu0 0
        %590 = vmatpush1.bf16.xpose.msra.mxu0 0
        %591 = vmatprep.subr.bf16.mxu0 0
        %592 = vmatpush1.bf16.xpose.msra.mxu0 0
        %593 = vmatprep.subr.bf16.mxu0 0
        %594 = vmatpush1.bf16.xpose.msra.mxu0 0
        %595 = vmatprep.subr.bf16.mxu0 0
        %596 = vmatpush1.bf16.xpose.msra.mxu0 0
        %597 = vmatprep.subr.bf16.mxu0 0
        %598 = vmatpush1.bf16.xpose.msra.mxu0 0
        %599 = vmatprep.subr.bf16.mxu0 0
        %600 = vmatpush1.bf16.xpose.msra.mxu0 0
        %601 = vmatprep.subr.bf16.mxu0 0
        %602 = vmatpush1.bf16.xpose.msra.mxu0 0
        %603 = vmatprep.subr.bf16.mxu0 0
        %604 = vmatpush1.bf16.xpose.msra.mxu0 0
        %605 = vmatprep.subr.bf16.mxu0 0
        %606 = vmatpush1.bf16.xpose.msra.mxu0 0
        %607 = vmatprep.subr.bf16.mxu0 0
        %608 = vmatpush1.bf16.xpose.msra.mxu0 0
        %609 = vmatprep.subr.bf16.mxu0 0
        %610 = vmatpush1.bf16.xpose.msra.mxu0 0
        %611 = vmatprep.subr.bf16.mxu0 0
        %612 = vmatpush1.bf16.xpose.msra.mxu0 0
        %613 = vmatprep.subr.bf16.mxu0 0
        %614 = vmatpush1.bf16.xpose.msra.mxu0 0
        %615 = vmatprep.mubr.bf16.mxu0 0
        %616 = vmatmul.mubr.bf16.gmra.mrb[0].mxu0 %v578
        %v617 = vpop.f32.mrb[0].mxu0
        %v618 = vadd.f32 %v575, %v617
        %v619 = vpop.f32.mrb[0].mxu0
        %v620 = vpop.f32.mrb[0].mxu0
        %v621 = vpop.f32.mrb[0].mxu0
        %622 = vdwg.mxu0
        %vm623 = vcmask 64512
        %v624 = vsel %vm623, %v618, -inf
        %625 = vmax.xlane.f32.xlu0 %v624
        %v626 = vpop.xlane.xlu0 %625
        %v627 = vsub.f32 %v618, %v626
        %v628 = vmul.f32 %v627, 1.442695
        %v629 = vpow.pop %v628
        %v630 = vsel %vm623, %v629, 0.0
        %631 = vadd.xlane.f32.xlu0 %v630
        %v632 = vpop.xlane.xlu0 %631
        %v633 = vrcp.pop %v632
        %v634 = vmul.f32 %v629, %v633
        %v635 = vpack.c.bf16 %v634, %v634
        %v637 = vsel %vm623, %v635, 0
        %vm639 = vcmask 1043456
        %v641 = vsel %vm639, %v561, 0
        %643 = vmatprep.subr.bf16.mxu0 0
        %644 = vmatpush1.bf16.msra.mxu0 %v641
        %645 = vmatprep.subr.bf16.mxu0 0
        %646 = vmatpush1.bf16.msra.mxu0 0
        %647 = vmatprep.subr.bf16.mxu0 0
        %648 = vmatpush1.bf16.msra.mxu0 0
        %649 = vmatprep.subr.bf16.mxu0 0
        %650 = vmatpush1.bf16.msra.mxu0 0
        %651 = vmatprep.subr.bf16.mxu0 0
        %652 = vmatpush1.bf16.msra.mxu0 0
        %653 = vmatprep.subr.bf16.mxu0 0
        %654 = vmatpush1.bf16.msra.mxu0 0
        %655 = vmatprep.subr.bf16.mxu0 0
        %656 = vmatpush1.bf16.msra.mxu0 0
        %657 = vmatprep.subr.bf16.mxu0 0
        %658 = vmatpush1.bf16.msra.mxu0 0
        %659 = vmatprep.subr.bf16.mxu0 0
        %660 = vmatpush1.bf16.msra.mxu0 0
        %661 = vmatprep.subr.bf16.mxu0 0
        %662 = vmatpush1.bf16.msra.mxu0 0
        %663 = vmatprep.subr.bf16.mxu0 0
        %664 = vmatpush1.bf16.msra.mxu0 0
        %665 = vmatprep.subr.bf16.mxu0 0
        %666 = vmatpush1.bf16.msra.mxu0 0
        %667 = vmatprep.subr.bf16.mxu0 0
        %668 = vmatpush1.bf16.msra.mxu0 0
        %669 = vmatprep.subr.bf16.mxu0 0
        %670 = vmatpush1.bf16.msra.mxu0 0
        %671 = vmatprep.subr.bf16.mxu0 0
        %672 = vmatpush1.bf16.msra.mxu0 0
        %673 = vmatprep.subr.bf16.mxu0 0
        %674 = vmatpush1.bf16.msra.mxu0 0
        %675 = vmatprep.mubr.bf16.mxu0 0
        %676 = vmatmul.mubr.bf16.gmra.mrb[0].mxu0 %v637
        %v677 = vpop.f32.mrb[0].mxu0
        %v678 = vadd.f32 0.0, %v677
        %v679 = vpop.f32.mrb[0].mxu0
        %v680 = vpop.f32.mrb[0].mxu0
        %v681 = vpop.f32.mrb[0].mxu0
        %682 = vdwg.mxu0
        %v683 = vpack.c.bf16 %v678, %v678
        %vm684 = vcmask 125952
        %685 = vst.msk [vmem:[%s380] sm:$0xf] %vm684, %v683
        %687 = vrot.lane.b32.xlu0 %v444, 112
        %v688 = vpop.permute.xlu0 %687
        %690 = vrot.lane.b32.xlu0 %v504, 112
        %v691 = vpop.permute.xlu0 %690
        %v693 = vsel %vm576, %v688, 0
        %v696 = vsel %vm576, %v691, 0
        %698 = vmatprep.subr.bf16.mxu0 0
        %699 = vmatpush1.bf16.xpose.msra.mxu0 %v696
        %700 = vmatprep.subr.bf16.mxu0 0
        %701 = vmatpush1.bf16.xpose.msra.mxu0 0
        %702 = vmatprep.subr.bf16.mxu0 0
        %703 = vmatpush1.bf16.xpose.msra.mxu0 0
        %704 = vmatprep.subr.bf16.mxu0 0
        %705 = vmatpush1.bf16.xpose.msra.mxu0 0
        %706 = vmatprep.subr.bf16.mxu0 0
        %707 = vmatpush1.bf16.xpose.msra.mxu0 0
        %708 = vmatprep.subr.bf16.mxu0 0
        %709 = vmatpush1.bf16.xpose.msra.mxu0 0
        %710 = vmatprep.subr.bf16.mxu0 0
        %711 = vmatpush1.bf16.xpose.msra.mxu0 0
        %712 = vmatprep.subr.bf16.mxu0 0
        %713 = vmatpush1.bf16.xpose.msra.mxu0 0
        %714 = vmatprep.subr.bf16.mxu0 0
        %715 = vmatpush1.bf16.xpose.msra.mxu0 0
        %716 = vmatprep.subr.bf16.mxu0 0
        %717 = vmatpush1.bf16.xpose.msra.mxu0 0
        %718 = vmatprep.subr.bf16.mxu0 0
        %719 = vmatpush1.bf16.xpose.msra.mxu0 0
        %720 = vmatprep.subr.bf16.mxu0 0
        %721 = vmatpush1.bf16.xpose.msra.mxu0 0
        %722 = vmatprep.subr.bf16.mxu0 0
        %723 = vmatpush1.bf16.xpose.msra.mxu0 0
        %724 = vmatprep.subr.bf16.mxu0 0
        %725 = vmatpush1.bf16.xpose.msra.mxu0 0
        %726 = vmatprep.subr.bf16.mxu0 0
        %727 = vmatpush1.bf16.xpose.msra.mxu0 0
        %728 = vmatprep.subr.bf16.mxu0 0
        %729 = vmatpush1.bf16.xpose.msra.mxu0 0
        %730 = vmatprep.mubr.bf16.mxu0 0
        %731 = vmatmul.mubr.bf16.gmra.mrb[0].mxu0 %v693
        %v732 = vpop.f32.mrb[0].mxu0
        %v733 = vadd.f32 %v575, %v732
        %v734 = vpop.f32.mrb[0].mxu0
        %v735 = vpop.f32.mrb[0].mxu0
        %v736 = vpop.f32.mrb[0].mxu0
        %737 = vdwg.mxu0
        %v738 = vsel %vm623, %v733, -inf
        %739 = vmax.xlane.f32.xlu0 %v738
        %v740 = vpop.xlane.xlu0 %739
        %v741 = vsub.f32 %v733, %v740
        %v742 = vmul.f32 %v741, 1.442695
        %v743 = vpow.pop %v742
        %v744 = vsel %vm623, %v743, 0.0
        %745 = vadd.xlane.f32.xlu0 %v744
        %v746 = vpop.xlane.xlu0 %745
        %v747 = vrcp.pop %v746
        %v748 = vmul.f32 %v743, %v747
        %v749 = vpack.c.bf16 %v748, %v748
        %751 = vrot.lane.b32.xlu0 %v561, 112
        %v752 = vpop.permute.xlu0 %751
        %v754 = vsel %vm623, %v749, 0
        %v757 = vsel %vm639, %v752, 0
        %759 = vmatprep.subr.bf16.mxu0 0
        %760 = vmatpush1.bf16.msra.mxu0 %v757
        %761 = vmatprep.subr.bf16.mxu0 0
        %762 = vmatpush1.bf16.msra.mxu0 0
        %763 = vmatprep.subr.bf16.mxu0 0
        %764 = vmatpush1.bf16.msra.mxu0 0
        %765 = vmatprep.subr.bf16.mxu0 0
        %766 = vmatpush1.bf16.msra.mxu0 0
        %767 = vmatprep.subr.bf16.mxu0 0
        %768 = vmatpush1.bf16.msra.mxu0 0
        %769 = vmatprep.subr.bf16.mxu0 0
        %770 = vmatpush1.bf16.msra.mxu0 0
        %771 = vmatprep.subr.bf16.mxu0 0
        %772 = vmatpush1.bf16.msra.mxu0 0
        %773 = vmatprep.subr.bf16.mxu0 0
        %774 = vmatpush1.bf16.msra.mxu0 0
        %775 = vmatprep.subr.bf16.mxu0 0
        %776 = vmatpush1.bf16.msra.mxu0 0
        %777 = vmatprep.subr.bf16.mxu0 0
        %778 = vmatpush1.bf16.msra.mxu0 0
        %779 = vmatprep.subr.bf16.mxu0 0
        %780 = vmatpush1.bf16.msra.mxu0 0
        %781 = vmatprep.subr.bf16.mxu0 0
        %782 = vmatpush1.bf16.msra.mxu0 0
        %783 = vmatprep.subr.bf16.mxu0 0
        %784 = vmatpush1.bf16.msra.mxu0 0
        %785 = vmatprep.subr.bf16.mxu0 0
        %786 = vmatpush1.bf16.msra.mxu0 0
        %787 = vmatprep.subr.bf16.mxu0 0
        %788 = vmatpush1.bf16.msra.mxu0 0
        %789 = vmatprep.subr.bf16.mxu0 0
        %790 = vmatpush1.bf16.msra.mxu0 0
        %791 = vmatprep.mubr.bf16.mxu0 0
        %792 = vmatmul.mubr.bf16.gmra.mrb[0].mxu0 %v754
        %v793 = vpop.f32.mrb[0].mxu0
        %v794 = vadd.f32 0.0, %v793
        %v795 = vpop.f32.mrb[0].mxu0
        %v796 = vpop.f32.mrb[0].mxu0
        %v797 = vpop.f32.mrb[0].mxu0
        %798 = vdwg.mxu0
        %v799 = vpack.c.bf16 %v794, %v794
        %v801 = vunpack.c.l.b16 %v799
        %v802 = vpack.c.b16 %v801, %v801
        %803 = vrot.lane.b32.xlu0 %v802, 16
        %v804 = vpop.permute.xlu0 %803
        %vm806 = vcmask 257152
        %807 = vst.msk [vmem:[%s380] sm:$0xf] %vm806, %v804
        %s808 = sand.u32 %s179, 1
        %s809 = scalar_lea.sflag [#allocation4], %s808
        %s810 = sand.u32 %s179, 1
        %s811 = smul.addr %s810, 4
        %s812 = scalar_lea.vmem [#allocation13], %s811
        // Predicated region
        $region69: #{_lambda_.23} parent=43 // pred_check
          %p813 = pneg %p189
        $region70: #{_lambda_.23} parent=43 // pred_check_branch
          %815 = sbr.rel (%p813) target = $region72
        $region71: #{_lambda_.23} parent=43 // pred_region
          %s817 = ssub.s32 64, 64
          %818 = vsyncadd %s809, %s817
          %s819 = smul.addr %s30, 64
          %s820 = scalar_lea.hbm %s6, %s819
          %s822 = sshll.u32 %s812, 4
          %s823 = int_to_ptr.vmem [resolvable:$true] %s822
          %825 = dma.vmem_to_hbm [thread:$0]  %s823, 64, %s820, %s809
        $region72: #{_lambda_.23} parent=43 // pred_fallthru
          _
      $region44: #{_lambda_.23} parent=5 // pred_fallthru
        _
      %p826 = scmp.le.s32.totalorder 2, %s25
      // Predicated region
      $region73: #{_lambda_.23} parent=5 // pred_check
        %p827 = pneg %p826
      $region74: #{_lambda_.23} parent=5 // pred_check_branch
        %829 = sbr.rel (%p827) target = $region76
      $region75: #{_lambda_.23} parent=5 // pred_region
        %s830 = ssub.s32 %s25, 2
        // Predicated region
        $region77: #{_lambda_.23} parent=75 // pred_check
          %p831 = pneg %p195
        $region78: #{_lambda_.23} parent=75 // pred_check_branch
          %833 = sbr.rel (%p831) target = $region80
        $region79: #{_lambda_.23} parent=75 // pred_region
          %s834 = sand.u32 %s180, 1
          %s835 = scalar_lea.sflag [#allocation4], %s834
          %s836 = sand.u32 %s180, 1
          %s837 = smul.addr %s836, 4
          %s838 = scalar_lea.vmem [#allocation13], %s837
          %839 = dma.done %s835, 64
        $region80: #{_lambda_.23} parent=75 // pred_fallthru
          _
      $region76: #{_lambda_.23} parent=5 // pred_fallthru
        _
    $region6: #{_lambda_.23} parent=1 // loop_footer
      %s29 = sadd.s32 1, %s25
    $region7: #{_lambda_.23} parent=1 // loop_footer_branch
      %24 = sbr.rel target = $region3
    $region8: #{_lambda_.23} parent=1 // loop_exit
      _
    %840 = vsyncpa [#allocation3], 1
    %s841 = scalar_lea.sflag [#allocation3], 1
    %842 = vsyncpa %s841, 1
    %843 = vsyncpa [#allocation6], 1
    %s844 = scalar_lea.sflag [#allocation6], 1
    %845 = vsyncpa %s844, 1
    %846 = vsyncpa [#allocation9], 1
    %847 = vsyncpa [#allocation12], 1
    %s848 = scalar_lea.sflag [#allocation12], 1
    %849 = vsyncpa %s848, 1
    %850 = vsyncpa [#allocation4], 1
    %s851 = scalar_lea.sflag [#allocation4], 1
    %852 = vsyncpa %s851, 1

// kernel: _lambda_.33
$region0: #{_lambda_.33}
  #allocation0 [shape = 'u32[]', space=smem, size = 0x4, offset = 0x4, fixed_abs, tag = 'smem constant byte address 0x4 - core index']
  #allocation1 [shape = 'u32[144,128]{1,0:T(1,128)}', space=vmem, size = 0x12000, scoped, tag = 'internal scratch']
  %s0 = inlined_call_operand.hbm [shape: bf16[16,32], index: 0, kind: input, shape index: {}]
  %s1 = inlined_call_operand.hbm [shape: bf16[32,64], index: 1, kind: input, shape index: {}]
  %s2 = inlined_call_operand.hbm [shape: f32[16,64], index: 2, kind: output, shape index: {}]
  %s3 = sld [smem:[#allocation0]]
  $region49: #{_lambda_.33} parent=0
    _
  %s5 = ssub.s32 1, %s3
  %s6 = scalar_select 0, %s5, %s3
  $region1: #{_lambda_.33} parent=0
    #allocation2 [shape = 'u8[4096]{0}', space=vmem, size = 0x1000, scoped, tag = 'input window, operand 0']
    #allocation3 [shape = 's32[2]{0}', space=sflag, size = 0x8, scoped, tag = 'scoped memory for _lambda_.33']
    #allocation4 [shape = 's32[2]{0}', space=sflag, size = 0x8, scoped, tag = 'scoped memory for _lambda_.33']
    #allocation5 [shape = 'u8[8192]{0}', space=vmem, size = 0x2000, scoped, tag = 'input window, operand 1, single buffered']
    #allocation6 [shape = 's32[1]{0}', space=sflag, size = 0x4, scoped, tag = 'scoped memory for _lambda_.33']
    #allocation7 [shape = 'u8[8192]{0}', space=vmem, size = 0x2000, scoped, tag = 'output window, operand 0']
    %7 = vsyncpa [#allocation3], 0
    %s8 = scalar_lea.sflag [#allocation3], 1
    %9 = vsyncpa %s8, 0
    %10 = vsyncpa [#allocation6], 0
    %11 = vsyncpa [#allocation4], 0
    %s12 = scalar_lea.sflag [#allocation4], 1
    %13 = vsyncpa %s12, 0
    loop: start=0, step=1, limit=4
    $region2: #{_lambda_.33} parent=1 // loop_pre_header
      _
    $region3: #{_lambda_.33} parent=1 // loop_header
      %s15 = sphi 0, %s19
      %p16 = scmp.ge.s32.totalorder %s15, 4
      %s22 = sphi 0, %s34
      %s23 = sphi 0, %s30
      %s24 = sphi 0, %s22
      %s25 = sphi 0, %s23
      %s26 = sphi 0, %s24
      %s27 = sphi 0, %s25
      %s37 = sphi 0, %s39
      %s40 = sphi 0, %s37
      %s41 = sphi 0, %s40
      %s57 = sphi 0, %s41
      %s63 = sphi 0, %s65
      %s66 = sphi 0, %s63
      %s67 = sphi 0, %s66
      %s83 = sphi 0, %s67
      %s91 = sphi 0, %s93
      %s94 = sphi 0, %s91
      %s95 = sphi 0, %s94
      %s111 = sphi 0, %s95
    $region4: #{_lambda_.33} parent=1 // loop_header_branch
      %18 = sbr.rel (%p16) target = $region8
    $region5: #{_lambda_.33} parent=1 // loop_body
      %s20 = ssub.s32 %s15, 1
      %s21 = ssub.s32 %s15, 2
      %s28 = sadd.s32 1, %s23
      %p29 = scmp.ge.s32.totalorder %s28, 1
      %s30 = scalar_select %p29, 0, %s28
      %s31 = sadd.s32 1, %s22
      %s32 = scalar_select %p29, %s31, %s22
      %p33 = scmp.ge.s32.totalorder %s32, 2
      %s34 = scalar_select %p33, 0, %s32
      %s35 = ssub.s32 %s22, %s34
      %p36 = scmp.eq.s32.totalorder %s35, 0
      %s38 = sadd.s32 %s37, 1
      %s39 = scalar_select %p36, %s37, %s38
      %p42 = pneg %p36
      %p43 = scmp.eq.s32.totalorder %s15, 1
      %p44 = por %p42, %p43
      %p45 = scmp.ne.s32.totalorder %s37, %s40
      %p46 = scmp.eq.s32.totalorder %s15, 0
      %p47 = por %p45, %p46
      %p48 = scmp.ne.s32.totalorder %s37, %s40
      %p49 = scmp.eq.s32.totalorder %s20, 1
      %p50 = por %p48, %p49
      %p51 = scmp.ne.s32.totalorder %s40, %s41
      %p52 = scmp.eq.s32.totalorder %s20, 0
      %p53 = por %p51, %p52
      %p54 = scmp.ne.s32.totalorder %s40, %s41
      %p55 = scmp.eq.s32.totalorder %s21, 1
      %p56 = por %p54, %p55
      %p58 = scmp.ne.s32.totalorder %s41, %s57
      %p59 = scmp.eq.s32.totalorder %s21, 0
      %p60 = por %p58, %p59
      %s61 = ssub.s32 %s23, %s30
      %p62 = scmp.eq.s32.totalorder %s61, 0
      %s64 = sadd.s32 %s63, 1
      %s65 = scalar_select %p62, %s63, %s64
      %p68 = pneg %p62
      %p69 = scmp.eq.s32.totalorder %s15, 1
      %p70 = por %p68, %p69
      %p71 = scmp.ne.s32.totalorder %s63, %s66
      %p72 = scmp.eq.s32.totalorder %s15, 0
      %p73 = por %p71, %p72
      %p74 = scmp.ne.s32.totalorder %s63, %s66
      %p75 = scmp.eq.s32.totalorder %s20, 1
      %p76 = por %p74, %p75
      %p77 = scmp.ne.s32.totalorder %s66, %s67
      %p78 = scmp.eq.s32.totalorder %s20, 0
      %p79 = por %p77, %p78
      %p80 = scmp.ne.s32.totalorder %s66, %s67
      %p81 = scmp.eq.s32.totalorder %s21, 1
      %p82 = por %p80, %p81
      %p84 = scmp.ne.s32.totalorder %s67, %s83
      %p85 = scmp.eq.s32.totalorder %s21, 0
      %p86 = por %p84, %p85
      %s87 = ssub.s32 %s22, %s34
      %s88 = ssub.s32 %s23, %s30
      %s89 = sor.u32 %s87, %s88
      %p90 = scmp.eq.s32.totalorder %s89, 0
      %s92 = sadd.s32 %s91, 1
      %s93 = scalar_select %p90, %s91, %s92
      %p96 = pneg %p90
      %p97 = scmp.eq.s32.totalorder %s15, 1
      %p98 = por %p96, %p97
      %p99 = scmp.ne.s32.totalorder %s91, %s94
      %p100 = scmp.eq.s32.totalorder %s15, 0
      %p101 = por %p99, %p100
      %p102 = scmp.ne.s32.totalorder %s91, %s94
      %p103 = scmp.eq.s32.totalorder %s20, 1
      %p104 = por %p102, %p103
      %p105 = scmp.ne.s32.totalorder %s94, %s95
      %p106 = scmp.eq.s32.totalorder %s20, 0
      %p107 = por %p105, %p106
      %p108 = scmp.ne.s32.totalorder %s94, %s95
      %p109 = scmp.eq.s32.totalorder %s21, 1
      %p110 = por %p108, %p109
      %p112 = scmp.ne.s32.totalorder %s95, %s111
      %p113 = scmp.eq.s32.totalorder %s21, 0
      %p114 = por %p112, %p113
      %p115 = scmp.le.s32.totalorder 1, %s15
      %p116 = scmp.lt.s32.totalorder %s15, 3
      %p117 = pnand %p115, %p116
      %p118 = pneg %p117
      // Predicated region
      $region9: #{_lambda_.33} parent=5 // pred_check
        _
      $region10: #{_lambda_.33} parent=5 // pred_check_branch
        %120 = sbr.rel (%p117) target = $region12
      $region11: #{_lambda_.33} parent=5 // pred_region
        %s121 = ssub.s32 %s15, 1
        // Predicated region
        $region13: #{_lambda_.33} parent=11 // pred_check
          %p122 = pneg %p79
        $region14: #{_lambda_.33} parent=11 // pred_check_branch
          %124 = sbr.rel (%p122) target = $region16
        $region15: #{_lambda_.33} parent=11 // pred_region
          %s126 = ssub.s32 256, 256
          %127 = vsyncadd [#allocation6], %s126
          %s128 = smul.addr %s25, 64
          %s129 = scalar_lea.hbm %s1, %s128
          %s130 = sshll.u32 [#allocation5], 4
          %s131 = int_to_ptr.vmem [resolvable:$true] %s130
          %136 = dma.hbm_to_vmem [thread:$0]  %s129, 256, %s131, [#allocation6], 64, 64, 4
        $region16: #{_lambda_.33} parent=11 // pred_fallthru
          _
      $region12: #{_lambda_.33} parent=5 // pred_fallthru
        _
      %p137 = scmp.lt.s32.totalorder %s15, 2
      // Predicated region
      $region17: #{_lambda_.33} parent=5 // pred_check
        %p138 = pneg %p137
      $region18: #{_lambda_.33} parent=5 // pred_check_branch
        %140 = sbr.rel (%p138) target = $region20
      $region19: #{_lambda_.33} parent=5 // pred_region
        // Predicated region
        $region21: #{_lambda_.33} parent=19 // pred_check
          %p141 = pneg %p47
        $region22: #{_lambda_.33} parent=19 // pred_check_branch
          %143 = sbr.rel (%p141) target = $region24
        $region23: #{_lambda_.33} parent=19 // pred_region
          %s144 = sand.u32 %s37, 1
          %s145 = scalar_lea.sflag [#allocation3], %s144
          %s146 = sand.u32 %s37, 1
          %s147 = smul.addr %s146, 4
          %s148 = scalar_lea.vmem [#allocation2], %s147
          %s150 = ssub.s32 64, 64
          %151 = vsyncadd %s145, %s150
          %s152 = smul.addr %s22, 64
          %s153 = scalar_lea.hbm %s0, %s152
          %s155 = sshll.u32 %s148, 4
          %s156 = int_to_ptr.vmem [resolvable:$true] %s155
          %158 = dma.hbm_to_vmem [thread:$0]  %s153, 64, %s156, %s145
        $region24: #{_lambda_.33} parent=19 // pred_fallthru
          _
      $region20: #{_lambda_.33} parent=5 // pred_fallthru
        _
      %p159 = scmp.le.s32.totalorder 1, %s15
      %p160 = scmp.lt.s32.totalorder %s15, 3
      %p161 = pnand %p159, %p160
      %p162 = pneg %p161
      // Predicated region
      $region25: #{_lambda_.33} parent=5 // pred_check
        _
      $region26: #{_lambda_.33} parent=5 // pred_check_branch
        %164 = sbr.rel (%p161) target = $region28
      $region27: #{_lambda_.33} parent=5 // pred_region
        %s165 = ssub.s32 %s15, 1
        %s166 = sand.u32 %s40, 1
        %s167 = scalar_lea.sflag [#allocation3], %s166
        %s168 = sand.u32 %s40, 1
        %s169 = smul.addr %s168, 4
        %s170 = scalar_lea.vmem [#allocation2], %s169
        // Predicated region
        $region29: #{_lambda_.33} parent=27 // pred_check
          %p171 = pneg %p53
        $region30: #{_lambda_.33} parent=27 // pred_check_branch
          %173 = sbr.rel (%p171) target = $region32
        $region31: #{_lambda_.33} parent=27 // pred_region
          %174 = dma.done %s167, 64
        $region32: #{_lambda_.33} parent=27 // pred_fallthru
          _
        // Predicated region
        $region33: #{_lambda_.33} parent=27 // pred_check
          %p175 = pneg %p79
        $region34: #{_lambda_.33} parent=27 // pred_check_branch
          %177 = sbr.rel (%p175) target = $region36
        $region35: #{_lambda_.33} parent=27 // pred_region
          %178 = dma.done [#allocation6], 256
        $region36: #{_lambda_.33} parent=27 // pred_fallthru
          _
        %s179 = sand.u32 %s40, 1
        %s180 = scalar_lea.sflag [#allocation3], %s179
        %s181 = sand.u32 %s40, 1
        %s182 = smul.addr %s181, 4
        %s183 = scalar_lea.vmem [#allocation2], %s182
        %p184 = pneg %p53
        %p185 = pneg %p50
        %p186 = pneg %p79
        %p187 = pneg %p76
        %p188 = pneg %p107
        %p189 = pneg %p104
        %s190 = sand.u32 %s94, 1
        %s191 = scalar_lea.sflag [#allocation4], %s190
        %s192 = sand.u32 %s94, 1
        %s193 = smul.addr %s192, 8
        %s194 = scalar_lea.vmem [#allocation7], %s193
        %v196 = vld [vmem:[%s170] sm:$0xf]
        %v197 = vld [vmem:[#allocation5] sm:$0xf]
        %v198 = vld [vmem:[#allocation5 + $0x4] sm:$0xf]
        %v199 = vld [vmem:[#allocation5 + $0x8] sm:$0xf]
        %v200 = vld [vmem:[#allocation5 + $0xc] sm:$0xf]
        %v205 = vunpack.c.l.b16 %v197
        %v206 = vunpack.c.l.b16 %v198
        %v207 = vunpack.c.l.b16 %v199
        %v208 = vunpack.c.l.b16 %v200
        %v209 = vpack.c.b16 %v206, %v205
        %v210 = vpack.c.b16 %v208, %v207
        %vm213 = vcmask 261120
        %v215 = vsel %vm213, %v196, 0
        %217 = vmatprep.subr.bf16.mxu0 0
        %218 = vmatpush1.bf16.msra.mxu0 %v209
        %219 = vmatprep.subr.bf16.mxu0 0
        %220 = vmatpush1.bf16.msra.mxu0 %v210
        %221 = vmatprep.subr.bf16.mxu0 0
        %222 = vmatpush1.bf16.msra.mxu0 0
        %223 = vmatprep.subr.bf16.mxu0 0
        %224 = vmatpush1.bf16.msra.mxu0 0
        %225 = vmatprep.subr.bf16.mxu0 0
        %226 = vmatpush1.bf16.msra.mxu0 0
        %227 = vmatprep.subr.bf16.mxu0 0
        %228 = vmatpush1.bf16.msra.mxu0 0
        %229 = vmatprep.subr.bf16.mxu0 0
        %230 = vmatpush1.bf16.msra.mxu0 0
        %231 = vmatprep.subr.bf16.mxu0 0
        %232 = vmatpush1.bf16.msra.mxu0 0
        %233 = vmatprep.subr.bf16.mxu0 0
        %234 = vmatpush1.bf16.msra.mxu0 0
        %235 = vmatprep.subr.bf16.mxu0 0
        %236 = vmatpush1.bf16.msra.mxu0 0
        %237 = vmatprep.subr.bf16.mxu0 0
        %238 = vmatpush1.bf16.msra.mxu0 0
        %239 = vmatprep.subr.bf16.mxu0 0
        %240 = vmatpush1.bf16.msra.mxu0 0
        %241 = vmatprep.subr.bf16.mxu0 0
        %242 = vmatpush1.bf16.msra.mxu0 0
        %243 = vmatprep.subr.bf16.mxu0 0
        %244 = vmatpush1.bf16.msra.mxu0 0
        %245 = vmatprep.subr.bf16.mxu0 0
        %246 = vmatpush1.bf16.msra.mxu0 0
        %247 = vmatprep.subr.bf16.mxu0 0
        %248 = vmatpush1.bf16.msra.mxu0 0
        %249 = vmatprep.mubr.bf16.mxu0 0
        %250 = vmatmul.mubr.bf16.gmra.mrb[0].mxu0 %v215
        %v251 = vpop.f32.mrb[0].mxu0
        %v252 = vadd.f32 0.0, %v251
        %v253 = vpop.f32.mrb[0].mxu0
        %v254 = vpop.f32.mrb[0].mxu0
        %v255 = vpop.f32.mrb[0].mxu0
        %256 = vdwg.mxu0
        %vm257 = vcmask 523264
        %258 = vst.msk [vmem:[%s194] sm:$0xff] %vm257, %v252
        %s259 = sand.u32 %s94, 1
        %s260 = scalar_lea.sflag [#allocation4], %s259
        %s261 = sand.u32 %s94, 1
        %s262 = smul.addr %s261, 8
        %s263 = scalar_lea.vmem [#allocation7], %s262
        // Predicated region
        $region37: #{_lambda_.33} parent=27 // pred_check
          %p264 = pneg %p104
        $region38: #{_lambda_.33} parent=27 // pred_check_branch
          %266 = sbr.rel (%p264) target = $region40
        $region39: #{_lambda_.33} parent=27 // pred_region
          %s268 = ssub.s32 128, 128
          %269 = vsyncadd %s260, %s268
          %s270 = sadd.s32 %s25, %s24
          %s271 = smul.addr %s270, 128
          %s272 = scalar_lea.hbm %s2, %s271
          %s274 = sshll.u32 %s263, 4
          %s275 = int_to_ptr.vmem [resolvable:$true] %s274
          %277 = dma.vmem_to_hbm [thread:$0]  %s275, 128, %s272, %s260
        $region40: #{_lambda_.33} parent=27 // pred_fallthru
          _
      $region28: #{_lambda_.33} parent=5 // pred_fallthru
        _
      %p278 = scmp.le.s32.totalorder 2, %s15
      // Predicated region
      $region41: #{_lambda_.33} parent=5 // pred_check
        %p279 = pneg %p278
      $region42: #{_lambda_.33} parent=5 // pred_check_branch
        %281 = sbr.rel (%p279) target = $region44
      $region43: #{_lambda_.33} parent=5 // pred_region
        %s282 = ssub.s32 %s15, 2
        // Predicated region
        $region45: #{_lambda_.33} parent=43 // pred_check
          %p283 = pneg %p110
        $region46: #{_lambda_.33} parent=43 // pred_check_branch
          %285 = sbr.rel (%p283) target = $region48
        $region47: #{_lambda_.33} parent=43 // pred_region
          %s286 = sand.u32 %s95, 1
          %s287 = scalar_lea.sflag [#allocation4], %s286
          %s288 = sand.u32 %s95, 1
          %s289 = smul.addr %s288, 8
          %s290 = scalar_lea.vmem [#allocation7], %s289
          %291 = dma.done %s287, 128
        $region48: #{_lambda_.33} parent=43 // pred_fallthru
          _
      $region44: #{_lambda_.33} parent=5 // pred_fallthru
        _
    $region6: #{_lambda_.33} parent=1 // loop_footer
      %s19 = sadd.s32 1, %s15
    $region7: #{_lambda_.33} parent=1 // loop_footer_branch
      %14 = sbr.rel target = $region3
    $region8: #{_lambda_.33} parent=1 // loop_exit
      _
    %292 = vsyncpa [#allocation3], 1
    %s293 = scalar_lea.sflag [#allocation3], 1
    %294 = vsyncpa %s293, 1
    %295 = vsyncpa [#allocation6], 1
    %296 = vsyncpa [#allocation4], 1
    %s297 = scalar_lea.sflag [#allocation4], 1
    %298 = vsyncpa %s297, 1

</llo_original>
